<compile_context>
chip_gen: v6e
topology: v6e:2x2x1
jax: 0.10.0
libtpu: 0.0.40
codegen_flags: <defaults>
</compile_context>

<pallas_src>
import functools

import jax
import jax.numpy as jnp
import numpy as np
from jax import lax
from jax.experimental import pallas as pl
from jax.experimental.pallas import tpu as pltpu


def _conv_kernel(x_ref, w_ref, b_ref, o_ref, *stat_refs, K, dil, stride, TH,
                 W_out, Cout_pad, use_relu, emit_stats):
    """One (batch element, output-row tile) per grid step.

    x_ref  : (1, Hp, Wp, Cin)          padded NHWC input (bf16), full image;
                                       resident in VMEM across the row-tile axis
    w_ref  : (K*K, Cin, Cout_pad)      taps flattened, Cout lane-padded (bf16)
    b_ref  : (1, Cout_pad)             bias (f32)
    o_ref  : (1, TH, W_out, Cout_pad)  conv output tile (bf16, lane-dense)
    stat_refs (only when emit_stats):
      sum_ref, sq_ref : (1, 8, Cout_pad) per-channel bias-free sum / sum^2,
                        accumulated across the row-tile axis (revisited block).
    """
    t = pl.program_id(1)

    if emit_stats:
        sum_ref, sq_ref = stat_refs

        # Stat blocks are revisited across the sequential row-tile axis:
        # zero once per batch element, then accumulate.
        @pl.when(t == 0)
        def _():
            sum_ref[...] = jnp.zeros_like(sum_ref)
            sq_ref[...] = jnp.zeros_like(sq_ref)

    row0 = pl.multiple_of(t * (TH * stride), TH * stride)

    # Row-tiled register accumulator: TH*W_out <= 256 keeps this <= 32 vregs
    # (no spills); bigger W_out would need an extra W tile (see _pick_tile_h).
    acc = jnp.zeros((TH, W_out, Cout_pad), jnp.float32)

    # TODO(synk): fold the K*K taps into a single MXU contraction (im2col the
    # patch to (TH*W_out, K*K*Cin)) once unaligned lane-axis concatenation is
    # verified on all target Mosaic versions; with tiny Cin the kernel is
    # HBM/store bound, so the per-tap dots currently hide under the DMA.
    for kh in range(K):
        if stride == 1:
            # One window load per kh tap; the K kw shifts are cheap static
            # slices of the loaded window instead of K separate ref reads.
            win = x_ref[0, pl.ds(row0 + kh * dil, TH), :, :]
            taps = [win[:, kw * dil:kw * dil + W_out, :] for kw in range(K)]
        else:
            # stride > 1: strided ref reads decimate in the load path (no
            # value-level lax.slice over rows/cols that are never used).
            taps = [
                x_ref[0,
                      pl.ds(row0 + kh * dil, TH, stride=stride),
                      pl.ds(kw * dil, W_out, stride=stride), :]
                for kw in range(K)
            ]
        for kw in range(K):
            acc += lax.dot_general(
                taps[kw], w_ref[kh * K + kw],
                dimension_numbers=(((2,), (0,)), ((), ())),
                preferred_element_type=jnp.float32)

    if emit_stats:
        # Shifted (bias-free) sums for the BatchNorm batch statistics:
        # Var(x + bias) == Var(x), so excluding the bias avoids catastrophic
        # cancellation in the host-side E[x^2] - E[x]^2.
        s1 = jnp.sum(jnp.sum(acc, axis=0), axis=0, keepdims=True)        # (1, Cout_pad)
        s2 = jnp.sum(jnp.sum(acc * acc, axis=0), axis=0, keepdims=True)  # (1, Cout_pad)
        # Broadcast-accumulate into the 8 stat sublanes (keeps the RMW store
        # lane/sublane-dense); the host reads row 0 only.
        sum_ref[0] += s1
        sq_ref[0] += s2

    acc = acc + b_ref[0]
    if use_relu:
        acc = jnp.maximum(acc, 0.0)
    o_ref[0] = acc.astype(o_ref.dtype)   # bf16 store: half the HBM writeback


def _pick_tile_h(h_out, w_out, max_acc_elems=256):
    """Largest TH dividing H_out with TH*W_out <= 256 (acc <= ~32 vregs).

    Do NOT shrink TH just to manufacture grid steps: on single-TC chips
    (v5e/v6e) that only shrinks the MXU M dim and adds per-step overhead;
    megacore sharding (v7x) happens on the batch axis instead.
    """
    best = 1
    for th in range(1, h_out + 1):
        if h_out % th == 0 and th * w_out <= max_acc_elems:
            best = th
    # TODO(synk): when W_out > max_acc_elems, also tile W_out (extra grid axis
    # with a halo'd column window) instead of falling back to TH = 1.
    return best


def _vmem_limit_bytes():
    """Raised scoped-VMEM limit, generation-aware, with headroom below physical."""
    try:
        cap = int(pltpu.get_tpu_info().vmem_capacity_bytes)
    except Exception:  # conservative fallback (fits v5e/v6e/v7x physical VMEM)
        cap = 64 * 1024 * 1024
    return min(cap * 3 // 4, 112 * 1024 * 1024)


def base_conv_forward(x_nchw, weight_oihw, bias, *, stride=1, dilation=1,
                      activation=None, use_bn=False, bn_weight=None,
                      bn_bias=None, bn_eps=1e-5, compute_dtype=jnp.bfloat16,
                      out_dtype=jnp.bfloat16):
    """Forward pass matching BaseConv.forward (PyTorch NCHW in / NCHW out).

    MXU operands are cast to `compute_dtype` (bf16 default: 2x MXU rate, half
    the DMA bytes); accumulation / bias / BN / relu math stays in f32.  The conv
    intermediate is stored in `out_dtype` (bf16 default) to halve writeback.
    TODO(synk): on v7x, evaluate fp8 (e4m3) operands once accuracy budget allows.
    """
    N, Cin, H, W = x_nchw.shape
    Cout, Cin_w, K, _ = weight_oihw.shape
    assert Cin == Cin_w
    pad = dilation * (K - 1) // 2        # same padding formula as the PyTorch module
    H_out = (H + 2 * pad - dilation * (K - 1) - 1) // stride + 1
    W_out = (W + 2 * pad - dilation * (K - 1) - 1) // stride + 1
    Hp, Wp = H + 2 * pad, W + 2 * pad

    Cout_pad = -(-Cout // 128) * 128     # lane-dense output channels
    TH = _pick_tile_h(H_out, W_out)
    T = H_out // TH

    # --- plain-JAX glue: layout + halo padding ------------------------------
    # TODO(synk): keep the whole model NHWC and pre-pad once per model so these
    # boundary transposes / pads (full HBM passes) disappear, and fold the BN
    # apply + relu + channel slice + NCHW transpose into a small Pallas epilogue.
    x_nhwc = jnp.transpose(x_nchw, (0, 2, 3, 1)).astype(compute_dtype)
    x_pad = jnp.pad(x_nhwc, ((0, 0), (pad, pad), (pad, pad), (0, 0)))

    # Weights OIHW -> (K*K, Cin, Cout_pad): taps flattened, Cout lane-padded.
    w = jnp.transpose(weight_oihw, (2, 3, 1, 0)).reshape(K * K, Cin, Cout)
    w = jnp.pad(w, ((0, 0), (0, 0), (0, Cout_pad - Cout))).astype(compute_dtype)
    b = jnp.pad(bias, (0, Cout_pad - Cout)).reshape(1, Cout_pad).astype(jnp.float32)

    use_relu = (activation == "relu") and not use_bn  # with BN, relu follows BN
    emit_stats = bool(use_bn)

    kernel = functools.partial(
        _conv_kernel, K=K, dil=dilation, stride=stride, TH=TH, W_out=W_out,
        Cout_pad=Cout_pad, use_relu=use_relu, emit_stats=emit_stats)

    out_shapes = [jax.ShapeDtypeStruct((N, H_out, W_out, Cout_pad), out_dtype)]
    out_specs = [pl.BlockSpec((1, TH, W_out, Cout_pad), lambda n, t: (n, t, 0, 0))]
    if emit_stats:
        out_shapes += [jax.ShapeDtypeStruct((N, 8, Cout_pad), jnp.float32)] * 2
        # Constant block index across t: the stat block stays VMEM-resident and
        # accumulates across the sequential row-tile axis (one writeback per n).
        out_specs += [pl.BlockSpec((1, 8, Cout_pad), lambda n, t: (n, 0, 0))] * 2

    flops = 2 * N * H_out * W_out * K * K * Cin * Cout_pad
    bytes_accessed = (x_pad.size * x_pad.dtype.itemsize
                      + w.size * w.dtype.itemsize + b.size * 4
                      + N * H_out * W_out * Cout_pad * jnp.dtype(out_dtype).itemsize
                      + (2 * N * 8 * Cout_pad * 4 if emit_stats else 0))

    results = pl.pallas_call(
        kernel,
        out_shape=tuple(out_shapes),
        grid_spec=pltpu.PrefetchScalarGridSpec(
            num_scalar_prefetch=0,
            # Row-tile axis innermost & sequential: the x block stays resident
            # per batch element (no re-DMA) and the stat block accumulates.
            grid=(N, T),
            in_specs=[
                # Full padded image per batch element.
                # TODO(synk): for large H*W on v7x (64 MiB VMEM) switch to a
                # manually DMA'd halo'd row-tile input (memory_space=pl.ANY +
                # pltpu.make_async_copy) so the working set stays ~2 tiles.
                pl.BlockSpec((1, Hp, Wp, Cin), lambda n, t: (n, 0, 0, 0)),
                pl.BlockSpec((K * K, Cin, Cout_pad), lambda n, t: (0, 0, 0)),
                pl.BlockSpec((1, Cout_pad), lambda n, t: (0, 0)),
            ],
            out_specs=out_specs,
        ),
        compiler_params=pltpu.CompilerParams(
            # Megacore (v7x) splits on the batch axis only; the row-tile axis is
            # sequential so the resident image block is never fetched twice.
            dimension_semantics=("parallel", "arbitrary"),
            vmem_limit_bytes=_vmem_limit_bytes()),
        cost_estimate=pl.CostEstimate(
            flops=int(flops), transcendentals=0,
            bytes_accessed=int(bytes_accessed)),
    )(x_pad, w, b)

    if emit_stats:
        out_nhwc, psum, psq = results
    else:
        out_nhwc = results[0] if isinstance(results, (tuple, list)) else results

    if use_bn:
        # Tiny fused-BN epilogue: reduce the per-batch-element stats, then one
        # elementwise scale/shift(+relu) pass over the bf16 conv output (XLA
        # fuses this with the channel slice and the NHWC->NCHW transpose).
        cnt = float(N * H_out * W_out)
        s1 = psum[:, 0, :Cout].sum(axis=0)                    # bias-free sums
        s2 = psq[:, 0, :Cout].sum(axis=0)
        mean_nb = s1 / cnt
        var = jnp.maximum(s2 / cnt - mean_nb * mean_nb, 0.0)  # biased var (training BN)
        mean = mean_nb + bias                                 # undo the bias shift
        inv = lax.rsqrt(var + bn_eps)
        scale = bn_weight * inv
        shift = bn_bias - mean * scale
        y = out_nhwc[..., :Cout].astype(jnp.float32) * scale + shift
        if activation == "relu":
            y = jnp.maximum(y, 0.0)
    else:
        y = out_nhwc[..., :Cout].astype(jnp.float32)

    return jnp.transpose(y, (0, 3, 1, 2))  # back to NCHW, f32


def _reference(x_nchw, weight_oihw, bias, *, stride=1, dilation=1,
               activation=None, use_bn=False, bn_weight=None, bn_bias=None,
               bn_eps=1e-5, compute_dtype=jnp.bfloat16):
    K = weight_oihw.shape[2]
    pad = dilation * (K - 1) // 2
    out = lax.conv_general_dilated(
        x_nchw.astype(compute_dtype), weight_oihw.astype(compute_dtype),
        window_strides=(stride, stride),
        padding=[(pad, pad), (pad, pad)], rhs_dilation=(dilation, dilation),
        dimension_numbers=("NCHW", "OIHW", "NCHW"),
        preferred_element_type=jnp.float32)
    out = out + bias.reshape(1, -1, 1, 1)
    if use_bn:
        mean = jnp.mean(out, axis=(0, 2, 3), keepdims=True)
        var = jnp.mean((out - mean) ** 2, axis=(0, 2, 3), keepdims=True)
        out = (out - mean) * lax.rsqrt(var + bn_eps)
        out = out * bn_weight.reshape(1, -1, 1, 1) + bn_bias.reshape(1, -1, 1, 1)
    if activation == "relu":
        out = jnp.maximum(out, 0.0)
    return out


if __name__ == "__main__":
    # BaseConv(in_channels=4, out_channels=8, kernel=3, ...)
    N, Cin, H, W = 2, 4, 16, 16
    Cout, K = 8, 3

    key = jax.random.PRNGKey(0)
    kx, kw_ = jax.random.split(key)

    x = jax.random.normal(kx, (N, Cin, H, W), dtype=jnp.float32)
    # conv.weight.data.normal_(0, 0.01); conv.bias.data.zero_()
    weight = 0.01 * jax.random.normal(kw_, (Cout, Cin, K, K), dtype=jnp.float32)
    bias = jnp.zeros((Cout,), jnp.float32)
    # bn.weight.fill_(1); bn.bias.zero_()
    bn_weight = jnp.ones((Cout,), jnp.float32)
    bn_bias = jnp.zeros((Cout,), jnp.float32)

    configs = [
        dict(stride=1, dilation=1, activation="relu", use_bn=True),   # BN + relu
        dict(stride=1, dilation=2, activation="relu", use_bn=False),  # dilated, in-kernel relu
    ]
    for cfg in configs:
        out = base_conv_forward(x, weight, bias, bn_weight=bn_weight,
                                bn_bias=bn_bias, **cfg)
        out = jax.block_until_ready(out)
        ref = _reference(x, weight, bias, bn_weight=bn_weight,
                         bn_bias=bn_bias, **cfg)
        ref = jax.block_until_ready(ref)

        pad = cfg["dilation"] * (K - 1) // 2
        H_out = (H + 2 * pad - cfg["dilation"] * (K - 1) - 1) // cfg["stride"] + 1
        W_out = (W + 2 * pad - cfg["dilation"] * (K - 1) - 1) // cfg["stride"] + 1
        assert out.shape == (N, Cout, H_out, W_out), out.shape
        # Tolerance reflects the bf16 conv intermediate (the reference keeps it
        # in f32): worst-case post-BN abs error ~0.008 for unit-variance outputs.
        np.testing.assert_allclose(np.asarray(out), np.asarray(ref),
                                   rtol=2e-2, atol=2e-2)

    print("KERNEL_OK")
</pallas_src>

<mosaic_0001>
module attributes {stable_mosaic.version = 11 : i64} {
  func.func @_conv_kernel(%arg0: i32, %arg1: i32, %arg2: memref<1x18x18x4xbf16, #tpu.memory_space<vmem>>, %arg3: memref<9x4x128xbf16, #tpu.memory_space<vmem>>, %arg4: memref<1x128xf32, #tpu.memory_space<vmem>>, %arg5: memref<1x16x16x128xbf16, #tpu.memory_space<vmem>>, %arg6: memref<1x8x128xf32, #tpu.memory_space<vmem>>, %arg7: memref<1x8x128xf32, #tpu.memory_space<vmem>>) attributes {dimension_semantics = [#tpu.dimension_semantics<parallel>, #tpu.dimension_semantics<arbitrary>], iteration_bounds = array<i64: 2, 1>, scalar_prefetch = 0 : i64, scratch_operands = 0 : i64, tpu.core_type = #tpu.core_type<tc>, window_params = [{transform_indices = @transform_0, window_bounds = array<i64: 1, 18, 18, 4>}, {pipeline_mode = #tpu.pipeline_mode<synchronous>, transform_indices = @transform_1, window_bounds = array<i64: 9, 4, 128>}, {pipeline_mode = #tpu.pipeline_mode<synchronous>, transform_indices = @transform_2, window_bounds = array<i64: 1, 128>}, {transform_indices = @transform_3, window_bounds = array<i64: 1, 16, 16, 128>}, {transform_indices = @transform_4, window_bounds = array<i64: 1, 8, 128>}, {transform_indices = @transform_5, window_bounds = array<i64: 1, 8, 128>}]} {
    %c0_i32 = arith.constant 0 : i32
    %0 = arith.cmpi eq, %arg1, %c0_i32 : i32
    %1 = arith.extui %0 : i1 to i32
    %c0_i32_0 = arith.constant 0 : i32
    %2 = arith.cmpi ne, %1, %c0_i32_0 : i32
    scf.if %2 {
      %cst_60 = arith.constant 0.000000e+00 : f32
      %93 = vector.broadcast %cst_60 : f32 to vector<1x8x128xf32>
      %c0_61 = arith.constant 0 : index
      %c0_62 = arith.constant 0 : index
      %c0_63 = arith.constant 0 : index
      %94 = vector.load %arg6[%c0_61, %c0_62, %c0_63] : memref<1x8x128xf32, #tpu.memory_space<vmem>>, vector<1x8x128xf32>
      tpu.vector_store %arg6[%c0_61, %c0_62, %c0_63], %93 {strides = array<i32>} : memref<1x8x128xf32, #tpu.memory_space<vmem>>, vector<1x8x128xf32>,
      %cst_64 = arith.constant 0.000000e+00 : f32
      %95 = vector.broadcast %cst_64 : f32 to vector<1x8x128xf32>
      %c0_65 = arith.constant 0 : index
      %c0_66 = arith.constant 0 : index
      %c0_67 = arith.constant 0 : index
      %96 = vector.load %arg7[%c0_65, %c0_66, %c0_67] : memref<1x8x128xf32, #tpu.memory_space<vmem>>, vector<1x8x128xf32>
      tpu.vector_store %arg7[%c0_65, %c0_66, %c0_67], %95 {strides = array<i32>} : memref<1x8x128xf32, #tpu.memory_space<vmem>>, vector<1x8x128xf32>,
    } else {
    }
    %c16_i32 = arith.constant 16 : i32
    %3 = arith.muli %arg1, %c16_i32 : i32
    %4 = tpu.assume_multiple %3, 16 : i32
    %cst = arith.constant 0.000000e+00 : f32
    %5 = vector.broadcast %cst : f32 to vector<16x16x128xf32>
    %c0_i32_1 = arith.constant 0 : i32
    %6 = arith.addi %4, %c0_i32_1 : i32
    %c0 = arith.constant 0 : index
    %7 = arith.index_cast %6 : i32 to index
    %c0_2 = arith.constant 0 : index
    %c0_3 = arith.constant 0 : index
    %8 = vector.load %arg2[%c0, %7, %c0_2, %c0_3] : memref<1x18x18x4xbf16, #tpu.memory_space<vmem>>, vector<1x16x18x4xbf16>
    %9 = vector.shape_cast %8 : vector<1x16x18x4xbf16> to vector<16x18x4xbf16>
    %10 = vector.extract_strided_slice %9 {offsets = [0, 0, 0], sizes = [16, 16, 4], strides = [1, 1, 1]} : vector<16x18x4xbf16> to vector<16x16x4xbf16>
    %11 = vector.extract_strided_slice %9 {offsets = [0, 1, 0], sizes = [16, 16, 4], strides = [1, 1, 1]} : vector<16x18x4xbf16> to vector<16x16x4xbf16>
    %12 = vector.extract_strided_slice %9 {offsets = [0, 2, 0], sizes = [16, 16, 4], strides = [1, 1, 1]} : vector<16x18x4xbf16> to vector<16x16x4xbf16>
    %c0_4 = arith.constant 0 : index
    %c0_5 = arith.constant 0 : index
    %c0_6 = arith.constant 0 : index
    %13 = vector.load %arg3[%c0_4, %c0_5, %c0_6] : memref<9x4x128xbf16, #tpu.memory_space<vmem>>, vector<1x4x128xbf16>
    %14 = vector.shape_cast %13 : vector<1x4x128xbf16> to vector<4x128xbf16>
    %cst_7 = arith.constant dense<0.000000e+00> : vector<16x16x128xf32>
    %15 = tpu.matmul %10, %14, %cst_7 {dimension_numbers = #tpu.dot_dimension_numbers<[2], [0], [0, 1], [1], [0, 0, 0, 1, 1, 1], [], []>} : vector<16x16x4xbf16>, vector<4x128xbf16>, vector<16x16x128xf32> -> vector<16x16x128xf32>
    %16 = arith.addf %5, %15 : vector<16x16x128xf32>
    %c1 = arith.constant 1 : index
    %c0_8 = arith.constant 0 : index
    %c0_9 = arith.constant 0 : index
    %17 = vector.load %arg3[%c1, %c0_8, %c0_9] : memref<9x4x128xbf16, #tpu.memory_space<vmem>>, vector<1x4x128xbf16>
    %18 = vector.shape_cast %17 : vector<1x4x128xbf16> to vector<4x128xbf16>
    %cst_10 = arith.constant dense<0.000000e+00> : vector<16x16x128xf32>
    %19 = tpu.matmul %11, %18, %cst_10 {dimension_numbers = #tpu.dot_dimension_numbers<[2], [0], [0, 1], [1], [0, 0, 0, 1, 1, 1], [], []>} : vector<16x16x4xbf16>, vector<4x128xbf16>, vector<16x16x128xf32> -> vector<16x16x128xf32>
    %20 = arith.addf %16, %19 : vector<16x16x128xf32>
    %c2 = arith.constant 2 : index
    %c0_11 = arith.constant 0 : index
    %c0_12 = arith.constant 0 : index
    %21 = vector.load %arg3[%c2, %c0_11, %c0_12] : memref<9x4x128xbf16, #tpu.memory_space<vmem>>, vector<1x4x128xbf16>
    %22 = vector.shape_cast %21 : vector<1x4x128xbf16> to vector<4x128xbf16>
    %cst_13 = arith.constant dense<0.000000e+00> : vector<16x16x128xf32>
    %23 = tpu.matmul %12, %22, %cst_13 {dimension_numbers = #tpu.dot_dimension_numbers<[2], [0], [0, 1], [1], [0, 0, 0, 1, 1, 1], [], []>} : vector<16x16x4xbf16>, vector<4x128xbf16>, vector<16x16x128xf32> -> vector<16x16x128xf32>
    %24 = arith.addf %20, %23 : vector<16x16x128xf32>
    %c1_i32 = arith.constant 1 : i32
    %25 = arith.addi %4, %c1_i32 : i32
    %c0_14 = arith.constant 0 : index
    %26 = arith.index_cast %25 : i32 to index
    %c0_15 = arith.constant 0 : index
    %c0_16 = arith.constant 0 : index
    %27 = vector.load %arg2[%c0_14, %26, %c0_15, %c0_16] : memref<1x18x18x4xbf16, #tpu.memory_space<vmem>>, vector<1x16x18x4xbf16>
    %28 = vector.shape_cast %27 : vector<1x16x18x4xbf16> to vector<16x18x4xbf16>
    %29 = vector.extract_strided_slice %28 {offsets = [0, 0, 0], sizes = [16, 16, 4], strides = [1, 1, 1]} : vector<16x18x4xbf16> to vector<16x16x4xbf16>
    %30 = vector.extract_strided_slice %28 {offsets = [0, 1, 0], sizes = [16, 16, 4], strides = [1, 1, 1]} : vector<16x18x4xbf16> to vector<16x16x4xbf16>
    %31 = vector.extract_strided_slice %28 {offsets = [0, 2, 0], sizes = [16, 16, 4], strides = [1, 1, 1]} : vector<16x18x4xbf16> to vector<16x16x4xbf16>
    %c3 = arith.constant 3 : index
    %c0_17 = arith.constant 0 : index
    %c0_18 = arith.constant 0 : index
    %32 = vector.load %arg3[%c3, %c0_17, %c0_18] : memref<9x4x128xbf16, #tpu.memory_space<vmem>>, vector<1x4x128xbf16>
    %33 = vector.shape_cast %32 : vector<1x4x128xbf16> to vector<4x128xbf16>
    %cst_19 = arith.constant dense<0.000000e+00> : vector<16x16x128xf32>
    %34 = tpu.matmul %29, %33, %cst_19 {dimension_numbers = #tpu.dot_dimension_numbers<[2], [0], [0, 1], [1], [0, 0, 0, 1, 1, 1], [], []>} : vector<16x16x4xbf16>, vector<4x128xbf16>, vector<16x16x128xf32> -> vector<16x16x128xf32>
    %35 = arith.addf %24, %34 : vector<16x16x128xf32>
    %c4 = arith.constant 4 : index
    %c0_20 = arith.constant 0 : index
    %c0_21 = arith.constant 0 : index
    %36 = vector.load %arg3[%c4, %c0_20, %c0_21] : memref<9x4x128xbf16, #tpu.memory_space<vmem>>, vector<1x4x128xbf16>
    %37 = vector.shape_cast %36 : vector<1x4x128xbf16> to vector<4x128xbf16>
    %cst_22 = arith.constant dense<0.000000e+00> : vector<16x16x128xf32>
    %38 = tpu.matmul %30, %37, %cst_22 {dimension_numbers = #tpu.dot_dimension_numbers<[2], [0], [0, 1], [1], [0, 0, 0, 1, 1, 1], [], []>} : vector<16x16x4xbf16>, vector<4x128xbf16>, vector<16x16x128xf32> -> vector<16x16x128xf32>
    %39 = arith.addf %35, %38 : vector<16x16x128xf32>
    %c5 = arith.constant 5 : index
    %c0_23 = arith.constant 0 : index
    %c0_24 = arith.constant 0 : index
    %40 = vector.load %arg3[%c5, %c0_23, %c0_24] : memref<9x4x128xbf16, #tpu.memory_space<vmem>>, vector<1x4x128xbf16>
    %41 = vector.shape_cast %40 : vector<1x4x128xbf16> to vector<4x128xbf16>
    %cst_25 = arith.constant dense<0.000000e+00> : vector<16x16x128xf32>
    %42 = tpu.matmul %31, %41, %cst_25 {dimension_numbers = #tpu.dot_dimension_numbers<[2], [0], [0, 1], [1], [0, 0, 0, 1, 1, 1], [], []>} : vector<16x16x4xbf16>, vector<4x128xbf16>, vector<16x16x128xf32> -> vector<16x16x128xf32>
    %43 = arith.addf %39, %42 : vector<16x16x128xf32>
    %c2_i32 = arith.constant 2 : i32
    %44 = arith.addi %4, %c2_i32 : i32
    %c0_26 = arith.constant 0 : index
    %45 = arith.index_cast %44 : i32 to index
    %c0_27 = arith.constant 0 : index
    %c0_28 = arith.constant 0 : index
    %46 = vector.load %arg2[%c0_26, %45, %c0_27, %c0_28] : memref<1x18x18x4xbf16, #tpu.memory_space<vmem>>, vector<1x16x18x4xbf16>
    %47 = vector.shape_cast %46 : vector<1x16x18x4xbf16> to vector<16x18x4xbf16>
    %48 = vector.extract_strided_slice %47 {offsets = [0, 0, 0], sizes = [16, 16, 4], strides = [1, 1, 1]} : vector<16x18x4xbf16> to vector<16x16x4xbf16>
    %49 = vector.extract_strided_slice %47 {offsets = [0, 1, 0], sizes = [16, 16, 4], strides = [1, 1, 1]} : vector<16x18x4xbf16> to vector<16x16x4xbf16>
    %50 = vector.extract_strided_slice %47 {offsets = [0, 2, 0], sizes = [16, 16, 4], strides = [1, 1, 1]} : vector<16x18x4xbf16> to vector<16x16x4xbf16>
    %c6 = arith.constant 6 : index
    %c0_29 = arith.constant 0 : index
    %c0_30 = arith.constant 0 : index
    %51 = vector.load %arg3[%c6, %c0_29, %c0_30] : memref<9x4x128xbf16, #tpu.memory_space<vmem>>, vector<1x4x128xbf16>
    %52 = vector.shape_cast %51 : vector<1x4x128xbf16> to vector<4x128xbf16>
    %cst_31 = arith.constant dense<0.000000e+00> : vector<16x16x128xf32>
    %53 = tpu.matmul %48, %52, %cst_31 {dimension_numbers = #tpu.dot_dimension_numbers<[2], [0], [0, 1], [1], [0, 0, 0, 1, 1, 1], [], []>} : vector<16x16x4xbf16>, vector<4x128xbf16>, vector<16x16x128xf32> -> vector<16x16x128xf32>
    %54 = arith.addf %43, %53 : vector<16x16x128xf32>
    %c7 = arith.constant 7 : index
    %c0_32 = arith.constant 0 : index
    %c0_33 = arith.constant 0 : index
    %55 = vector.load %arg3[%c7, %c0_32, %c0_33] : memref<9x4x128xbf16, #tpu.memory_space<vmem>>, vector<1x4x128xbf16>
    %56 = vector.shape_cast %55 : vector<1x4x128xbf16> to vector<4x128xbf16>
    %cst_34 = arith.constant dense<0.000000e+00> : vector<16x16x128xf32>
    %57 = tpu.matmul %49, %56, %cst_34 {dimension_numbers = #tpu.dot_dimension_numbers<[2], [0], [0, 1], [1], [0, 0, 0, 1, 1, 1], [], []>} : vector<16x16x4xbf16>, vector<4x128xbf16>, vector<16x16x128xf32> -> vector<16x16x128xf32>
    %58 = arith.addf %54, %57 : vector<16x16x128xf32>
    %c8 = arith.constant 8 : index
    %c0_35 = arith.constant 0 : index
    %c0_36 = arith.constant 0 : index
    %59 = vector.load %arg3[%c8, %c0_35, %c0_36] : memref<9x4x128xbf16, #tpu.memory_space<vmem>>, vector<1x4x128xbf16>
    %60 = vector.shape_cast %59 : vector<1x4x128xbf16> to vector<4x128xbf16>
    %cst_37 = arith.constant dense<0.000000e+00> : vector<16x16x128xf32>
    %61 = tpu.matmul %50, %60, %cst_37 {dimension_numbers = #tpu.dot_dimension_numbers<[2], [0], [0, 1], [1], [0, 0, 0, 1, 1, 1], [], []>} : vector<16x16x4xbf16>, vector<4x128xbf16>, vector<16x16x128xf32> -> vector<16x16x128xf32>
    %62 = arith.addf %58, %61 : vector<16x16x128xf32>
    %cst_38 = arith.constant dense<0.000000e+00> : vector<16x128xf32>
    %63 = vector.multi_reduction <add>, %62, %cst_38 [0] : vector<16x16x128xf32> to vector<16x128xf32>
    %cst_39 = arith.constant dense<0.000000e+00> : vector<128xf32>
    %64 = vector.multi_reduction <add>, %63, %cst_39 [0] : vector<16x128xf32> to vector<128xf32>
    %65 = vector.shape_cast %64 : vector<128xf32> to vector<1x128xf32>
    %66 = arith.mulf %62, %62 : vector<16x16x128xf32>
    %cst_40 = arith.constant dense<0.000000e+00> : vector<16x128xf32>
    %67 = vector.multi_reduction <add>, %66, %cst_40 [0] : vector<16x16x128xf32> to vector<16x128xf32>
    %cst_41 = arith.constant dense<0.000000e+00> : vector<128xf32>
    %68 = vector.multi_reduction <add>, %67, %cst_41 [0] : vector<16x128xf32> to vector<128xf32>
    %69 = vector.shape_cast %68 : vector<128xf32> to vector<1x128xf32>
    %c0_42 = arith.constant 0 : index
    %c0_43 = arith.constant 0 : index
    %c0_44 = arith.constant 0 : index
    %70 = vector.load %arg6[%c0_42, %c0_43, %c0_44] : memref<1x8x128xf32, #tpu.memory_space<vmem>>, vector<1x8x128xf32>
    %71 = vector.shape_cast %70 : vector<1x8x128xf32> to vector<8x128xf32>
    %72 = vector.broadcast %65 : vector<1x128xf32> to vector<8x128xf32>
    %73 = arith.addf %71, %72 : vector<8x128xf32>
    %c0_45 = arith.constant 0 : index
    %c0_46 = arith.constant 0 : index
    %c0_47 = arith.constant 0 : index
    %74 = vector.load %arg6[%c0_45, %c0_46, %c0_47] : memref<1x8x128xf32, #tpu.memory_space<vmem>>, vector<1x8x128xf32>
    %75 = vector.shape_cast %74 : vector<1x8x128xf32> to vector<8x128xf32>
    %76 = vector.shape_cast %73 : vector<8x128xf32> to vector<1x8x128xf32>
    tpu.vector_store %arg6[%c0_45, %c0_46, %c0_47], %76 {strides = array<i32>} : memref<1x8x128xf32, #tpu.memory_space<vmem>>, vector<1x8x128xf32>,
    %c0_48 = arith.constant 0 : index
    %c0_49 = arith.constant 0 : index
    %c0_50 = arith.constant 0 : index
    %77 = vector.load %arg7[%c0_48, %c0_49, %c0_50] : memref<1x8x128xf32, #tpu.memory_space<vmem>>, vector<1x8x128xf32>
    %78 = vector.shape_cast %77 : vector<1x8x128xf32> to vector<8x128xf32>
    %79 = vector.broadcast %69 : vector<1x128xf32> to vector<8x128xf32>
    %80 = arith.addf %78, %79 : vector<8x128xf32>
    %c0_51 = arith.constant 0 : index
    %c0_52 = arith.constant 0 : index
    %c0_53 = arith.constant 0 : index
    %81 = vector.load %arg7[%c0_51, %c0_52, %c0_53] : memref<1x8x128xf32, #tpu.memory_space<vmem>>, vector<1x8x128xf32>
    %82 = vector.shape_cast %81 : vector<1x8x128xf32> to vector<8x128xf32>
    %83 = vector.shape_cast %80 : vector<8x128xf32> to vector<1x8x128xf32>
    tpu.vector_store %arg7[%c0_51, %c0_52, %c0_53], %83 {strides = array<i32>} : memref<1x8x128xf32, #tpu.memory_space<vmem>>, vector<1x8x128xf32>,
    %c0_54 = arith.constant 0 : index
    %c0_55 = arith.constant 0 : index
    %84 = vector.load %arg4[%c0_54, %c0_55] : memref<1x128xf32, #tpu.memory_space<vmem>>, vector<1x128xf32>
    %85 = vector.shape_cast %84 : vector<1x128xf32> to vector<128xf32>
    %86 = vector.shape_cast %85 : vector<128xf32> to vector<1x1x128xf32>
    %87 = vector.broadcast %86 : vector<1x1x128xf32> to vector<16x16x128xf32>
    %88 = arith.addf %62, %87 : vector<16x16x128xf32>
    %89 = arith.truncf %88 : vector<16x16x128xf32> to vector<16x16x128xbf16>
    %c0_56 = arith.constant 0 : index
    %c0_57 = arith.constant 0 : index
    %c0_58 = arith.constant 0 : index
    %c0_59 = arith.constant 0 : index
    %90 = vector.load %arg5[%c0_56, %c0_57, %c0_58, %c0_59] : memref<1x16x16x128xbf16, #tpu.memory_space<vmem>>, vector<1x16x16x128xbf16>
    %91 = vector.shape_cast %90 : vector<1x16x16x128xbf16> to vector<16x16x128xbf16>
    %92 = vector.shape_cast %89 : vector<16x16x128xbf16> to vector<1x16x16x128xbf16>
    tpu.vector_store %arg5[%c0_56, %c0_57, %c0_58, %c0_59], %92 {strides = array<i32>} : memref<1x16x16x128xbf16, #tpu.memory_space<vmem>>, vector<1x16x16x128xbf16>,
    return
  }
  func.func @transform_0(%arg0: i32, %arg1: i32) -> (i32, i32, i32, i32) {
    %c0_i32 = arith.constant 0 : i32
    %c0_i32_0 = arith.constant 0 : i32
    %c0_i32_1 = arith.constant 0 : i32
    %c0_i32_2 = arith.constant 0 : i32
    return %arg0, %c0_i32, %c0_i32_0, %c0_i32_1 : i32, i32, i32, i32
  }
  func.func @transform_1(%arg0: i32, %arg1: i32) -> (i32, i32, i32) {
    %c0_i32 = arith.constant 0 : i32
    %c0_i32_0 = arith.constant 0 : i32
    %c0_i32_1 = arith.constant 0 : i32
    %c0_i32_2 = arith.constant 0 : i32
    return %c0_i32, %c0_i32_0, %c0_i32_1 : i32, i32, i32
  }
  func.func @transform_2(%arg0: i32, %arg1: i32) -> (i32, i32) {
    %c0_i32 = arith.constant 0 : i32
    %c0_i32_0 = arith.constant 0 : i32
    %c0_i32_1 = arith.constant 0 : i32
    return %c0_i32, %c0_i32_0 : i32, i32
  }
  func.func @transform_3(%arg0: i32, %arg1: i32) -> (i32, i32, i32, i32) {
    %c0_i32 = arith.constant 0 : i32
    %c0_i32_0 = arith.constant 0 : i32
    %c0_i32_1 = arith.constant 0 : i32
    return %arg0, %arg1, %c0_i32, %c0_i32_0 : i32, i32, i32, i32
  }
  func.func @transform_4(%arg0: i32, %arg1: i32) -> (i32, i32, i32) {
    %c0_i32 = arith.constant 0 : i32
    %c0_i32_0 = arith.constant 0 : i32
    %c0_i32_1 = arith.constant 0 : i32
    return %arg0, %c0_i32, %c0_i32_0 : i32, i32, i32
  }
  func.func @transform_5(%arg0: i32, %arg1: i32) -> (i32, i32, i32) {
    %c0_i32 = arith.constant 0 : i32
    %c0_i32_0 = arith.constant 0 : i32
    %c0_i32_1 = arith.constant 0 : i32
    return %arg0, %c0_i32, %c0_i32_0 : i32, i32, i32
  }
}

</mosaic_0001>

<llo_original>
// kernel: tpu_custom_call.1
$region0: #{tpu_custom_call.1}
  #allocation0 [shape = 'u32[]', space=smem, size = 0x4, offset = 0x4, fixed_abs, tag = 'smem constant byte address 0x4 - core index']
  #allocation1 [shape = 'u32[144,128]{1,0:T(1,128)}', space=vmem, size = 0x12000, scoped, tag = 'internal scratch']
  %s0 = inlined_call_operand.vmem [shape: bf16[2,18,18,4], index: 0, kind: input, shape index: {}]
  %s1 = inlined_call_operand.vmem [shape: bf16[9,4,128], index: 1, kind: input, shape index: {}]
  %s2 = inlined_call_operand.vmem [shape: f32[1,128], index: 2, kind: input, shape index: {}]
  %s3 = inlined_call_operand.hbm [shape: bf16[2,16,16,128], index: 3, kind: output, shape index: {0}]
  %s4 = inlined_call_operand.hbm [shape: f32[2,8,128], index: 4, kind: output, shape index: {1}]
  %s5 = inlined_call_operand.hbm [shape: f32[2,8,128], index: 5, kind: output, shape index: {2}]
  %6 = xla_tuple %s3, %s4, %s5
  %s7 = sld [smem:[#allocation0]]
  $region65: #{tpu_custom_call.1} parent=0
    _
  %s9 = ssub.s32 1, %s7
  %s10 = scalar_select 0, %s9, %s7
  $region1: #{tpu_custom_call.1} parent=0
    #allocation2 [shape = 'u8[131072]{0}', space=vmem, size = 0x20000, scoped, tag = 'output window, operand 0']
    #allocation3 [shape = 's32[2]{0}', space=sflag, size = 0x8, scoped, tag = 'scoped memory for tpu_custom_call.1']
    #allocation4 [shape = 'u8[8192]{0}', space=vmem, size = 0x2000, scoped, tag = 'output window, operand 1']
    #allocation5 [shape = 's32[2]{0}', space=sflag, size = 0x8, scoped, tag = 'scoped memory for tpu_custom_call.1']
    #allocation6 [shape = 'u8[8192]{0}', space=vmem, size = 0x2000, scoped, tag = 'output window, operand 2']
    %11 = vsyncpa [#allocation3], 0
    %s12 = scalar_lea.sflag [#allocation3], 1
    %13 = vsyncpa %s12, 0
    %14 = vsyncpa [#allocation5], 0
    %s15 = scalar_lea.sflag [#allocation5], 1
    %16 = vsyncpa %s15, 0
    loop: start=0, step=1, limit=4
    $region2: #{tpu_custom_call.1} parent=1 // loop_pre_header
      _
    $region3: #{tpu_custom_call.1} parent=1 // loop_header
      %s18 = sphi 0, %s22
      %p19 = scmp.ge.s32.totalorder %s18, 4
      %s25 = sphi 0, %s37
      %s26 = sphi 0, %s33
      %s27 = sphi 0, %s25
      %s28 = sphi 0, %s26
      %s29 = sphi 0, %s27
      %s30 = sphi 0, %s28
      %s40 = sphi 0, %s42
      %s43 = sphi 0, %s40
      %s44 = sphi 0, %s43
      %s60 = sphi 0, %s44
      %s64 = sphi 0, %s64
      %s66 = sphi 0, %s64
      %s67 = sphi 0, %s66
      %s81 = sphi 0, %s67
      %s85 = sphi 0, %s85
      %s87 = sphi 0, %s85
      %s88 = sphi 0, %s87
      %s102 = sphi 0, %s88
      %s110 = sphi 0, %s112
      %s113 = sphi 0, %s110
      %s114 = sphi 0, %s113
      %s130 = sphi 0, %s114
      %s136 = sphi 0, %s138
      %s139 = sphi 0, %s136
      %s140 = sphi 0, %s139
      %s156 = sphi 0, %s140
      %s162 = sphi 0, %s164
      %s165 = sphi 0, %s162
      %s166 = sphi 0, %s165
      %s182 = sphi 0, %s166
    $region4: #{tpu_custom_call.1} parent=1 // loop_header_branch
      %21 = sbr.rel (%p19) target = $region8
    $region5: #{tpu_custom_call.1} parent=1 // loop_body
      %s23 = ssub.s32 %s18, 1
      %s24 = ssub.s32 %s18, 2
      %s31 = sadd.s32 1, %s26
      %p32 = scmp.ge.s32.totalorder %s31, 1
      %s33 = scalar_select %p32, 0, %s31
      %s34 = sadd.s32 1, %s25
      %s35 = scalar_select %p32, %s34, %s25
      %p36 = scmp.ge.s32.totalorder %s35, 2
      %s37 = scalar_select %p36, 0, %s35
      %s38 = ssub.s32 %s25, %s37
      %p39 = scmp.eq.s32.totalorder %s38, 0
      %s41 = sadd.s32 %s40, 1
      %s42 = scalar_select %p39, %s40, %s41
      %p45 = pneg %p39
      %p46 = scmp.eq.s32.totalorder %s18, 1
      %p47 = por %p45, %p46
      %p48 = scmp.ne.s32.totalorder %s40, %s43
      %p49 = scmp.eq.s32.totalorder %s18, 0
      %p50 = por %p48, %p49
      %p51 = scmp.ne.s32.totalorder %s40, %s43
      %p52 = scmp.eq.s32.totalorder %s23, 1
      %p53 = por %p51, %p52
      %p54 = scmp.ne.s32.totalorder %s43, %s44
      %p55 = scmp.eq.s32.totalorder %s23, 0
      %p56 = por %p54, %p55
      %p57 = scmp.ne.s32.totalorder %s43, %s44
      %p58 = scmp.eq.s32.totalorder %s24, 1
      %p59 = por %p57, %p58
      %p61 = scmp.ne.s32.totalorder %s44, %s60
      %p62 = scmp.eq.s32.totalorder %s24, 0
      %p63 = por %p61, %p62
      %s65 = sadd.s32 %s64, 1
      %p68 = scmp.eq.s32.totalorder %s18, 1
      %p69 = scmp.ne.s32.totalorder %s64, %s66
      %p70 = scmp.eq.s32.totalorder %s18, 0
      %p71 = por %p69, %p70
      %p72 = scmp.ne.s32.totalorder %s64, %s66
      %p73 = scmp.eq.s32.totalorder %s23, 1
      %p74 = por %p72, %p73
      %p75 = scmp.ne.s32.totalorder %s66, %s67
      %p76 = scmp.eq.s32.totalorder %s23, 0
      %p77 = por %p75, %p76
      %p78 = scmp.ne.s32.totalorder %s66, %s67
      %p79 = scmp.eq.s32.totalorder %s24, 1
      %p80 = por %p78, %p79
      %p82 = scmp.ne.s32.totalorder %s67, %s81
      %p83 = scmp.eq.s32.totalorder %s24, 0
      %p84 = por %p82, %p83
      %s86 = sadd.s32 %s85, 1
      %p89 = scmp.eq.s32.totalorder %s18, 1
      %p90 = scmp.ne.s32.totalorder %s85, %s87
      %p91 = scmp.eq.s32.totalorder %s18, 0
      %p92 = por %p90, %p91
      %p93 = scmp.ne.s32.totalorder %s85, %s87
      %p94 = scmp.eq.s32.totalorder %s23, 1
      %p95 = por %p93, %p94
      %p96 = scmp.ne.s32.totalorder %s87, %s88
      %p97 = scmp.eq.s32.totalorder %s23, 0
      %p98 = por %p96, %p97
      %p99 = scmp.ne.s32.totalorder %s87, %s88
      %p100 = scmp.eq.s32.totalorder %s24, 1
      %p101 = por %p99, %p100
      %p103 = scmp.ne.s32.totalorder %s88, %s102
      %p104 = scmp.eq.s32.totalorder %s24, 0
      %p105 = por %p103, %p104
      %s106 = ssub.s32 %s25, %s37
      %s107 = ssub.s32 %s26, %s33
      %s108 = sor.u32 %s106, %s107
      %p109 = scmp.eq.s32.totalorder %s108, 0
      %s111 = sadd.s32 %s110, 1
      %s112 = scalar_select %p109, %s110, %s111
      %p115 = pneg %p109
      %p116 = scmp.eq.s32.totalorder %s18, 1
      %p117 = por %p115, %p116
      %p118 = scmp.ne.s32.totalorder %s110, %s113
      %p119 = scmp.eq.s32.totalorder %s18, 0
      %p120 = por %p118, %p119
      %p121 = scmp.ne.s32.totalorder %s110, %s113
      %p122 = scmp.eq.s32.totalorder %s23, 1
      %p123 = por %p121, %p122
      %p124 = scmp.ne.s32.totalorder %s113, %s114
      %p125 = scmp.eq.s32.totalorder %s23, 0
      %p126 = por %p124, %p125
      %p127 = scmp.ne.s32.totalorder %s113, %s114
      %p128 = scmp.eq.s32.totalorder %s24, 1
      %p129 = por %p127, %p128
      %p131 = scmp.ne.s32.totalorder %s114, %s130
      %p132 = scmp.eq.s32.totalorder %s24, 0
      %p133 = por %p131, %p132
      %s134 = ssub.s32 %s25, %s37
      %p135 = scmp.eq.s32.totalorder %s134, 0
      %s137 = sadd.s32 %s136, 1
      %s138 = scalar_select %p135, %s136, %s137
      %p141 = pneg %p135
      %p142 = scmp.eq.s32.totalorder %s18, 1
      %p143 = por %p141, %p142
      %p144 = scmp.ne.s32.totalorder %s136, %s139
      %p145 = scmp.eq.s32.totalorder %s18, 0
      %p146 = por %p144, %p145
      %p147 = scmp.ne.s32.totalorder %s136, %s139
      %p148 = scmp.eq.s32.totalorder %s23, 1
      %p149 = por %p147, %p148
      %p150 = scmp.ne.s32.totalorder %s139, %s140
      %p151 = scmp.eq.s32.totalorder %s23, 0
      %p152 = por %p150, %p151
      %p153 = scmp.ne.s32.totalorder %s139, %s140
      %p154 = scmp.eq.s32.totalorder %s24, 1
      %p155 = por %p153, %p154
      %p157 = scmp.ne.s32.totalorder %s140, %s156
      %p158 = scmp.eq.s32.totalorder %s24, 0
      %p159 = por %p157, %p158
      %s160 = ssub.s32 %s25, %s37
      %p161 = scmp.eq.s32.totalorder %s160, 0
      %s163 = sadd.s32 %s162, 1
      %s164 = scalar_select %p161, %s162, %s163
      %p167 = pneg %p161
      %p168 = scmp.eq.s32.totalorder %s18, 1
      %p169 = por %p167, %p168
      %p170 = scmp.ne.s32.totalorder %s162, %s165
      %p171 = scmp.eq.s32.totalorder %s18, 0
      %p172 = por %p170, %p171
      %p173 = scmp.ne.s32.totalorder %s162, %s165
      %p174 = scmp.eq.s32.totalorder %s23, 1
      %p175 = por %p173, %p174
      %p176 = scmp.ne.s32.totalorder %s165, %s166
      %p177 = scmp.eq.s32.totalorder %s23, 0
      %p178 = por %p176, %p177
      %p179 = scmp.ne.s32.totalorder %s165, %s166
      %p180 = scmp.eq.s32.totalorder %s24, 1
      %p181 = por %p179, %p180
      %p183 = scmp.ne.s32.totalorder %s166, %s182
      %p184 = scmp.eq.s32.totalorder %s24, 0
      %p185 = por %p183, %p184
      %p186 = scmp.le.s32.totalorder 1, %s18
      %p187 = scmp.lt.s32.totalorder %s18, 3
      %p188 = pnand %p186, %p187
      %p189 = pneg %p188
      // Predicated region
      $region9: #{tpu_custom_call.1} parent=5 // pred_check
        _
      $region10: #{tpu_custom_call.1} parent=5 // pred_check_branch
        %191 = sbr.rel (%p188) target = $region12
      $region11: #{tpu_custom_call.1} parent=5 // pred_region
        %s192 = ssub.s32 %s18, 1
        // Predicated region
        $region13: #{tpu_custom_call.1} parent=11 // pred_check
          %p193 = pneg %p77
        $region14: #{tpu_custom_call.1} parent=11 // pred_check_branch
          %195 = sbr.rel (%p193) target = $region16
        $region15: #{tpu_custom_call.1} parent=11 // pred_region
          _
        $region16: #{tpu_custom_call.1} parent=11 // pred_fallthru
          _
        // Predicated region
        $region17: #{tpu_custom_call.1} parent=11 // pred_check
          %p196 = pneg %p98
        $region18: #{tpu_custom_call.1} parent=11 // pred_check_branch
          %198 = sbr.rel (%p196) target = $region20
        $region19: #{tpu_custom_call.1} parent=11 // pred_region
          _
        $region20: #{tpu_custom_call.1} parent=11 // pred_fallthru
          _
      $region12: #{tpu_custom_call.1} parent=5 // pred_fallthru
        _
      %p199 = scmp.lt.s32.totalorder %s18, 2
      // Predicated region
      $region21: #{tpu_custom_call.1} parent=5 // pred_check
        %p200 = pneg %p199
      $region22: #{tpu_custom_call.1} parent=5 // pred_check_branch
        %202 = sbr.rel (%p200) target = $region24
      $region23: #{tpu_custom_call.1} parent=5 // pred_region
        // Predicated region
        $region25: #{tpu_custom_call.1} parent=23 // pred_check
          %p203 = pneg %p50
        $region26: #{tpu_custom_call.1} parent=23 // pred_check_branch
          %205 = sbr.rel (%p203) target = $region28
        $region27: #{tpu_custom_call.1} parent=23 // pred_region
          %p206 = scmp.lt.s32.totalorder %s25, 1
          %s207 = scalar_select %p206, %s25, 1
          %s208 = smul.addr %s207, 54
          %s209 = smul.addr %s208, 4
          %s210 = scalar_lea.vmem %s0, %s209
        $region28: #{tpu_custom_call.1} parent=23 // pred_fallthru
          _
      $region24: #{tpu_custom_call.1} parent=5 // pred_fallthru
        _
      %p211 = scmp.le.s32.totalorder 1, %s18
      %p212 = scmp.lt.s32.totalorder %s18, 3
      %p213 = pnand %p211, %p212
      %p214 = pneg %p213
      // Predicated region
      $region29: #{tpu_custom_call.1} parent=5 // pred_check
        _
      $region30: #{tpu_custom_call.1} parent=5 // pred_check_branch
        %216 = sbr.rel (%p213) target = $region32
      $region31: #{tpu_custom_call.1} parent=5 // pred_region
        %s217 = ssub.s32 %s18, 1
        %p218 = scmp.lt.s32.totalorder %s27, 1
        %s219 = scalar_select %p218, %s27, 1
        %s220 = smul.addr %s219, 54
        %s221 = smul.addr %s220, 4
        %s222 = scalar_lea.vmem %s0, %s221
        %p223 = pneg %p56
        %p224 = pneg %p53
        %p225 = pneg %p77
        %p226 = pneg %p74
        %p227 = pneg %p98
        %p228 = pneg %p95
        %p229 = pneg %p126
        %p230 = pneg %p123
        %s231 = sand.u32 %s113, 1
        %s232 = scalar_lea.sflag [#allocation3], %s231
        %s233 = sand.u32 %s113, 1
        %s234 = smul.addr %s233, 128
        %s235 = scalar_lea.vmem [#allocation2], %s234
        %p236 = pneg %p152
        %p237 = pneg %p149
        %s238 = sand.u32 %s23, 1
        %s239 = scalar_lea.sflag [#allocation5], %s238
        %s240 = sand.u32 %s139, 1
        %s241 = smul.addr %s240, 8
        %s242 = scalar_lea.vmem [#allocation4], %s241
        %p243 = pneg %p178
        %p244 = pneg %p175
        %s245 = sand.u32 %s23, 1
        %s246 = scalar_lea.sflag [#allocation5], %s245
        %s247 = sand.u32 %s165, 1
        %s248 = smul.addr %s247, 8
        %s249 = scalar_lea.vmem [#allocation6], %s248
        %p250 = scmp.lt.s32.totalorder %s27, 1
        %s251 = scalar_select %p250, %s27, 1
        %s252 = smul.addr %s251, 54
        %s253 = smul.addr %s252, 4
        %s254 = scalar_lea.vmem %s0, %s253
        %s255 = smul.u32 16, %s28
        %p257 = scmp.eq.s32.totalorder %s28, 0
        // Predicated region
        $region33: #{tpu_custom_call.1} parent=31 // pred_check
          %p258 = pneg %p257
        $region34: #{tpu_custom_call.1} parent=31 // pred_check_branch
          %260 = sbr.rel (%p258) target = $region36
        $region35: #{tpu_custom_call.1} parent=31 // pred_region
          %261 = vst [vmem:[%s242] sm:$0xff] 0.0
          %262 = vst [vmem:[%s249] sm:$0xff] 0.0
        $region36: #{tpu_custom_call.1} parent=31 // pred_fallthru
          _
        %s263 = smul.u32 %s28, 16
        %s264 = smul.u32 %s263, 3
        %s265 = smul.addr %s264, 4
        %s266 = scalar_lea.vmem %s254, %s265
        %v267 = vld [vmem:[%s266] sm:$0xf]
        %v268 = vld [vmem:[%s266 + $0x4] sm:$0xf]
        %v269 = vld [vmem:[%s266 + $0x8] sm:$0x1]
        %v270 = vld [vmem:[%s266 + $0xc] sm:$0xf]
        %v271 = vld [vmem:[%s266 + $0x10] sm:$0xf]
        %v272 = vld [vmem:[%s266 + $0x14] sm:$0x1]
        %v273 = vld [vmem:[%s266 + $0x18] sm:$0xf]
        %v274 = vld [vmem:[%s266 + $0x1c] sm:$0xf]
        %v275 = vld [vmem:[%s266 + $0x20] sm:$0x1]
        %v276 = vld [vmem:[%s266 + $0x24] sm:$0xf]
        %v277 = vld [vmem:[%s266 + $0x28] sm:$0xf]
        %v278 = vld [vmem:[%s266 + $0x2c] sm:$0x1]
        %v279 = vld [vmem:[%s266 + $0x30] sm:$0xf]
        %v280 = vld [vmem:[%s266 + $0x34] sm:$0xf]
        %v281 = vld [vmem:[%s266 + $0x38] sm:$0x1]
        %v282 = vld [vmem:[%s266 + $0x3c] sm:$0xf]
        %v283 = vld [vmem:[%s266 + $0x40] sm:$0xf]
        %v284 = vld [vmem:[%s266 + $0x44] sm:$0x1]
        %v285 = vld [vmem:[%s266 + $0x48] sm:$0xf]
        %v286 = vld [vmem:[%s266 + $0x4c] sm:$0xf]
        %v287 = vld [vmem:[%s266 + $0x50] sm:$0x1]
        %v288 = vld [vmem:[%s266 + $0x54] sm:$0xf]
        %v289 = vld [vmem:[%s266 + $0x58] sm:$0xf]
        %v290 = vld [vmem:[%s266 + $0x5c] sm:$0x1]
        %v291 = vld [vmem:[%s266 + $0x60] sm:$0xf]
        %v292 = vld [vmem:[%s266 + $0x64] sm:$0xf]
        %v293 = vld [vmem:[%s266 + $0x68] sm:$0x1]
        %v294 = vld [vmem:[%s266 + $0x6c] sm:$0xf]
        %v295 = vld [vmem:[%s266 + $0x70] sm:$0xf]
        %v296 = vld [vmem:[%s266 + $0x74] sm:$0x1]
        %v297 = vld [vmem:[%s266 + $0x78] sm:$0xf]
        %v298 = vld [vmem:[%s266 + $0x7c] sm:$0xf]
        %v299 = vld [vmem:[%s266 + $0x80] sm:$0x1]
        %v300 = vld [vmem:[%s266 + $0x84] sm:$0xf]
        %v301 = vld [vmem:[%s266 + $0x88] sm:$0xf]
        %v302 = vld [vmem:[%s266 + $0x8c] sm:$0x1]
        %v303 = vld [vmem:[%s266 + $0x90] sm:$0xf]
        %v304 = vld [vmem:[%s266 + $0x94] sm:$0xf]
        %v305 = vld [vmem:[%s266 + $0x98] sm:$0x1]
        %v306 = vld [vmem:[%s266 + $0x9c] sm:$0xf]
        %v307 = vld [vmem:[%s266 + $0xa0] sm:$0xf]
        %v308 = vld [vmem:[%s266 + $0xa4] sm:$0x1]
        %v309 = vld [vmem:[%s266 + $0xa8] sm:$0xf]
        %v310 = vld [vmem:[%s266 + $0xac] sm:$0xf]
        %v311 = vld [vmem:[%s266 + $0xb0] sm:$0x1]
        %v312 = vld [vmem:[%s266 + $0xb4] sm:$0xf]
        %v313 = vld [vmem:[%s266 + $0xb8] sm:$0xf]
        %v314 = vld [vmem:[%s266 + $0xbc] sm:$0x1]
        %v315 = vld [vmem:[%s1] sm:$0x3]
        %s316 = scalar_lea.vmem %s1, 2
        %v317 = vld [vmem:[%s316] sm:$0x3]
        %vm318 = vsmask.f32 3328
        %vm319 = vsmask.f32 7440
        %vm320 = vmor %vm318, %vm319
        %v322 = vshrl.u32 %v267, 16
        %v324 = vrot.slane %v322, 4
        %v325 = vshll.u32 %v267, 16
        %v327 = vrot.slane %v325, 5
        %v328 = vor.u32 %v324, %v327
        %v329 = vrot.slane %v328, 4
        %v331 = vshll.u32 %v268, 16
        %v333 = vrot.slane %v331, 5
        %v334 = vsel %vm320, %v329, %v333
        %v335 = vshrl.u32 %v268, 16
        %v337 = vrot.slane %v335, 4
        %v338 = vor.u32 %v337, %v333
        %v339 = vrot.slane %v338, 4
        %v341 = vshll.u32 %v269, 16
        %v343 = vrot.slane %v341, 5
        %v344 = vsel %vm320, %v339, %v343
        %v346 = vshrl.u32 %v270, 16
        %v348 = vrot.slane %v346, 4
        %v349 = vshll.u32 %v270, 16
        %v351 = vrot.slane %v349, 5
        %v352 = vor.u32 %v348, %v351
        %v353 = vrot.slane %v352, 4
        %v355 = vshll.u32 %v271, 16
        %v357 = vrot.slane %v355, 5
        %v358 = vsel %vm320, %v353, %v357
        %v359 = vshrl.u32 %v271, 16
        %v361 = vrot.slane %v359, 4
        %v362 = vor.u32 %v361, %v357
        %v363 = vrot.slane %v362, 4
        %v365 = vshll.u32 %v272, 16
        %v367 = vrot.slane %v365, 5
        %v368 = vsel %vm320, %v363, %v367
        %v370 = vshrl.u32 %v273, 16
        %v372 = vrot.slane %v370, 4
        %v373 = vshll.u32 %v273, 16
        %v375 = vrot.slane %v373, 5
        %v376 = vor.u32 %v372, %v375
        %v377 = vrot.slane %v376, 4
        %v379 = vshll.u32 %v274, 16
        %v381 = vrot.slane %v379, 5
        %v382 = vsel %vm320, %v377, %v381
        %v383 = vshrl.u32 %v274, 16
        %v385 = vrot.slane %v383, 4
        %v386 = vor.u32 %v385, %v381
        %v387 = vrot.slane %v386, 4
        %v389 = vshll.u32 %v275, 16
        %v391 = vrot.slane %v389, 5
        %v392 = vsel %vm320, %v387, %v391
        %v394 = vshrl.u32 %v276, 16
        %v396 = vrot.slane %v394, 4
        %v397 = vshll.u32 %v276, 16
        %v399 = vrot.slane %v397, 5
        %v400 = vor.u32 %v396, %v399
        %v401 = vrot.slane %v400, 4
        %v403 = vshll.u32 %v277, 16
        %v405 = vrot.slane %v403, 5
        %v406 = vsel %vm320, %v401, %v405
        %v407 = vshrl.u32 %v277, 16
        %v409 = vrot.slane %v407, 4
        %v410 = vor.u32 %v409, %v405
        %v411 = vrot.slane %v410, 4
        %v413 = vshll.u32 %v278, 16
        %v415 = vrot.slane %v413, 5
        %v416 = vsel %vm320, %v411, %v415
        %v418 = vshrl.u32 %v279, 16
        %v420 = vrot.slane %v418, 4
        %v421 = vshll.u32 %v279, 16
        %v423 = vrot.slane %v421, 5
        %v424 = vor.u32 %v420, %v423
        %v425 = vrot.slane %v424, 4
        %v427 = vshll.u32 %v280, 16
        %v429 = vrot.slane %v427, 5
        %v430 = vsel %vm320, %v425, %v429
        %v431 = vshrl.u32 %v280, 16
        %v433 = vrot.slane %v431, 4
        %v434 = vor.u32 %v433, %v429
        %v435 = vrot.slane %v434, 4
        %v437 = vshll.u32 %v281, 16
        %v439 = vrot.slane %v437, 5
        %v440 = vsel %vm320, %v435, %v439
        %v442 = vshrl.u32 %v282, 16
        %v444 = vrot.slane %v442, 4
        %v445 = vshll.u32 %v282, 16
        %v447 = vrot.slane %v445, 5
        %v448 = vor.u32 %v444, %v447
        %v449 = vrot.slane %v448, 4
        %v451 = vshll.u32 %v283, 16
        %v453 = vrot.slane %v451, 5
        %v454 = vsel %vm320, %v449, %v453
        %v455 = vshrl.u32 %v283, 16
        %v457 = vrot.slane %v455, 4
        %v458 = vor.u32 %v457, %v453
        %v459 = vrot.slane %v458, 4
        %v461 = vshll.u32 %v284, 16
        %v463 = vrot.slane %v461, 5
        %v464 = vsel %vm320, %v459, %v463
        %v466 = vshrl.u32 %v285, 16
        %v468 = vrot.slane %v466, 4
        %v469 = vshll.u32 %v285, 16
        %v471 = vrot.slane %v469, 5
        %v472 = vor.u32 %v468, %v471
        %v473 = vrot.slane %v472, 4
        %v475 = vshll.u32 %v286, 16
        %v477 = vrot.slane %v475, 5
        %v478 = vsel %vm320, %v473, %v477
        %v479 = vshrl.u32 %v286, 16
        %v481 = vrot.slane %v479, 4
        %v482 = vor.u32 %v481, %v477
        %v483 = vrot.slane %v482, 4
        %v485 = vshll.u32 %v287, 16
        %v487 = vrot.slane %v485, 5
        %v488 = vsel %vm320, %v483, %v487
        %v490 = vshrl.u32 %v288, 16
        %v492 = vrot.slane %v490, 4
        %v493 = vshll.u32 %v288, 16
        %v495 = vrot.slane %v493, 5
        %v496 = vor.u32 %v492, %v495
        %v497 = vrot.slane %v496, 4
        %v499 = vshll.u32 %v289, 16
        %v501 = vrot.slane %v499, 5
        %v502 = vsel %vm320, %v497, %v501
        %v503 = vshrl.u32 %v289, 16
        %v505 = vrot.slane %v503, 4
        %v506 = vor.u32 %v505, %v501
        %v507 = vrot.slane %v506, 4
        %v509 = vshll.u32 %v290, 16
        %v511 = vrot.slane %v509, 5
        %v512 = vsel %vm320, %v507, %v511
        %v514 = vshrl.u32 %v291, 16
        %v516 = vrot.slane %v514, 4
        %v517 = vshll.u32 %v291, 16
        %v519 = vrot.slane %v517, 5
        %v520 = vor.u32 %v516, %v519
        %v521 = vrot.slane %v520, 4
        %v523 = vshll.u32 %v292, 16
        %v525 = vrot.slane %v523, 5
        %v526 = vsel %vm320, %v521, %v525
        %v527 = vshrl.u32 %v292, 16
        %v529 = vrot.slane %v527, 4
        %v530 = vor.u32 %v529, %v525
        %v531 = vrot.slane %v530, 4
        %v533 = vshll.u32 %v293, 16
        %v535 = vrot.slane %v533, 5
        %v536 = vsel %vm320, %v531, %v535
        %v538 = vshrl.u32 %v294, 16
        %v540 = vrot.slane %v538, 4
        %v541 = vshll.u32 %v294, 16
        %v543 = vrot.slane %v541, 5
        %v544 = vor.u32 %v540, %v543
        %v545 = vrot.slane %v544, 4
        %v547 = vshll.u32 %v295, 16
        %v549 = vrot.slane %v547, 5
        %v550 = vsel %vm320, %v545, %v549
        %v551 = vshrl.u32 %v295, 16
        %v553 = vrot.slane %v551, 4
        %v554 = vor.u32 %v553, %v549
        %v555 = vrot.slane %v554, 4
        %v557 = vshll.u32 %v296, 16
        %v559 = vrot.slane %v557, 5
        %v560 = vsel %vm320, %v555, %v559
        %v562 = vshrl.u32 %v297, 16
        %v564 = vrot.slane %v562, 4
        %v565 = vshll.u32 %v297, 16
        %v567 = vrot.slane %v565, 5
        %v568 = vor.u32 %v564, %v567
        %v569 = vrot.slane %v568, 4
        %v571 = vshll.u32 %v298, 16
        %v573 = vrot.slane %v571, 5
        %v574 = vsel %vm320, %v569, %v573
        %v575 = vshrl.u32 %v298, 16
        %v577 = vrot.slane %v575, 4
        %v578 = vor.u32 %v577, %v573
        %v579 = vrot.slane %v578, 4
        %v581 = vshll.u32 %v299, 16
        %v583 = vrot.slane %v581, 5
        %v584 = vsel %vm320, %v579, %v583
        %v586 = vshrl.u32 %v300, 16
        %v588 = vrot.slane %v586, 4
        %v589 = vshll.u32 %v300, 16
        %v591 = vrot.slane %v589, 5
        %v592 = vor.u32 %v588, %v591
        %v593 = vrot.slane %v592, 4
        %v595 = vshll.u32 %v301, 16
        %v597 = vrot.slane %v595, 5
        %v598 = vsel %vm320, %v593, %v597
        %v599 = vshrl.u32 %v301, 16
        %v601 = vrot.slane %v599, 4
        %v602 = vor.u32 %v601, %v597
        %v603 = vrot.slane %v602, 4
        %v605 = vshll.u32 %v302, 16
        %v607 = vrot.slane %v605, 5
        %v608 = vsel %vm320, %v603, %v607
        %v610 = vshrl.u32 %v303, 16
        %v612 = vrot.slane %v610, 4
        %v613 = vshll.u32 %v303, 16
        %v615 = vrot.slane %v613, 5
        %v616 = vor.u32 %v612, %v615
        %v617 = vrot.slane %v616, 4
        %v619 = vshll.u32 %v304, 16
        %v621 = vrot.slane %v619, 5
        %v622 = vsel %vm320, %v617, %v621
        %v623 = vshrl.u32 %v304, 16
        %v625 = vrot.slane %v623, 4
        %v626 = vor.u32 %v625, %v621
        %v627 = vrot.slane %v626, 4
        %v629 = vshll.u32 %v305, 16
        %v631 = vrot.slane %v629, 5
        %v632 = vsel %vm320, %v627, %v631
        %v634 = vshrl.u32 %v306, 16
        %v636 = vrot.slane %v634, 4
        %v637 = vshll.u32 %v306, 16
        %v639 = vrot.slane %v637, 5
        %v640 = vor.u32 %v636, %v639
        %v641 = vrot.slane %v640, 4
        %v643 = vshll.u32 %v307, 16
        %v645 = vrot.slane %v643, 5
        %v646 = vsel %vm320, %v641, %v645
        %v647 = vshrl.u32 %v307, 16
        %v649 = vrot.slane %v647, 4
        %v650 = vor.u32 %v649, %v645
        %v651 = vrot.slane %v650, 4
        %v653 = vshll.u32 %v308, 16
        %v655 = vrot.slane %v653, 5
        %v656 = vsel %vm320, %v651, %v655
        %v658 = vshrl.u32 %v309, 16
        %v660 = vrot.slane %v658, 4
        %v661 = vshll.u32 %v309, 16
        %v663 = vrot.slane %v661, 5
        %v664 = vor.u32 %v660, %v663
        %v665 = vrot.slane %v664, 4
        %v667 = vshll.u32 %v310, 16
        %v669 = vrot.slane %v667, 5
        %v670 = vsel %vm320, %v665, %v669
        %v671 = vshrl.u32 %v310, 16
        %v673 = vrot.slane %v671, 4
        %v674 = vor.u32 %v673, %v669
        %v675 = vrot.slane %v674, 4
        %v677 = vshll.u32 %v311, 16
        %v679 = vrot.slane %v677, 5
        %v680 = vsel %vm320, %v675, %v679
        %v682 = vshrl.u32 %v312, 16
        %v684 = vrot.slane %v682, 4
        %v685 = vshll.u32 %v312, 16
        %v687 = vrot.slane %v685, 5
        %v688 = vor.u32 %v684, %v687
        %v689 = vrot.slane %v688, 4
        %v691 = vshll.u32 %v313, 16
        %v693 = vrot.slane %v691, 5
        %v694 = vsel %vm320, %v689, %v693
        %v695 = vshrl.u32 %v313, 16
        %v697 = vrot.slane %v695, 4
        %v698 = vor.u32 %v697, %v693
        %v699 = vrot.slane %v698, 4
        %v701 = vshll.u32 %v314, 16
        %v703 = vrot.slane %v701, 5
        %v704 = vsel %vm320, %v699, %v703
        %v705 = vunpack.c.l.b16 %v334
        %v706 = vunpack.c.l.b16 %v344
        %v707 = vunpack.c.l.b16 %v358
        %v708 = vunpack.c.l.b16 %v368
        %v709 = vunpack.c.l.b16 %v382
        %v710 = vunpack.c.l.b16 %v392
        %v711 = vunpack.c.l.b16 %v406
        %v712 = vunpack.c.l.b16 %v416
        %v713 = vunpack.c.l.b16 %v430
        %v714 = vunpack.c.l.b16 %v440
        %v715 = vunpack.c.l.b16 %v454
        %v716 = vunpack.c.l.b16 %v464
        %v717 = vunpack.c.l.b16 %v478
        %v718 = vunpack.c.l.b16 %v488
        %v719 = vunpack.c.l.b16 %v502
        %v720 = vunpack.c.l.b16 %v512
        %v721 = vunpack.c.l.b16 %v526
        %v722 = vunpack.c.l.b16 %v536
        %v723 = vunpack.c.l.b16 %v550
        %v724 = vunpack.c.l.b16 %v560
        %v725 = vunpack.c.l.b16 %v574
        %v726 = vunpack.c.l.b16 %v584
        %v727 = vunpack.c.l.b16 %v598
        %v728 = vunpack.c.l.b16 %v608
        %v729 = vunpack.c.l.b16 %v622
        %v730 = vunpack.c.l.b16 %v632
        %v731 = vunpack.c.l.b16 %v646
        %v732 = vunpack.c.l.b16 %v656
        %v733 = vunpack.c.l.b16 %v670
        %v734 = vunpack.c.l.b16 %v680
        %v735 = vunpack.c.l.b16 %v694
        %v736 = vunpack.c.l.b16 %v704
        %v737 = vpack.c.b16 %v706, %v705
        %v738 = vpack.c.b16 %v708, %v707
        %v739 = vpack.c.b16 %v710, %v709
        %v740 = vpack.c.b16 %v712, %v711
        %v741 = vpack.c.b16 %v714, %v713
        %v742 = vpack.c.b16 %v716, %v715
        %v743 = vpack.c.b16 %v718, %v717
        %v744 = vpack.c.b16 %v720, %v719
        %v745 = vpack.c.b16 %v722, %v721
        %v746 = vpack.c.b16 %v724, %v723
        %v747 = vpack.c.b16 %v726, %v725
        %v748 = vpack.c.b16 %v728, %v727
        %v749 = vpack.c.b16 %v730, %v729
        %v750 = vpack.c.b16 %v732, %v731
        %v751 = vpack.c.b16 %v734, %v733
        %v752 = vpack.c.b16 %v736, %v735
        %vm753 = vcmask 31744
        %v755 = vsel %vm753, %v737, 0
        %v758 = vsel %vm753, %v738, 0
        %v761 = vsel %vm753, %v739, 0
        %v764 = vsel %vm753, %v740, 0
        %v767 = vsel %vm753, %v741, 0
        %v770 = vsel %vm753, %v742, 0
        %v773 = vsel %vm753, %v743, 0
        %v776 = vsel %vm753, %v744, 0
        %v779 = vsel %vm753, %v745, 0
        %v782 = vsel %vm753, %v746, 0
        %v785 = vsel %vm753, %v747, 0
        %v788 = vsel %vm753, %v748, 0
        %v791 = vsel %vm753, %v749, 0
        %v794 = vsel %vm753, %v750, 0
        %v797 = vsel %vm753, %v751, 0
        %v800 = vsel %vm753, %v752, 0
        %vm802 = vcmask 1041408
        %v804 = vsel %vm802, %v317, 0
        %806 = vmatprep.subr.bf16.mxu0 0
        %807 = vmatpush1.bf16.msra.mxu0 0
        %808 = vmatprep.subr.bf16.mxu0 0
        %809 = vmatpush1.bf16.msra.mxu0 0
        %810 = vmatprep.subr.bf16.mxu0 0
        %811 = vmatpush1.bf16.msra.mxu0 0
        %812 = vmatprep.subr.bf16.mxu0 0
        %813 = vmatpush1.bf16.msra.mxu0 0
        %814 = vmatprep.subr.bf16.mxu0 0
        %815 = vmatpush1.bf16.msra.mxu0 0
        %816 = vmatprep.subr.bf16.mxu0 0
        %817 = vmatpush1.bf16.msra.mxu0 0
        %818 = vmatprep.subr.bf16.mxu0 0
        %819 = vmatpush1.bf16.msra.mxu0 0
        %820 = vmatprep.subr.bf16.mxu0 0
        %821 = vmatpush1.bf16.msra.mxu0 %v804
        %822 = vmatprep.subr.bf16.mxu0 0
        %823 = vmatpush2.bf16.msra.mxu0 0
        %824 = vmatprep.subr.bf16.mxu0 0
        %825 = vmatpush2.bf16.msra.mxu0 0
        %826 = vmatprep.subr.bf16.mxu0 0
        %827 = vmatpush2.bf16.msra.mxu0 0
        %828 = vmatprep.subr.bf16.mxu0 0
        %829 = vmatpush2.bf16.msra.mxu0 0
        %830 = vmatprep.subr.bf16.mxu0 0
        %831 = vmatpush2.bf16.msra.mxu0 0
        %832 = vmatprep.subr.bf16.mxu0 0
        %833 = vmatpush2.bf16.msra.mxu0 0
        %834 = vmatprep.subr.bf16.mxu0 0
        %835 = vmatpush2.bf16.msra.mxu0 0
        %836 = vmatprep.subr.bf16.mxu0 0
        %837 = vmatpush2.bf16.msra.mxu0 0
        %838 = vmatprep.mubr.bf16.mxu0 0
        %839 = vmatmul.mubr.bf16.gmra.mxu0 %v755
        %v840 = vpop.f32.mrf.mxu0
        %v841 = vadd.f32 0.0, %v840
        %v842 = vpop.f32.mrf.mxu0
        %v843 = vpop.f32.mrf.mxu0
        %v844 = vadd.f32 0.0, %v843
        %v845 = vpop.f32.mrf.mxu0
        %846 = vmatprep.mubr.bf16.mxu0 0
        %847 = vmatmul.mubr.bf16.gmra.mxu0 %v758
        %v848 = vpop.f32.mrf.mxu0
        %v849 = vadd.f32 0.0, %v848
        %v850 = vpop.f32.mrf.mxu0
        %v851 = vpop.f32.mrf.mxu0
        %v852 = vadd.f32 0.0, %v851
        %v853 = vpop.f32.mrf.mxu0
        %854 = vmatprep.mubr.bf16.mxu0 0
        %855 = vmatmul.mubr.bf16.gmra.mxu0 %v761
        %v856 = vpop.f32.mrf.mxu0
        %v857 = vadd.f32 0.0, %v856
        %v858 = vpop.f32.mrf.mxu0
        %v859 = vpop.f32.mrf.mxu0
        %v860 = vadd.f32 0.0, %v859
        %v861 = vpop.f32.mrf.mxu0
        %862 = vmatprep.mubr.bf16.mxu0 0
        %863 = vmatmul.mubr.bf16.gmra.mxu0 %v764
        %v864 = vpop.f32.mrf.mxu0
        %v865 = vadd.f32 0.0, %v864
        %v866 = vpop.f32.mrf.mxu0
        %v867 = vpop.f32.mrf.mxu0
        %v868 = vadd.f32 0.0, %v867
        %v869 = vpop.f32.mrf.mxu0
        %870 = vmatprep.mubr.bf16.mxu0 0
        %871 = vmatmul.mubr.bf16.gmra.mxu0 %v767
        %v872 = vpop.f32.mrf.mxu0
        %v873 = vadd.f32 0.0, %v872
        %v874 = vpop.f32.mrf.mxu0
        %v875 = vpop.f32.mrf.mxu0
        %v876 = vadd.f32 0.0, %v875
        %v877 = vpop.f32.mrf.mxu0
        %878 = vmatprep.mubr.bf16.mxu0 0
        %879 = vmatmul.mubr.bf16.gmra.mxu0 %v770
        %v880 = vpop.f32.mrf.mxu0
        %v881 = vadd.f32 0.0, %v880
        %v882 = vpop.f32.mrf.mxu0
        %v883 = vpop.f32.mrf.mxu0
        %v884 = vadd.f32 0.0, %v883
        %v885 = vpop.f32.mrf.mxu0
        %886 = vmatprep.mubr.bf16.mxu0 0
        %887 = vmatmul.mubr.bf16.gmra.mxu0 %v773
        %v888 = vpop.f32.mrf.mxu0
        %v889 = vadd.f32 0.0, %v888
        %v890 = vpop.f32.mrf.mxu0
        %v891 = vpop.f32.mrf.mxu0
        %v892 = vadd.f32 0.0, %v891
        %v893 = vpop.f32.mrf.mxu0
        %894 = vmatprep.mubr.bf16.mxu0 0
        %895 = vmatmul.mubr.bf16.gmra.mxu0 %v776
        %v896 = vpop.f32.mrf.mxu0
        %v897 = vadd.f32 0.0, %v896
        %v898 = vpop.f32.mrf.mxu0
        %v899 = vpop.f32.mrf.mxu0
        %v900 = vadd.f32 0.0, %v899
        %v901 = vpop.f32.mrf.mxu0
        %902 = vmatprep.mubr.bf16.mxu0 0
        %903 = vmatmul.mubr.bf16.gmra.mxu0 %v779
        %v904 = vpop.f32.mrf.mxu0
        %v905 = vadd.f32 0.0, %v904
        %v906 = vpop.f32.mrf.mxu0
        %v907 = vpop.f32.mrf.mxu0
        %v908 = vadd.f32 0.0, %v907
        %v909 = vpop.f32.mrf.mxu0
        %910 = vmatprep.mubr.bf16.mxu0 0
        %911 = vmatmul.mubr.bf16.gmra.mxu0 %v782
        %v912 = vpop.f32.mrf.mxu0
        %v913 = vadd.f32 0.0, %v912
        %v914 = vpop.f32.mrf.mxu0
        %v915 = vpop.f32.mrf.mxu0
        %v916 = vadd.f32 0.0, %v915
        %v917 = vpop.f32.mrf.mxu0
        %918 = vmatprep.mubr.bf16.mxu0 0
        %919 = vmatmul.mubr.bf16.gmra.mxu0 %v785
        %v920 = vpop.f32.mrf.mxu0
        %v921 = vadd.f32 0.0, %v920
        %v922 = vpop.f32.mrf.mxu0
        %v923 = vpop.f32.mrf.mxu0
        %v924 = vadd.f32 0.0, %v923
        %v925 = vpop.f32.mrf.mxu0
        %926 = vmatprep.mubr.bf16.mxu0 0
        %927 = vmatmul.mubr.bf16.gmra.mxu0 %v788
        %v928 = vpop.f32.mrf.mxu0
        %v929 = vadd.f32 0.0, %v928
        %v930 = vpop.f32.mrf.mxu0
        %v931 = vpop.f32.mrf.mxu0
        %v932 = vadd.f32 0.0, %v931
        %v933 = vpop.f32.mrf.mxu0
        %934 = vmatprep.mubr.bf16.mxu0 0
        %935 = vmatmul.mubr.bf16.gmra.mxu0 %v791
        %v936 = vpop.f32.mrf.mxu0
        %v937 = vadd.f32 0.0, %v936
        %v938 = vpop.f32.mrf.mxu0
        %v939 = vpop.f32.mrf.mxu0
        %v940 = vadd.f32 0.0, %v939
        %v941 = vpop.f32.mrf.mxu0
        %942 = vmatprep.mubr.bf16.mxu0 0
        %943 = vmatmul.mubr.bf16.gmra.mxu0 %v794
        %v944 = vpop.f32.mrf.mxu0
        %v945 = vadd.f32 0.0, %v944
        %v946 = vpop.f32.mrf.mxu0
        %v947 = vpop.f32.mrf.mxu0
        %v948 = vadd.f32 0.0, %v947
        %v949 = vpop.f32.mrf.mxu0
        %950 = vmatprep.mubr.bf16.mxu0 0
        %951 = vmatmul.mubr.bf16.gmra.mxu0 %v797
        %v952 = vpop.f32.mrf.mxu0
        %v953 = vadd.f32 0.0, %v952
        %v954 = vpop.f32.mrf.mxu0
        %v955 = vpop.f32.mrf.mxu0
        %v956 = vadd.f32 0.0, %v955
        %v957 = vpop.f32.mrf.mxu0
        %958 = vmatprep.mubr.bf16.mxu0 0
        %959 = vmatmul.mubr.bf16.gmra.mxu0 %v800
        %v960 = vpop.f32.mrf.mxu0
        %v961 = vadd.f32 0.0, %v960
        %v962 = vpop.f32.mrf.mxu0
        %v963 = vpop.f32.mrf.mxu0
        %v964 = vadd.f32 0.0, %v963
        %v965 = vpop.f32.mrf.mxu0
        %966 = vdwg.mxu0
        %v999 = vunpack.c.l.b16 %v267
        %v1000 = vunpack.c.l.b16 %v268
        %v1001 = vunpack.c.l.b16 %v270
        %v1002 = vunpack.c.l.b16 %v271
        %v1003 = vunpack.c.l.b16 %v273
        %v1004 = vunpack.c.l.b16 %v274
        %v1005 = vunpack.c.l.b16 %v276
        %v1006 = vunpack.c.l.b16 %v277
        %v1007 = vunpack.c.l.b16 %v279
        %v1008 = vunpack.c.l.b16 %v280
        %v1009 = vunpack.c.l.b16 %v282
        %v1010 = vunpack.c.l.b16 %v283
        %v1011 = vunpack.c.l.b16 %v285
        %v1012 = vunpack.c.l.b16 %v286
        %v1013 = vunpack.c.l.b16 %v288
        %v1014 = vunpack.c.l.b16 %v289
        %v1015 = vunpack.c.l.b16 %v291
        %v1016 = vunpack.c.l.b16 %v292
        %v1017 = vunpack.c.l.b16 %v294
        %v1018 = vunpack.c.l.b16 %v295
        %v1019 = vunpack.c.l.b16 %v297
        %v1020 = vunpack.c.l.b16 %v298
        %v1021 = vunpack.c.l.b16 %v300
        %v1022 = vunpack.c.l.b16 %v301
        %v1023 = vunpack.c.l.b16 %v303
        %v1024 = vunpack.c.l.b16 %v304
        %v1025 = vunpack.c.l.b16 %v306
        %v1026 = vunpack.c.l.b16 %v307
        %v1027 = vunpack.c.l.b16 %v309
        %v1028 = vunpack.c.l.b16 %v310
        %v1029 = vunpack.c.l.b16 %v312
        %v1030 = vunpack.c.l.b16 %v313
        %v1031 = vpack.c.b16 %v1000, %v999
        %v1032 = vpack.c.b16 %v1002, %v1001
        %v1033 = vpack.c.b16 %v1004, %v1003
        %v1034 = vpack.c.b16 %v1006, %v1005
        %v1035 = vpack.c.b16 %v1008, %v1007
        %v1036 = vpack.c.b16 %v1010, %v1009
        %v1037 = vpack.c.b16 %v1012, %v1011
        %v1038 = vpack.c.b16 %v1014, %v1013
        %v1039 = vpack.c.b16 %v1016, %v1015
        %v1040 = vpack.c.b16 %v1018, %v1017
        %v1041 = vpack.c.b16 %v1020, %v1019
        %v1042 = vpack.c.b16 %v1022, %v1021
        %v1043 = vpack.c.b16 %v1024, %v1023
        %v1044 = vpack.c.b16 %v1026, %v1025
        %v1045 = vpack.c.b16 %v1028, %v1027
        %v1046 = vpack.c.b16 %v1030, %v1029
        %v1048 = vsel %vm753, %v1031, 0
        %v1051 = vsel %vm753, %v1032, 0
        %v1054 = vsel %vm753, %v1033, 0
        %v1057 = vsel %vm753, %v1034, 0
        %v1060 = vsel %vm753, %v1035, 0
        %v1063 = vsel %vm753, %v1036, 0
        %v1066 = vsel %vm753, %v1037, 0
        %v1069 = vsel %vm753, %v1038, 0
        %v1072 = vsel %vm753, %v1039, 0
        %v1075 = vsel %vm753, %v1040, 0
        %v1078 = vsel %vm753, %v1041, 0
        %v1081 = vsel %vm753, %v1042, 0
        %v1084 = vsel %vm753, %v1043, 0
        %v1087 = vsel %vm753, %v1044, 0
        %v1090 = vsel %vm753, %v1045, 0
        %v1093 = vsel %vm753, %v1046, 0
        %v1096 = vsel %vm802, %v315, 0
        %1098 = vmatprep.subr.bf16.mxu0 0
        %1099 = vmatpush1.bf16.msra.mxu0 0
        %1100 = vmatprep.subr.bf16.mxu0 0
        %1101 = vmatpush1.bf16.msra.mxu0 0
        %1102 = vmatprep.subr.bf16.mxu0 0
        %1103 = vmatpush1.bf16.msra.mxu0 0
        %1104 = vmatprep.subr.bf16.mxu0 0
        %1105 = vmatpush1.bf16.msra.mxu0 0
        %1106 = vmatprep.subr.bf16.mxu0 0
        %1107 = vmatpush1.bf16.msra.mxu0 0
        %1108 = vmatprep.subr.bf16.mxu0 0
        %1109 = vmatpush1.bf16.msra.mxu0 0
        %1110 = vmatprep.subr.bf16.mxu0 0
        %1111 = vmatpush1.bf16.msra.mxu0 0
        %1112 = vmatprep.subr.bf16.mxu0 0
        %1113 = vmatpush1.bf16.msra.mxu0 %v1096
        %1114 = vmatprep.subr.bf16.mxu0 0
        %1115 = vmatpush2.bf16.msra.mxu0 0
        %1116 = vmatprep.subr.bf16.mxu0 0
        %1117 = vmatpush2.bf16.msra.mxu0 0
        %1118 = vmatprep.subr.bf16.mxu0 0
        %1119 = vmatpush2.bf16.msra.mxu0 0
        %1120 = vmatprep.subr.bf16.mxu0 0
        %1121 = vmatpush2.bf16.msra.mxu0 0
        %1122 = vmatprep.subr.bf16.mxu0 0
        %1123 = vmatpush2.bf16.msra.mxu0 0
        %1124 = vmatprep.subr.bf16.mxu0 0
        %1125 = vmatpush2.bf16.msra.mxu0 0
        %1126 = vmatprep.subr.bf16.mxu0 0
        %1127 = vmatpush2.bf16.msra.mxu0 0
        %1128 = vmatprep.subr.bf16.mxu0 0
        %1129 = vmatpush2.bf16.msra.mxu0 0
        %1130 = vmatprep.mubr.bf16.mxu0 0
        %1131 = vmatmul.mubr.bf16.gmra.mxu0 %v1048
        %v1132 = vpop.f32.mrf.mxu0
        %v1133 = vadd.f32 %v841, %v1132
        %v1134 = vpop.f32.mrf.mxu0
        %v1135 = vpop.f32.mrf.mxu0
        %v1136 = vadd.f32 %v844, %v1135
        %v1137 = vpop.f32.mrf.mxu0
        %1138 = vmatprep.mubr.bf16.mxu0 0
        %1139 = vmatmul.mubr.bf16.gmra.mxu0 %v1051
        %v1140 = vpop.f32.mrf.mxu0
        %v1141 = vadd.f32 %v849, %v1140
        %v1142 = vpop.f32.mrf.mxu0
        %v1143 = vpop.f32.mrf.mxu0
        %v1144 = vadd.f32 %v852, %v1143
        %v1145 = vpop.f32.mrf.mxu0
        %1146 = vmatprep.mubr.bf16.mxu0 0
        %1147 = vmatmul.mubr.bf16.gmra.mxu0 %v1054
        %v1148 = vpop.f32.mrf.mxu0
        %v1149 = vadd.f32 %v857, %v1148
        %v1150 = vpop.f32.mrf.mxu0
        %v1151 = vpop.f32.mrf.mxu0
        %v1152 = vadd.f32 %v860, %v1151
        %v1153 = vpop.f32.mrf.mxu0
        %1154 = vmatprep.mubr.bf16.mxu0 0
        %1155 = vmatmul.mubr.bf16.gmra.mxu0 %v1057
        %v1156 = vpop.f32.mrf.mxu0
        %v1157 = vadd.f32 %v865, %v1156
        %v1158 = vpop.f32.mrf.mxu0
        %v1159 = vpop.f32.mrf.mxu0
        %v1160 = vadd.f32 %v868, %v1159
        %v1161 = vpop.f32.mrf.mxu0
        %1162 = vmatprep.mubr.bf16.mxu0 0
        %1163 = vmatmul.mubr.bf16.gmra.mxu0 %v1060
        %v1164 = vpop.f32.mrf.mxu0
        %v1165 = vadd.f32 %v873, %v1164
        %v1166 = vpop.f32.mrf.mxu0
        %v1167 = vpop.f32.mrf.mxu0
        %v1168 = vadd.f32 %v876, %v1167
        %v1169 = vpop.f32.mrf.mxu0
        %1170 = vmatprep.mubr.bf16.mxu0 0
        %1171 = vmatmul.mubr.bf16.gmra.mxu0 %v1063
        %v1172 = vpop.f32.mrf.mxu0
        %v1173 = vadd.f32 %v881, %v1172
        %v1174 = vpop.f32.mrf.mxu0
        %v1175 = vpop.f32.mrf.mxu0
        %v1176 = vadd.f32 %v884, %v1175
        %v1177 = vpop.f32.mrf.mxu0
        %1178 = vmatprep.mubr.bf16.mxu0 0
        %1179 = vmatmul.mubr.bf16.gmra.mxu0 %v1066
        %v1180 = vpop.f32.mrf.mxu0
        %v1181 = vadd.f32 %v889, %v1180
        %v1182 = vpop.f32.mrf.mxu0
        %v1183 = vpop.f32.mrf.mxu0
        %v1184 = vadd.f32 %v892, %v1183
        %v1185 = vpop.f32.mrf.mxu0
        %1186 = vmatprep.mubr.bf16.mxu0 0
        %1187 = vmatmul.mubr.bf16.gmra.mxu0 %v1069
        %v1188 = vpop.f32.mrf.mxu0
        %v1189 = vadd.f32 %v897, %v1188
        %v1190 = vpop.f32.mrf.mxu0
        %v1191 = vpop.f32.mrf.mxu0
        %v1192 = vadd.f32 %v900, %v1191
        %v1193 = vpop.f32.mrf.mxu0
        %1194 = vmatprep.mubr.bf16.mxu0 0
        %1195 = vmatmul.mubr.bf16.gmra.mxu0 %v1072
        %v1196 = vpop.f32.mrf.mxu0
        %v1197 = vadd.f32 %v905, %v1196
        %v1198 = vpop.f32.mrf.mxu0
        %v1199 = vpop.f32.mrf.mxu0
        %v1200 = vadd.f32 %v908, %v1199
        %v1201 = vpop.f32.mrf.mxu0
        %1202 = vmatprep.mubr.bf16.mxu0 0
        %1203 = vmatmul.mubr.bf16.gmra.mxu0 %v1075
        %v1204 = vpop.f32.mrf.mxu0
        %v1205 = vadd.f32 %v913, %v1204
        %v1206 = vpop.f32.mrf.mxu0
        %v1207 = vpop.f32.mrf.mxu0
        %v1208 = vadd.f32 %v916, %v1207
        %v1209 = vpop.f32.mrf.mxu0
        %1210 = vmatprep.mubr.bf16.mxu0 0
        %1211 = vmatmul.mubr.bf16.gmra.mxu0 %v1078
        %v1212 = vpop.f32.mrf.mxu0
        %v1213 = vadd.f32 %v921, %v1212
        %v1214 = vpop.f32.mrf.mxu0
        %v1215 = vpop.f32.mrf.mxu0
        %v1216 = vadd.f32 %v924, %v1215
        %v1217 = vpop.f32.mrf.mxu0
        %1218 = vmatprep.mubr.bf16.mxu0 0
        %1219 = vmatmul.mubr.bf16.gmra.mxu0 %v1081
        %v1220 = vpop.f32.mrf.mxu0
        %v1221 = vadd.f32 %v929, %v1220
        %v1222 = vpop.f32.mrf.mxu0
        %v1223 = vpop.f32.mrf.mxu0
        %v1224 = vadd.f32 %v932, %v1223
        %v1225 = vpop.f32.mrf.mxu0
        %1226 = vmatprep.mubr.bf16.mxu0 0
        %1227 = vmatmul.mubr.bf16.gmra.mxu0 %v1084
        %v1228 = vpop.f32.mrf.mxu0
        %v1229 = vadd.f32 %v937, %v1228
        %v1230 = vpop.f32.mrf.mxu0
        %v1231 = vpop.f32.mrf.mxu0
        %v1232 = vadd.f32 %v940, %v1231
        %v1233 = vpop.f32.mrf.mxu0
        %1234 = vmatprep.mubr.bf16.mxu0 0
        %1235 = vmatmul.mubr.bf16.gmra.mxu0 %v1087
        %v1236 = vpop.f32.mrf.mxu0
        %v1237 = vadd.f32 %v945, %v1236
        %v1238 = vpop.f32.mrf.mxu0
        %v1239 = vpop.f32.mrf.mxu0
        %v1240 = vadd.f32 %v948, %v1239
        %v1241 = vpop.f32.mrf.mxu0
        %1242 = vmatprep.mubr.bf16.mxu0 0
        %1243 = vmatmul.mubr.bf16.gmra.mxu0 %v1090
        %v1244 = vpop.f32.mrf.mxu0
        %v1245 = vadd.f32 %v953, %v1244
        %v1246 = vpop.f32.mrf.mxu0
        %v1247 = vpop.f32.mrf.mxu0
        %v1248 = vadd.f32 %v956, %v1247
        %v1249 = vpop.f32.mrf.mxu0
        %1250 = vmatprep.mubr.bf16.mxu0 0
        %1251 = vmatmul.mubr.bf16.gmra.mxu0 %v1093
        %v1252 = vpop.f32.mrf.mxu0
        %v1253 = vadd.f32 %v961, %v1252
        %v1254 = vpop.f32.mrf.mxu0
        %v1255 = vpop.f32.mrf.mxu0
        %v1256 = vadd.f32 %v964, %v1255
        %v1257 = vpop.f32.mrf.mxu0
        %1258 = vdwg.mxu0
        %s1259 = scalar_lea.vmem %s1, 4
        %v1260 = vld [vmem:[%s1259] sm:$0x3]
        %vm1277 = vcmask 1042432
        %vm1278 = vcmask 1046532
        %vm1279 = vmor %vm1277, %vm1278
        %v1280 = vrot.slane %v267, 5
        %v1281 = vrot.slane %v1280, 4
        %v1282 = vrot.slane %v268, 5
        %v1283 = vsel %vm1279, %v1281, %v1282
        %v1284 = vrot.slane %v1282, 4
        %v1285 = vrot.slane %v269, 5
        %v1286 = vsel %vm1279, %v1284, %v1285
        %v1287 = vrot.slane %v270, 5
        %v1288 = vrot.slane %v1287, 4
        %v1289 = vrot.slane %v271, 5
        %v1290 = vsel %vm1279, %v1288, %v1289
        %v1291 = vrot.slane %v1289, 4
        %v1292 = vrot.slane %v272, 5
        %v1293 = vsel %vm1279, %v1291, %v1292
        %v1294 = vrot.slane %v273, 5
        %v1295 = vrot.slane %v1294, 4
        %v1296 = vrot.slane %v274, 5
        %v1297 = vsel %vm1279, %v1295, %v1296
        %v1298 = vrot.slane %v1296, 4
        %v1299 = vrot.slane %v275, 5
        %v1300 = vsel %vm1279, %v1298, %v1299
        %v1301 = vrot.slane %v276, 5
        %v1302 = vrot.slane %v1301, 4
        %v1303 = vrot.slane %v277, 5
        %v1304 = vsel %vm1279, %v1302, %v1303
        %v1305 = vrot.slane %v1303, 4
        %v1306 = vrot.slane %v278, 5
        %v1307 = vsel %vm1279, %v1305, %v1306
        %v1308 = vrot.slane %v279, 5
        %v1309 = vrot.slane %v1308, 4
        %v1310 = vrot.slane %v280, 5
        %v1311 = vsel %vm1279, %v1309, %v1310
        %v1312 = vrot.slane %v1310, 4
        %v1313 = vrot.slane %v281, 5
        %v1314 = vsel %vm1279, %v1312, %v1313
        %v1315 = vrot.slane %v282, 5
        %v1316 = vrot.slane %v1315, 4
        %v1317 = vrot.slane %v283, 5
        %v1318 = vsel %vm1279, %v1316, %v1317
        %v1319 = vrot.slane %v1317, 4
        %v1320 = vrot.slane %v284, 5
        %v1321 = vsel %vm1279, %v1319, %v1320
        %v1322 = vrot.slane %v285, 5
        %v1323 = vrot.slane %v1322, 4
        %v1324 = vrot.slane %v286, 5
        %v1325 = vsel %vm1279, %v1323, %v1324
        %v1326 = vrot.slane %v1324, 4
        %v1327 = vrot.slane %v287, 5
        %v1328 = vsel %vm1279, %v1326, %v1327
        %v1329 = vrot.slane %v288, 5
        %v1330 = vrot.slane %v1329, 4
        %v1331 = vrot.slane %v289, 5
        %v1332 = vsel %vm1279, %v1330, %v1331
        %v1333 = vrot.slane %v1331, 4
        %v1334 = vrot.slane %v290, 5
        %v1335 = vsel %vm1279, %v1333, %v1334
        %v1336 = vrot.slane %v291, 5
        %v1337 = vrot.slane %v1336, 4
        %v1338 = vrot.slane %v292, 5
        %v1339 = vsel %vm1279, %v1337, %v1338
        %v1340 = vrot.slane %v1338, 4
        %v1341 = vrot.slane %v293, 5
        %v1342 = vsel %vm1279, %v1340, %v1341
        %v1343 = vrot.slane %v294, 5
        %v1344 = vrot.slane %v1343, 4
        %v1345 = vrot.slane %v295, 5
        %v1346 = vsel %vm1279, %v1344, %v1345
        %v1347 = vrot.slane %v1345, 4
        %v1348 = vrot.slane %v296, 5
        %v1349 = vsel %vm1279, %v1347, %v1348
        %v1350 = vrot.slane %v297, 5
        %v1351 = vrot.slane %v1350, 4
        %v1352 = vrot.slane %v298, 5
        %v1353 = vsel %vm1279, %v1351, %v1352
        %v1354 = vrot.slane %v1352, 4
        %v1355 = vrot.slane %v299, 5
        %v1356 = vsel %vm1279, %v1354, %v1355
        %v1357 = vrot.slane %v300, 5
        %v1358 = vrot.slane %v1357, 4
        %v1359 = vrot.slane %v301, 5
        %v1360 = vsel %vm1279, %v1358, %v1359
        %v1361 = vrot.slane %v1359, 4
        %v1362 = vrot.slane %v302, 5
        %v1363 = vsel %vm1279, %v1361, %v1362
        %v1364 = vrot.slane %v303, 5
        %v1365 = vrot.slane %v1364, 4
        %v1366 = vrot.slane %v304, 5
        %v1367 = vsel %vm1279, %v1365, %v1366
        %v1368 = vrot.slane %v1366, 4
        %v1369 = vrot.slane %v305, 5
        %v1370 = vsel %vm1279, %v1368, %v1369
        %v1371 = vrot.slane %v306, 5
        %v1372 = vrot.slane %v1371, 4
        %v1373 = vrot.slane %v307, 5
        %v1374 = vsel %vm1279, %v1372, %v1373
        %v1375 = vrot.slane %v1373, 4
        %v1376 = vrot.slane %v308, 5
        %v1377 = vsel %vm1279, %v1375, %v1376
        %v1378 = vrot.slane %v309, 5
        %v1379 = vrot.slane %v1378, 4
        %v1380 = vrot.slane %v310, 5
        %v1381 = vsel %vm1279, %v1379, %v1380
        %v1382 = vrot.slane %v1380, 4
        %v1383 = vrot.slane %v311, 5
        %v1384 = vsel %vm1279, %v1382, %v1383
        %v1385 = vrot.slane %v312, 5
        %v1386 = vrot.slane %v1385, 4
        %v1387 = vrot.slane %v313, 5
        %v1388 = vsel %vm1279, %v1386, %v1387
        %v1389 = vrot.slane %v1387, 4
        %v1390 = vrot.slane %v314, 5
        %v1391 = vsel %vm1279, %v1389, %v1390
        %v1392 = vunpack.c.l.b16 %v1283
        %v1393 = vunpack.c.l.b16 %v1286
        %v1394 = vunpack.c.l.b16 %v1290
        %v1395 = vunpack.c.l.b16 %v1293
        %v1396 = vunpack.c.l.b16 %v1297
        %v1397 = vunpack.c.l.b16 %v1300
        %v1398 = vunpack.c.l.b16 %v1304
        %v1399 = vunpack.c.l.b16 %v1307
        %v1400 = vunpack.c.l.b16 %v1311
        %v1401 = vunpack.c.l.b16 %v1314
        %v1402 = vunpack.c.l.b16 %v1318
        %v1403 = vunpack.c.l.b16 %v1321
        %v1404 = vunpack.c.l.b16 %v1325
        %v1405 = vunpack.c.l.b16 %v1328
        %v1406 = vunpack.c.l.b16 %v1332
        %v1407 = vunpack.c.l.b16 %v1335
        %v1408 = vunpack.c.l.b16 %v1339
        %v1409 = vunpack.c.l.b16 %v1342
        %v1410 = vunpack.c.l.b16 %v1346
        %v1411 = vunpack.c.l.b16 %v1349
        %v1412 = vunpack.c.l.b16 %v1353
        %v1413 = vunpack.c.l.b16 %v1356
        %v1414 = vunpack.c.l.b16 %v1360
        %v1415 = vunpack.c.l.b16 %v1363
        %v1416 = vunpack.c.l.b16 %v1367
        %v1417 = vunpack.c.l.b16 %v1370
        %v1418 = vunpack.c.l.b16 %v1374
        %v1419 = vunpack.c.l.b16 %v1377
        %v1420 = vunpack.c.l.b16 %v1381
        %v1421 = vunpack.c.l.b16 %v1384
        %v1422 = vunpack.c.l.b16 %v1388
        %v1423 = vunpack.c.l.b16 %v1391
        %v1424 = vpack.c.b16 %v1393, %v1392
        %v1425 = vpack.c.b16 %v1395, %v1394
        %v1426 = vpack.c.b16 %v1397, %v1396
        %v1427 = vpack.c.b16 %v1399, %v1398
        %v1428 = vpack.c.b16 %v1401, %v1400
        %v1429 = vpack.c.b16 %v1403, %v1402
        %v1430 = vpack.c.b16 %v1405, %v1404
        %v1431 = vpack.c.b16 %v1407, %v1406
        %v1432 = vpack.c.b16 %v1409, %v1408
        %v1433 = vpack.c.b16 %v1411, %v1410
        %v1434 = vpack.c.b16 %v1413, %v1412
        %v1435 = vpack.c.b16 %v1415, %v1414
        %v1436 = vpack.c.b16 %v1417, %v1416
        %v1437 = vpack.c.b16 %v1419, %v1418
        %v1438 = vpack.c.b16 %v1421, %v1420
        %v1439 = vpack.c.b16 %v1423, %v1422
        %v1441 = vsel %vm753, %v1424, 0
        %v1444 = vsel %vm753, %v1425, 0
        %v1447 = vsel %vm753, %v1426, 0
        %v1450 = vsel %vm753, %v1427, 0
        %v1453 = vsel %vm753, %v1428, 0
        %v1456 = vsel %vm753, %v1429, 0
        %v1459 = vsel %vm753, %v1430, 0
        %v1462 = vsel %vm753, %v1431, 0
        %v1465 = vsel %vm753, %v1432, 0
        %v1468 = vsel %vm753, %v1433, 0
        %v1471 = vsel %vm753, %v1434, 0
        %v1474 = vsel %vm753, %v1435, 0
        %v1477 = vsel %vm753, %v1436, 0
        %v1480 = vsel %vm753, %v1437, 0
        %v1483 = vsel %vm753, %v1438, 0
        %v1486 = vsel %vm753, %v1439, 0
        %v1489 = vsel %vm802, %v1260, 0
        %1491 = vmatprep.subr.bf16.mxu0 0
        %1492 = vmatpush1.bf16.msra.mxu0 0
        %1493 = vmatprep.subr.bf16.mxu0 0
        %1494 = vmatpush1.bf16.msra.mxu0 0
        %1495 = vmatprep.subr.bf16.mxu0 0
        %1496 = vmatpush1.bf16.msra.mxu0 0
        %1497 = vmatprep.subr.bf16.mxu0 0
        %1498 = vmatpush1.bf16.msra.mxu0 0
        %1499 = vmatprep.subr.bf16.mxu0 0
        %1500 = vmatpush1.bf16.msra.mxu0 0
        %1501 = vmatprep.subr.bf16.mxu0 0
        %1502 = vmatpush1.bf16.msra.mxu0 0
        %1503 = vmatprep.subr.bf16.mxu0 0
        %1504 = vmatpush1.bf16.msra.mxu0 0
        %1505 = vmatprep.subr.bf16.mxu0 0
        %1506 = vmatpush1.bf16.msra.mxu0 %v1489
        %1507 = vmatprep.subr.bf16.mxu0 0
        %1508 = vmatpush2.bf16.msra.mxu0 0
        %1509 = vmatprep.subr.bf16.mxu0 0
        %1510 = vmatpush2.bf16.msra.mxu0 0
        %1511 = vmatprep.subr.bf16.mxu0 0
        %1512 = vmatpush2.bf16.msra.mxu0 0
        %1513 = vmatprep.subr.bf16.mxu0 0
        %1514 = vmatpush2.bf16.msra.mxu0 0
        %1515 = vmatprep.subr.bf16.mxu0 0
        %1516 = vmatpush2.bf16.msra.mxu0 0
        %1517 = vmatprep.subr.bf16.mxu0 0
        %1518 = vmatpush2.bf16.msra.mxu0 0
        %1519 = vmatprep.subr.bf16.mxu0 0
        %1520 = vmatpush2.bf16.msra.mxu0 0
        %1521 = vmatprep.subr.bf16.mxu0 0
        %1522 = vmatpush2.bf16.msra.mxu0 0
        %1523 = vmatprep.mubr.bf16.mxu0 0
        %1524 = vmatmul.mubr.bf16.gmra.mxu0 %v1441
        %v1525 = vpop.f32.mrf.mxu0
        %v1526 = vadd.f32 0.0, %v1525
        %v1527 = vpop.f32.mrf.mxu0
        %v1528 = vpop.f32.mrf.mxu0
        %v1529 = vadd.f32 0.0, %v1528
        %v1530 = vpop.f32.mrf.mxu0
        %1531 = vmatprep.mubr.bf16.mxu0 0
        %1532 = vmatmul.mubr.bf16.gmra.mxu0 %v1444
        %v1533 = vpop.f32.mrf.mxu0
        %v1534 = vadd.f32 0.0, %v1533
        %v1535 = vpop.f32.mrf.mxu0
        %v1536 = vpop.f32.mrf.mxu0
        %v1537 = vadd.f32 0.0, %v1536
        %v1538 = vpop.f32.mrf.mxu0
        %1539 = vmatprep.mubr.bf16.mxu0 0
        %1540 = vmatmul.mubr.bf16.gmra.mxu0 %v1447
        %v1541 = vpop.f32.mrf.mxu0
        %v1542 = vadd.f32 0.0, %v1541
        %v1543 = vpop.f32.mrf.mxu0
        %v1544 = vpop.f32.mrf.mxu0
        %v1545 = vadd.f32 0.0, %v1544
        %v1546 = vpop.f32.mrf.mxu0
        %1547 = vmatprep.mubr.bf16.mxu0 0
        %1548 = vmatmul.mubr.bf16.gmra.mxu0 %v1450
        %v1549 = vpop.f32.mrf.mxu0
        %v1550 = vadd.f32 0.0, %v1549
        %v1551 = vpop.f32.mrf.mxu0
        %v1552 = vpop.f32.mrf.mxu0
        %v1553 = vadd.f32 0.0, %v1552
        %v1554 = vpop.f32.mrf.mxu0
        %1555 = vmatprep.mubr.bf16.mxu0 0
        %1556 = vmatmul.mubr.bf16.gmra.mxu0 %v1453
        %v1557 = vpop.f32.mrf.mxu0
        %v1558 = vadd.f32 0.0, %v1557
        %v1559 = vpop.f32.mrf.mxu0
        %v1560 = vpop.f32.mrf.mxu0
        %v1561 = vadd.f32 0.0, %v1560
        %v1562 = vpop.f32.mrf.mxu0
        %1563 = vmatprep.mubr.bf16.mxu0 0
        %1564 = vmatmul.mubr.bf16.gmra.mxu0 %v1456
        %v1565 = vpop.f32.mrf.mxu0
        %v1566 = vadd.f32 0.0, %v1565
        %v1567 = vpop.f32.mrf.mxu0
        %v1568 = vpop.f32.mrf.mxu0
        %v1569 = vadd.f32 0.0, %v1568
        %v1570 = vpop.f32.mrf.mxu0
        %1571 = vmatprep.mubr.bf16.mxu0 0
        %1572 = vmatmul.mubr.bf16.gmra.mxu0 %v1459
        %v1573 = vpop.f32.mrf.mxu0
        %v1574 = vadd.f32 0.0, %v1573
        %v1575 = vpop.f32.mrf.mxu0
        %v1576 = vpop.f32.mrf.mxu0
        %v1577 = vadd.f32 0.0, %v1576
        %v1578 = vpop.f32.mrf.mxu0
        %1579 = vmatprep.mubr.bf16.mxu0 0
        %1580 = vmatmul.mubr.bf16.gmra.mxu0 %v1462
        %v1581 = vpop.f32.mrf.mxu0
        %v1582 = vadd.f32 0.0, %v1581
        %v1583 = vpop.f32.mrf.mxu0
        %v1584 = vpop.f32.mrf.mxu0
        %v1585 = vadd.f32 0.0, %v1584
        %v1586 = vpop.f32.mrf.mxu0
        %1587 = vmatprep.mubr.bf16.mxu0 0
        %1588 = vmatmul.mubr.bf16.gmra.mxu0 %v1465
        %v1589 = vpop.f32.mrf.mxu0
        %v1590 = vadd.f32 0.0, %v1589
        %v1591 = vpop.f32.mrf.mxu0
        %v1592 = vpop.f32.mrf.mxu0
        %v1593 = vadd.f32 0.0, %v1592
        %v1594 = vpop.f32.mrf.mxu0
        %1595 = vmatprep.mubr.bf16.mxu0 0
        %1596 = vmatmul.mubr.bf16.gmra.mxu0 %v1468
        %v1597 = vpop.f32.mrf.mxu0
        %v1598 = vadd.f32 0.0, %v1597
        %v1599 = vpop.f32.mrf.mxu0
        %v1600 = vpop.f32.mrf.mxu0
        %v1601 = vadd.f32 0.0, %v1600
        %v1602 = vpop.f32.mrf.mxu0
        %1603 = vmatprep.mubr.bf16.mxu0 0
        %1604 = vmatmul.mubr.bf16.gmra.mxu0 %v1471
        %v1605 = vpop.f32.mrf.mxu0
        %v1606 = vadd.f32 0.0, %v1605
        %v1607 = vpop.f32.mrf.mxu0
        %v1608 = vpop.f32.mrf.mxu0
        %v1609 = vadd.f32 0.0, %v1608
        %v1610 = vpop.f32.mrf.mxu0
        %1611 = vmatprep.mubr.bf16.mxu0 0
        %1612 = vmatmul.mubr.bf16.gmra.mxu0 %v1474
        %v1613 = vpop.f32.mrf.mxu0
        %v1614 = vadd.f32 0.0, %v1613
        %v1615 = vpop.f32.mrf.mxu0
        %v1616 = vpop.f32.mrf.mxu0
        %v1617 = vadd.f32 0.0, %v1616
        %v1618 = vpop.f32.mrf.mxu0
        %1619 = vmatprep.mubr.bf16.mxu0 0
        %1620 = vmatmul.mubr.bf16.gmra.mxu0 %v1477
        %v1621 = vpop.f32.mrf.mxu0
        %v1622 = vadd.f32 0.0, %v1621
        %v1623 = vpop.f32.mrf.mxu0
        %v1624 = vpop.f32.mrf.mxu0
        %v1625 = vadd.f32 0.0, %v1624
        %v1626 = vpop.f32.mrf.mxu0
        %1627 = vmatprep.mubr.bf16.mxu0 0
        %1628 = vmatmul.mubr.bf16.gmra.mxu0 %v1480
        %v1629 = vpop.f32.mrf.mxu0
        %v1630 = vadd.f32 0.0, %v1629
        %v1631 = vpop.f32.mrf.mxu0
        %v1632 = vpop.f32.mrf.mxu0
        %v1633 = vadd.f32 0.0, %v1632
        %v1634 = vpop.f32.mrf.mxu0
        %1635 = vmatprep.mubr.bf16.mxu0 0
        %1636 = vmatmul.mubr.bf16.gmra.mxu0 %v1483
        %v1637 = vpop.f32.mrf.mxu0
        %v1638 = vadd.f32 0.0, %v1637
        %v1639 = vpop.f32.mrf.mxu0
        %v1640 = vpop.f32.mrf.mxu0
        %v1641 = vadd.f32 0.0, %v1640
        %v1642 = vpop.f32.mrf.mxu0
        %1643 = vmatprep.mubr.bf16.mxu0 0
        %1644 = vmatmul.mubr.bf16.gmra.mxu0 %v1486
        %v1645 = vpop.f32.mrf.mxu0
        %v1646 = vadd.f32 0.0, %v1645
        %v1647 = vpop.f32.mrf.mxu0
        %v1648 = vpop.f32.mrf.mxu0
        %v1649 = vadd.f32 0.0, %v1648
        %v1650 = vpop.f32.mrf.mxu0
        %1651 = vdwg.mxu0
        %v1652 = vadd.f32 %v1133, %v1526
        %v1653 = vadd.f32 %v1136, %v1529
        %v1654 = vadd.f32 %v1141, %v1534
        %v1655 = vadd.f32 %v1144, %v1537
        %v1656 = vadd.f32 %v1149, %v1542
        %v1657 = vadd.f32 %v1152, %v1545
        %v1658 = vadd.f32 %v1157, %v1550
        %v1659 = vadd.f32 %v1160, %v1553
        %v1660 = vadd.f32 %v1165, %v1558
        %v1661 = vadd.f32 %v1168, %v1561
        %v1662 = vadd.f32 %v1173, %v1566
        %v1663 = vadd.f32 %v1176, %v1569
        %v1664 = vadd.f32 %v1181, %v1574
        %v1665 = vadd.f32 %v1184, %v1577
        %v1666 = vadd.f32 %v1189, %v1582
        %v1667 = vadd.f32 %v1192, %v1585
        %v1668 = vadd.f32 %v1197, %v1590
        %v1669 = vadd.f32 %v1200, %v1593
        %v1670 = vadd.f32 %v1205, %v1598
        %v1671 = vadd.f32 %v1208, %v1601
        %v1672 = vadd.f32 %v1213, %v1606
        %v1673 = vadd.f32 %v1216, %v1609
        %v1674 = vadd.f32 %v1221, %v1614
        %v1675 = vadd.f32 %v1224, %v1617
        %v1676 = vadd.f32 %v1229, %v1622
        %v1677 = vadd.f32 %v1232, %v1625
        %v1678 = vadd.f32 %v1237, %v1630
        %v1679 = vadd.f32 %v1240, %v1633
        %v1680 = vadd.f32 %v1245, %v1638
        %v1681 = vadd.f32 %v1248, %v1641
        %v1682 = vadd.f32 %v1253, %v1646
        %v1683 = vadd.f32 %v1256, %v1649
        %s1684 = sadd.s32 %s263, 1
        %s1685 = smul.u32 %s1684, 3
        %s1686 = smul.addr %s1685, 4
        %s1687 = scalar_lea.vmem %s254, %s1686
        %v1688 = vld [vmem:[%s1687] sm:$0xf]
        %v1689 = vld [vmem:[%s1687 + $0x4] sm:$0xf]
        %v1690 = vld [vmem:[%s1687 + $0x8] sm:$0x1]
        %v1691 = vld [vmem:[%s1687 + $0xc] sm:$0xf]
        %v1692 = vld [vmem:[%s1687 + $0x10] sm:$0xf]
        %v1693 = vld [vmem:[%s1687 + $0x14] sm:$0x1]
        %v1694 = vld [vmem:[%s1687 + $0x18] sm:$0xf]
        %v1695 = vld [vmem:[%s1687 + $0x1c] sm:$0xf]
        %v1696 = vld [vmem:[%s1687 + $0x20] sm:$0x1]
        %v1697 = vld [vmem:[%s1687 + $0x24] sm:$0xf]
        %v1698 = vld [vmem:[%s1687 + $0x28] sm:$0xf]
        %v1699 = vld [vmem:[%s1687 + $0x2c] sm:$0x1]
        %v1700 = vld [vmem:[%s1687 + $0x30] sm:$0xf]
        %v1701 = vld [vmem:[%s1687 + $0x34] sm:$0xf]
        %v1702 = vld [vmem:[%s1687 + $0x38] sm:$0x1]
        %v1703 = vld [vmem:[%s1687 + $0x3c] sm:$0xf]
        %v1704 = vld [vmem:[%s1687 + $0x40] sm:$0xf]
        %v1705 = vld [vmem:[%s1687 + $0x44] sm:$0x1]
        %v1706 = vld [vmem:[%s1687 + $0x48] sm:$0xf]
        %v1707 = vld [vmem:[%s1687 + $0x4c] sm:$0xf]
        %v1708 = vld [vmem:[%s1687 + $0x50] sm:$0x1]
        %v1709 = vld [vmem:[%s1687 + $0x54] sm:$0xf]
        %v1710 = vld [vmem:[%s1687 + $0x58] sm:$0xf]
        %v1711 = vld [vmem:[%s1687 + $0x5c] sm:$0x1]
        %v1712 = vld [vmem:[%s1687 + $0x60] sm:$0xf]
        %v1713 = vld [vmem:[%s1687 + $0x64] sm:$0xf]
        %v1714 = vld [vmem:[%s1687 + $0x68] sm:$0x1]
        %v1715 = vld [vmem:[%s1687 + $0x6c] sm:$0xf]
        %v1716 = vld [vmem:[%s1687 + $0x70] sm:$0xf]
        %v1717 = vld [vmem:[%s1687 + $0x74] sm:$0x1]
        %v1718 = vld [vmem:[%s1687 + $0x78] sm:$0xf]
        %v1719 = vld [vmem:[%s1687 + $0x7c] sm:$0xf]
        %v1720 = vld [vmem:[%s1687 + $0x80] sm:$0x1]
        %v1721 = vld [vmem:[%s1687 + $0x84] sm:$0xf]
        %v1722 = vld [vmem:[%s1687 + $0x88] sm:$0xf]
        %v1723 = vld [vmem:[%s1687 + $0x8c] sm:$0x1]
        %v1724 = vld [vmem:[%s1687 + $0x90] sm:$0xf]
        %v1725 = vld [vmem:[%s1687 + $0x94] sm:$0xf]
        %v1726 = vld [vmem:[%s1687 + $0x98] sm:$0x1]
        %v1727 = vld [vmem:[%s1687 + $0x9c] sm:$0xf]
        %v1728 = vld [vmem:[%s1687 + $0xa0] sm:$0xf]
        %v1729 = vld [vmem:[%s1687 + $0xa4] sm:$0x1]
        %v1730 = vld [vmem:[%s1687 + $0xa8] sm:$0xf]
        %v1731 = vld [vmem:[%s1687 + $0xac] sm:$0xf]
        %v1732 = vld [vmem:[%s1687 + $0xb0] sm:$0x1]
        %v1733 = vld [vmem:[%s1687 + $0xb4] sm:$0xf]
        %v1734 = vld [vmem:[%s1687 + $0xb8] sm:$0xf]
        %v1735 = vld [vmem:[%s1687 + $0xbc] sm:$0x1]
        %s1736 = scalar_lea.vmem %s1, 6
        %v1737 = vld [vmem:[%s1736] sm:$0x3]
        %v1770 = vunpack.c.l.b16 %v1688
        %v1771 = vunpack.c.l.b16 %v1689
        %v1772 = vunpack.c.l.b16 %v1691
        %v1773 = vunpack.c.l.b16 %v1692
        %v1774 = vunpack.c.l.b16 %v1694
        %v1775 = vunpack.c.l.b16 %v1695
        %v1776 = vunpack.c.l.b16 %v1697
        %v1777 = vunpack.c.l.b16 %v1698
        %v1778 = vunpack.c.l.b16 %v1700
        %v1779 = vunpack.c.l.b16 %v1701
        %v1780 = vunpack.c.l.b16 %v1703
        %v1781 = vunpack.c.l.b16 %v1704
        %v1782 = vunpack.c.l.b16 %v1706
        %v1783 = vunpack.c.l.b16 %v1707
        %v1784 = vunpack.c.l.b16 %v1709
        %v1785 = vunpack.c.l.b16 %v1710
        %v1786 = vunpack.c.l.b16 %v1712
        %v1787 = vunpack.c.l.b16 %v1713
        %v1788 = vunpack.c.l.b16 %v1715
        %v1789 = vunpack.c.l.b16 %v1716
        %v1790 = vunpack.c.l.b16 %v1718
        %v1791 = vunpack.c.l.b16 %v1719
        %v1792 = vunpack.c.l.b16 %v1721
        %v1793 = vunpack.c.l.b16 %v1722
        %v1794 = vunpack.c.l.b16 %v1724
        %v1795 = vunpack.c.l.b16 %v1725
        %v1796 = vunpack.c.l.b16 %v1727
        %v1797 = vunpack.c.l.b16 %v1728
        %v1798 = vunpack.c.l.b16 %v1730
        %v1799 = vunpack.c.l.b16 %v1731
        %v1800 = vunpack.c.l.b16 %v1733
        %v1801 = vunpack.c.l.b16 %v1734
        %v1802 = vpack.c.b16 %v1771, %v1770
        %v1803 = vpack.c.b16 %v1773, %v1772
        %v1804 = vpack.c.b16 %v1775, %v1774
        %v1805 = vpack.c.b16 %v1777, %v1776
        %v1806 = vpack.c.b16 %v1779, %v1778
        %v1807 = vpack.c.b16 %v1781, %v1780
        %v1808 = vpack.c.b16 %v1783, %v1782
        %v1809 = vpack.c.b16 %v1785, %v1784
        %v1810 = vpack.c.b16 %v1787, %v1786
        %v1811 = vpack.c.b16 %v1789, %v1788
        %v1812 = vpack.c.b16 %v1791, %v1790
        %v1813 = vpack.c.b16 %v1793, %v1792
        %v1814 = vpack.c.b16 %v1795, %v1794
        %v1815 = vpack.c.b16 %v1797, %v1796
        %v1816 = vpack.c.b16 %v1799, %v1798
        %v1817 = vpack.c.b16 %v1801, %v1800
        %v1819 = vsel %vm753, %v1802, 0
        %v1822 = vsel %vm753, %v1803, 0
        %v1825 = vsel %vm753, %v1804, 0
        %v1828 = vsel %vm753, %v1805, 0
        %v1831 = vsel %vm753, %v1806, 0
        %v1834 = vsel %vm753, %v1807, 0
        %v1837 = vsel %vm753, %v1808, 0
        %v1840 = vsel %vm753, %v1809, 0
        %v1843 = vsel %vm753, %v1810, 0
        %v1846 = vsel %vm753, %v1811, 0
        %v1849 = vsel %vm753, %v1812, 0
        %v1852 = vsel %vm753, %v1813, 0
        %v1855 = vsel %vm753, %v1814, 0
        %v1858 = vsel %vm753, %v1815, 0
        %v1861 = vsel %vm753, %v1816, 0
        %v1864 = vsel %vm753, %v1817, 0
        %v1867 = vsel %vm802, %v1737, 0
        %1869 = vmatprep.subr.bf16.mxu0 0
        %1870 = vmatpush1.bf16.msra.mxu0 0
        %1871 = vmatprep.subr.bf16.mxu0 0
        %1872 = vmatpush1.bf16.msra.mxu0 0
        %1873 = vmatprep.subr.bf16.mxu0 0
        %1874 = vmatpush1.bf16.msra.mxu0 0
        %1875 = vmatprep.subr.bf16.mxu0 0
        %1876 = vmatpush1.bf16.msra.mxu0 0
        %1877 = vmatprep.subr.bf16.mxu0 0
        %1878 = vmatpush1.bf16.msra.mxu0 0
        %1879 = vmatprep.subr.bf16.mxu0 0
        %1880 = vmatpush1.bf16.msra.mxu0 0
        %1881 = vmatprep.subr.bf16.mxu0 0
        %1882 = vmatpush1.bf16.msra.mxu0 0
        %1883 = vmatprep.subr.bf16.mxu0 0
        %1884 = vmatpush1.bf16.msra.mxu0 %v1867
        %1885 = vmatprep.subr.bf16.mxu0 0
        %1886 = vmatpush2.bf16.msra.mxu0 0
        %1887 = vmatprep.subr.bf16.mxu0 0
        %1888 = vmatpush2.bf16.msra.mxu0 0
        %1889 = vmatprep.subr.bf16.mxu0 0
        %1890 = vmatpush2.bf16.msra.mxu0 0
        %1891 = vmatprep.subr.bf16.mxu0 0
        %1892 = vmatpush2.bf16.msra.mxu0 0
        %1893 = vmatprep.subr.bf16.mxu0 0
        %1894 = vmatpush2.bf16.msra.mxu0 0
        %1895 = vmatprep.subr.bf16.mxu0 0
        %1896 = vmatpush2.bf16.msra.mxu0 0
        %1897 = vmatprep.subr.bf16.mxu0 0
        %1898 = vmatpush2.bf16.msra.mxu0 0
        %1899 = vmatprep.subr.bf16.mxu0 0
        %1900 = vmatpush2.bf16.msra.mxu0 0
        %1901 = vmatprep.mubr.bf16.mxu0 0
        %1902 = vmatmul.mubr.bf16.gmra.mxu0 %v1819
        %v1903 = vpop.f32.mrf.mxu0
        %v1904 = vadd.f32 0.0, %v1903
        %v1905 = vpop.f32.mrf.mxu0
        %v1906 = vpop.f32.mrf.mxu0
        %v1907 = vadd.f32 0.0, %v1906
        %v1908 = vpop.f32.mrf.mxu0
        %1909 = vmatprep.mubr.bf16.mxu0 0
        %1910 = vmatmul.mubr.bf16.gmra.mxu0 %v1822
        %v1911 = vpop.f32.mrf.mxu0
        %v1912 = vadd.f32 0.0, %v1911
        %v1913 = vpop.f32.mrf.mxu0
        %v1914 = vpop.f32.mrf.mxu0
        %v1915 = vadd.f32 0.0, %v1914
        %v1916 = vpop.f32.mrf.mxu0
        %1917 = vmatprep.mubr.bf16.mxu0 0
        %1918 = vmatmul.mubr.bf16.gmra.mxu0 %v1825
        %v1919 = vpop.f32.mrf.mxu0
        %v1920 = vadd.f32 0.0, %v1919
        %v1921 = vpop.f32.mrf.mxu0
        %v1922 = vpop.f32.mrf.mxu0
        %v1923 = vadd.f32 0.0, %v1922
        %v1924 = vpop.f32.mrf.mxu0
        %1925 = vmatprep.mubr.bf16.mxu0 0
        %1926 = vmatmul.mubr.bf16.gmra.mxu0 %v1828
        %v1927 = vpop.f32.mrf.mxu0
        %v1928 = vadd.f32 0.0, %v1927
        %v1929 = vpop.f32.mrf.mxu0
        %v1930 = vpop.f32.mrf.mxu0
        %v1931 = vadd.f32 0.0, %v1930
        %v1932 = vpop.f32.mrf.mxu0
        %1933 = vmatprep.mubr.bf16.mxu0 0
        %1934 = vmatmul.mubr.bf16.gmra.mxu0 %v1831
        %v1935 = vpop.f32.mrf.mxu0
        %v1936 = vadd.f32 0.0, %v1935
        %v1937 = vpop.f32.mrf.mxu0
        %v1938 = vpop.f32.mrf.mxu0
        %v1939 = vadd.f32 0.0, %v1938
        %v1940 = vpop.f32.mrf.mxu0
        %1941 = vmatprep.mubr.bf16.mxu0 0
        %1942 = vmatmul.mubr.bf16.gmra.mxu0 %v1834
        %v1943 = vpop.f32.mrf.mxu0
        %v1944 = vadd.f32 0.0, %v1943
        %v1945 = vpop.f32.mrf.mxu0
        %v1946 = vpop.f32.mrf.mxu0
        %v1947 = vadd.f32 0.0, %v1946
        %v1948 = vpop.f32.mrf.mxu0
        %1949 = vmatprep.mubr.bf16.mxu0 0
        %1950 = vmatmul.mubr.bf16.gmra.mxu0 %v1837
        %v1951 = vpop.f32.mrf.mxu0
        %v1952 = vadd.f32 0.0, %v1951
        %v1953 = vpop.f32.mrf.mxu0
        %v1954 = vpop.f32.mrf.mxu0
        %v1955 = vadd.f32 0.0, %v1954
        %v1956 = vpop.f32.mrf.mxu0
        %1957 = vmatprep.mubr.bf16.mxu0 0
        %1958 = vmatmul.mubr.bf16.gmra.mxu0 %v1840
        %v1959 = vpop.f32.mrf.mxu0
        %v1960 = vadd.f32 0.0, %v1959
        %v1961 = vpop.f32.mrf.mxu0
        %v1962 = vpop.f32.mrf.mxu0
        %v1963 = vadd.f32 0.0, %v1962
        %v1964 = vpop.f32.mrf.mxu0
        %1965 = vmatprep.mubr.bf16.mxu0 0
        %1966 = vmatmul.mubr.bf16.gmra.mxu0 %v1843
        %v1967 = vpop.f32.mrf.mxu0
        %v1968 = vadd.f32 0.0, %v1967
        %v1969 = vpop.f32.mrf.mxu0
        %v1970 = vpop.f32.mrf.mxu0
        %v1971 = vadd.f32 0.0, %v1970
        %v1972 = vpop.f32.mrf.mxu0
        %1973 = vmatprep.mubr.bf16.mxu0 0
        %1974 = vmatmul.mubr.bf16.gmra.mxu0 %v1846
        %v1975 = vpop.f32.mrf.mxu0
        %v1976 = vadd.f32 0.0, %v1975
        %v1977 = vpop.f32.mrf.mxu0
        %v1978 = vpop.f32.mrf.mxu0
        %v1979 = vadd.f32 0.0, %v1978
        %v1980 = vpop.f32.mrf.mxu0
        %1981 = vmatprep.mubr.bf16.mxu0 0
        %1982 = vmatmul.mubr.bf16.gmra.mxu0 %v1849
        %v1983 = vpop.f32.mrf.mxu0
        %v1984 = vadd.f32 0.0, %v1983
        %v1985 = vpop.f32.mrf.mxu0
        %v1986 = vpop.f32.mrf.mxu0
        %v1987 = vadd.f32 0.0, %v1986
        %v1988 = vpop.f32.mrf.mxu0
        %1989 = vmatprep.mubr.bf16.mxu0 0
        %1990 = vmatmul.mubr.bf16.gmra.mxu0 %v1852
        %v1991 = vpop.f32.mrf.mxu0
        %v1992 = vadd.f32 0.0, %v1991
        %v1993 = vpop.f32.mrf.mxu0
        %v1994 = vpop.f32.mrf.mxu0
        %v1995 = vadd.f32 0.0, %v1994
        %v1996 = vpop.f32.mrf.mxu0
        %1997 = vmatprep.mubr.bf16.mxu0 0
        %1998 = vmatmul.mubr.bf16.gmra.mxu0 %v1855
        %v1999 = vpop.f32.mrf.mxu0
        %v2000 = vadd.f32 0.0, %v1999
        %v2001 = vpop.f32.mrf.mxu0
        %v2002 = vpop.f32.mrf.mxu0
        %v2003 = vadd.f32 0.0, %v2002
        %v2004 = vpop.f32.mrf.mxu0
        %2005 = vmatprep.mubr.bf16.mxu0 0
        %2006 = vmatmul.mubr.bf16.gmra.mxu0 %v1858
        %v2007 = vpop.f32.mrf.mxu0
        %v2008 = vadd.f32 0.0, %v2007
        %v2009 = vpop.f32.mrf.mxu0
        %v2010 = vpop.f32.mrf.mxu0
        %v2011 = vadd.f32 0.0, %v2010
        %v2012 = vpop.f32.mrf.mxu0
        %2013 = vmatprep.mubr.bf16.mxu0 0
        %2014 = vmatmul.mubr.bf16.gmra.mxu0 %v1861
        %v2015 = vpop.f32.mrf.mxu0
        %v2016 = vadd.f32 0.0, %v2015
        %v2017 = vpop.f32.mrf.mxu0
        %v2018 = vpop.f32.mrf.mxu0
        %v2019 = vadd.f32 0.0, %v2018
        %v2020 = vpop.f32.mrf.mxu0
        %2021 = vmatprep.mubr.bf16.mxu0 0
        %2022 = vmatmul.mubr.bf16.gmra.mxu0 %v1864
        %v2023 = vpop.f32.mrf.mxu0
        %v2024 = vadd.f32 0.0, %v2023
        %v2025 = vpop.f32.mrf.mxu0
        %v2026 = vpop.f32.mrf.mxu0
        %v2027 = vadd.f32 0.0, %v2026
        %v2028 = vpop.f32.mrf.mxu0
        %2029 = vdwg.mxu0
        %v2030 = vadd.f32 %v1652, %v1904
        %v2031 = vadd.f32 %v1653, %v1907
        %v2032 = vadd.f32 %v1654, %v1912
        %v2033 = vadd.f32 %v1655, %v1915
        %v2034 = vadd.f32 %v1656, %v1920
        %v2035 = vadd.f32 %v1657, %v1923
        %v2036 = vadd.f32 %v1658, %v1928
        %v2037 = vadd.f32 %v1659, %v1931
        %v2038 = vadd.f32 %v1660, %v1936
        %v2039 = vadd.f32 %v1661, %v1939
        %v2040 = vadd.f32 %v1662, %v1944
        %v2041 = vadd.f32 %v1663, %v1947
        %v2042 = vadd.f32 %v1664, %v1952
        %v2043 = vadd.f32 %v1665, %v1955
        %v2044 = vadd.f32 %v1666, %v1960
        %v2045 = vadd.f32 %v1667, %v1963
        %v2046 = vadd.f32 %v1668, %v1968
        %v2047 = vadd.f32 %v1669, %v1971
        %v2048 = vadd.f32 %v1670, %v1976
        %v2049 = vadd.f32 %v1671, %v1979
        %v2050 = vadd.f32 %v1672, %v1984
        %v2051 = vadd.f32 %v1673, %v1987
        %v2052 = vadd.f32 %v1674, %v1992
        %v2053 = vadd.f32 %v1675, %v1995
        %v2054 = vadd.f32 %v1676, %v2000
        %v2055 = vadd.f32 %v1677, %v2003
        %v2056 = vadd.f32 %v1678, %v2008
        %v2057 = vadd.f32 %v1679, %v2011
        %v2058 = vadd.f32 %v1680, %v2016
        %v2059 = vadd.f32 %v1681, %v2019
        %v2060 = vadd.f32 %v1682, %v2024
        %v2061 = vadd.f32 %v1683, %v2027
        %s2062 = scalar_lea.vmem %s1, 8
        %v2063 = vld [vmem:[%s2062] sm:$0x3]
        %v2065 = vshrl.u32 %v1688, 16
        %v2067 = vrot.slane %v2065, 4
        %v2068 = vshll.u32 %v1688, 16
        %v2070 = vrot.slane %v2068, 5
        %v2071 = vor.u32 %v2067, %v2070
        %v2072 = vrot.slane %v2071, 4
        %v2074 = vshll.u32 %v1689, 16
        %v2076 = vrot.slane %v2074, 5
        %v2077 = vsel %vm320, %v2072, %v2076
        %v2078 = vshrl.u32 %v1689, 16
        %v2080 = vrot.slane %v2078, 4
        %v2081 = vor.u32 %v2080, %v2076
        %v2082 = vrot.slane %v2081, 4
        %v2084 = vshll.u32 %v1690, 16
        %v2086 = vrot.slane %v2084, 5
        %v2087 = vsel %vm320, %v2082, %v2086
        %v2089 = vshrl.u32 %v1691, 16
        %v2091 = vrot.slane %v2089, 4
        %v2092 = vshll.u32 %v1691, 16
        %v2094 = vrot.slane %v2092, 5
        %v2095 = vor.u32 %v2091, %v2094
        %v2096 = vrot.slane %v2095, 4
        %v2098 = vshll.u32 %v1692, 16
        %v2100 = vrot.slane %v2098, 5
        %v2101 = vsel %vm320, %v2096, %v2100
        %v2102 = vshrl.u32 %v1692, 16
        %v2104 = vrot.slane %v2102, 4
        %v2105 = vor.u32 %v2104, %v2100
        %v2106 = vrot.slane %v2105, 4
        %v2108 = vshll.u32 %v1693, 16
        %v2110 = vrot.slane %v2108, 5
        %v2111 = vsel %vm320, %v2106, %v2110
        %v2113 = vshrl.u32 %v1694, 16
        %v2115 = vrot.slane %v2113, 4
        %v2116 = vshll.u32 %v1694, 16
        %v2118 = vrot.slane %v2116, 5
        %v2119 = vor.u32 %v2115, %v2118
        %v2120 = vrot.slane %v2119, 4
        %v2122 = vshll.u32 %v1695, 16
        %v2124 = vrot.slane %v2122, 5
        %v2125 = vsel %vm320, %v2120, %v2124
        %v2126 = vshrl.u32 %v1695, 16
        %v2128 = vrot.slane %v2126, 4
        %v2129 = vor.u32 %v2128, %v2124
        %v2130 = vrot.slane %v2129, 4
        %v2132 = vshll.u32 %v1696, 16
        %v2134 = vrot.slane %v2132, 5
        %v2135 = vsel %vm320, %v2130, %v2134
        %v2137 = vshrl.u32 %v1697, 16
        %v2139 = vrot.slane %v2137, 4
        %v2140 = vshll.u32 %v1697, 16
        %v2142 = vrot.slane %v2140, 5
        %v2143 = vor.u32 %v2139, %v2142
        %v2144 = vrot.slane %v2143, 4
        %v2146 = vshll.u32 %v1698, 16
        %v2148 = vrot.slane %v2146, 5
        %v2149 = vsel %vm320, %v2144, %v2148
        %v2150 = vshrl.u32 %v1698, 16
        %v2152 = vrot.slane %v2150, 4
        %v2153 = vor.u32 %v2152, %v2148
        %v2154 = vrot.slane %v2153, 4
        %v2156 = vshll.u32 %v1699, 16
        %v2158 = vrot.slane %v2156, 5
        %v2159 = vsel %vm320, %v2154, %v2158
        %v2161 = vshrl.u32 %v1700, 16
        %v2163 = vrot.slane %v2161, 4
        %v2164 = vshll.u32 %v1700, 16
        %v2166 = vrot.slane %v2164, 5
        %v2167 = vor.u32 %v2163, %v2166
        %v2168 = vrot.slane %v2167, 4
        %v2170 = vshll.u32 %v1701, 16
        %v2172 = vrot.slane %v2170, 5
        %v2173 = vsel %vm320, %v2168, %v2172
        %v2174 = vshrl.u32 %v1701, 16
        %v2176 = vrot.slane %v2174, 4
        %v2177 = vor.u32 %v2176, %v2172
        %v2178 = vrot.slane %v2177, 4
        %v2180 = vshll.u32 %v1702, 16
        %v2182 = vrot.slane %v2180, 5
        %v2183 = vsel %vm320, %v2178, %v2182
        %v2185 = vshrl.u32 %v1703, 16
        %v2187 = vrot.slane %v2185, 4
        %v2188 = vshll.u32 %v1703, 16
        %v2190 = vrot.slane %v2188, 5
        %v2191 = vor.u32 %v2187, %v2190
        %v2192 = vrot.slane %v2191, 4
        %v2194 = vshll.u32 %v1704, 16
        %v2196 = vrot.slane %v2194, 5
        %v2197 = vsel %vm320, %v2192, %v2196
        %v2198 = vshrl.u32 %v1704, 16
        %v2200 = vrot.slane %v2198, 4
        %v2201 = vor.u32 %v2200, %v2196
        %v2202 = vrot.slane %v2201, 4
        %v2204 = vshll.u32 %v1705, 16
        %v2206 = vrot.slane %v2204, 5
        %v2207 = vsel %vm320, %v2202, %v2206
        %v2209 = vshrl.u32 %v1706, 16
        %v2211 = vrot.slane %v2209, 4
        %v2212 = vshll.u32 %v1706, 16
        %v2214 = vrot.slane %v2212, 5
        %v2215 = vor.u32 %v2211, %v2214
        %v2216 = vrot.slane %v2215, 4
        %v2218 = vshll.u32 %v1707, 16
        %v2220 = vrot.slane %v2218, 5
        %v2221 = vsel %vm320, %v2216, %v2220
        %v2222 = vshrl.u32 %v1707, 16
        %v2224 = vrot.slane %v2222, 4
        %v2225 = vor.u32 %v2224, %v2220
        %v2226 = vrot.slane %v2225, 4
        %v2228 = vshll.u32 %v1708, 16
        %v2230 = vrot.slane %v2228, 5
        %v2231 = vsel %vm320, %v2226, %v2230
        %v2233 = vshrl.u32 %v1709, 16
        %v2235 = vrot.slane %v2233, 4
        %v2236 = vshll.u32 %v1709, 16
        %v2238 = vrot.slane %v2236, 5
        %v2239 = vor.u32 %v2235, %v2238
        %v2240 = vrot.slane %v2239, 4
        %v2242 = vshll.u32 %v1710, 16
        %v2244 = vrot.slane %v2242, 5
        %v2245 = vsel %vm320, %v2240, %v2244
        %v2246 = vshrl.u32 %v1710, 16
        %v2248 = vrot.slane %v2246, 4
        %v2249 = vor.u32 %v2248, %v2244
        %v2250 = vrot.slane %v2249, 4
        %v2252 = vshll.u32 %v1711, 16
        %v2254 = vrot.slane %v2252, 5
        %v2255 = vsel %vm320, %v2250, %v2254
        %v2257 = vshrl.u32 %v1712, 16
        %v2259 = vrot.slane %v2257, 4
        %v2260 = vshll.u32 %v1712, 16
        %v2262 = vrot.slane %v2260, 5
        %v2263 = vor.u32 %v2259, %v2262
        %v2264 = vrot.slane %v2263, 4
        %v2266 = vshll.u32 %v1713, 16
        %v2268 = vrot.slane %v2266, 5
        %v2269 = vsel %vm320, %v2264, %v2268
        %v2270 = vshrl.u32 %v1713, 16
        %v2272 = vrot.slane %v2270, 4
        %v2273 = vor.u32 %v2272, %v2268
        %v2274 = vrot.slane %v2273, 4
        %v2276 = vshll.u32 %v1714, 16
        %v2278 = vrot.slane %v2276, 5
        %v2279 = vsel %vm320, %v2274, %v2278
        %v2281 = vshrl.u32 %v1715, 16
        %v2283 = vrot.slane %v2281, 4
        %v2284 = vshll.u32 %v1715, 16
        %v2286 = vrot.slane %v2284, 5
        %v2287 = vor.u32 %v2283, %v2286
        %v2288 = vrot.slane %v2287, 4
        %v2290 = vshll.u32 %v1716, 16
        %v2292 = vrot.slane %v2290, 5
        %v2293 = vsel %vm320, %v2288, %v2292
        %v2294 = vshrl.u32 %v1716, 16
        %v2296 = vrot.slane %v2294, 4
        %v2297 = vor.u32 %v2296, %v2292
        %v2298 = vrot.slane %v2297, 4
        %v2300 = vshll.u32 %v1717, 16
        %v2302 = vrot.slane %v2300, 5
        %v2303 = vsel %vm320, %v2298, %v2302
        %v2305 = vshrl.u32 %v1718, 16
        %v2307 = vrot.slane %v2305, 4
        %v2308 = vshll.u32 %v1718, 16
        %v2310 = vrot.slane %v2308, 5
        %v2311 = vor.u32 %v2307, %v2310
        %v2312 = vrot.slane %v2311, 4
        %v2314 = vshll.u32 %v1719, 16
        %v2316 = vrot.slane %v2314, 5
        %v2317 = vsel %vm320, %v2312, %v2316
        %v2318 = vshrl.u32 %v1719, 16
        %v2320 = vrot.slane %v2318, 4
        %v2321 = vor.u32 %v2320, %v2316
        %v2322 = vrot.slane %v2321, 4
        %v2324 = vshll.u32 %v1720, 16
        %v2326 = vrot.slane %v2324, 5
        %v2327 = vsel %vm320, %v2322, %v2326
        %v2329 = vshrl.u32 %v1721, 16
        %v2331 = vrot.slane %v2329, 4
        %v2332 = vshll.u32 %v1721, 16
        %v2334 = vrot.slane %v2332, 5
        %v2335 = vor.u32 %v2331, %v2334
        %v2336 = vrot.slane %v2335, 4
        %v2338 = vshll.u32 %v1722, 16
        %v2340 = vrot.slane %v2338, 5
        %v2341 = vsel %vm320, %v2336, %v2340
        %v2342 = vshrl.u32 %v1722, 16
        %v2344 = vrot.slane %v2342, 4
        %v2345 = vor.u32 %v2344, %v2340
        %v2346 = vrot.slane %v2345, 4
        %v2348 = vshll.u32 %v1723, 16
        %v2350 = vrot.slane %v2348, 5
        %v2351 = vsel %vm320, %v2346, %v2350
        %v2353 = vshrl.u32 %v1724, 16
        %v2355 = vrot.slane %v2353, 4
        %v2356 = vshll.u32 %v1724, 16
        %v2358 = vrot.slane %v2356, 5
        %v2359 = vor.u32 %v2355, %v2358
        %v2360 = vrot.slane %v2359, 4
        %v2362 = vshll.u32 %v1725, 16
        %v2364 = vrot.slane %v2362, 5
        %v2365 = vsel %vm320, %v2360, %v2364
        %v2366 = vshrl.u32 %v1725, 16
        %v2368 = vrot.slane %v2366, 4
        %v2369 = vor.u32 %v2368, %v2364
        %v2370 = vrot.slane %v2369, 4
        %v2372 = vshll.u32 %v1726, 16
        %v2374 = vrot.slane %v2372, 5
        %v2375 = vsel %vm320, %v2370, %v2374
        %v2377 = vshrl.u32 %v1727, 16
        %v2379 = vrot.slane %v2377, 4
        %v2380 = vshll.u32 %v1727, 16
        %v2382 = vrot.slane %v2380, 5
        %v2383 = vor.u32 %v2379, %v2382
        %v2384 = vrot.slane %v2383, 4
        %v2386 = vshll.u32 %v1728, 16
        %v2388 = vrot.slane %v2386, 5
        %v2389 = vsel %vm320, %v2384, %v2388
        %v2390 = vshrl.u32 %v1728, 16
        %v2392 = vrot.slane %v2390, 4
        %v2393 = vor.u32 %v2392, %v2388
        %v2394 = vrot.slane %v2393, 4
        %v2396 = vshll.u32 %v1729, 16
        %v2398 = vrot.slane %v2396, 5
        %v2399 = vsel %vm320, %v2394, %v2398
        %v2401 = vshrl.u32 %v1730, 16
        %v2403 = vrot.slane %v2401, 4
        %v2404 = vshll.u32 %v1730, 16
        %v2406 = vrot.slane %v2404, 5
        %v2407 = vor.u32 %v2403, %v2406
        %v2408 = vrot.slane %v2407, 4
        %v2410 = vshll.u32 %v1731, 16
        %v2412 = vrot.slane %v2410, 5
        %v2413 = vsel %vm320, %v2408, %v2412
        %v2414 = vshrl.u32 %v1731, 16
        %v2416 = vrot.slane %v2414, 4
        %v2417 = vor.u32 %v2416, %v2412
        %v2418 = vrot.slane %v2417, 4
        %v2420 = vshll.u32 %v1732, 16
        %v2422 = vrot.slane %v2420, 5
        %v2423 = vsel %vm320, %v2418, %v2422
        %v2425 = vshrl.u32 %v1733, 16
        %v2427 = vrot.slane %v2425, 4
        %v2428 = vshll.u32 %v1733, 16
        %v2430 = vrot.slane %v2428, 5
        %v2431 = vor.u32 %v2427, %v2430
        %v2432 = vrot.slane %v2431, 4
        %v2434 = vshll.u32 %v1734, 16
        %v2436 = vrot.slane %v2434, 5
        %v2437 = vsel %vm320, %v2432, %v2436
        %v2438 = vshrl.u32 %v1734, 16
        %v2440 = vrot.slane %v2438, 4
        %v2441 = vor.u32 %v2440, %v2436
        %v2442 = vrot.slane %v2441, 4
        %v2444 = vshll.u32 %v1735, 16
        %v2446 = vrot.slane %v2444, 5
        %v2447 = vsel %vm320, %v2442, %v2446
        %v2448 = vunpack.c.l.b16 %v2077
        %v2449 = vunpack.c.l.b16 %v2087
        %v2450 = vunpack.c.l.b16 %v2101
        %v2451 = vunpack.c.l.b16 %v2111
        %v2452 = vunpack.c.l.b16 %v2125
        %v2453 = vunpack.c.l.b16 %v2135
        %v2454 = vunpack.c.l.b16 %v2149
        %v2455 = vunpack.c.l.b16 %v2159
        %v2456 = vunpack.c.l.b16 %v2173
        %v2457 = vunpack.c.l.b16 %v2183
        %v2458 = vunpack.c.l.b16 %v2197
        %v2459 = vunpack.c.l.b16 %v2207
        %v2460 = vunpack.c.l.b16 %v2221
        %v2461 = vunpack.c.l.b16 %v2231
        %v2462 = vunpack.c.l.b16 %v2245
        %v2463 = vunpack.c.l.b16 %v2255
        %v2464 = vunpack.c.l.b16 %v2269
        %v2465 = vunpack.c.l.b16 %v2279
        %v2466 = vunpack.c.l.b16 %v2293
        %v2467 = vunpack.c.l.b16 %v2303
        %v2468 = vunpack.c.l.b16 %v2317
        %v2469 = vunpack.c.l.b16 %v2327
        %v2470 = vunpack.c.l.b16 %v2341
        %v2471 = vunpack.c.l.b16 %v2351
        %v2472 = vunpack.c.l.b16 %v2365
        %v2473 = vunpack.c.l.b16 %v2375
        %v2474 = vunpack.c.l.b16 %v2389
        %v2475 = vunpack.c.l.b16 %v2399
        %v2476 = vunpack.c.l.b16 %v2413
        %v2477 = vunpack.c.l.b16 %v2423
        %v2478 = vunpack.c.l.b16 %v2437
        %v2479 = vunpack.c.l.b16 %v2447
        %v2480 = vpack.c.b16 %v2449, %v2448
        %v2481 = vpack.c.b16 %v2451, %v2450
        %v2482 = vpack.c.b16 %v2453, %v2452
        %v2483 = vpack.c.b16 %v2455, %v2454
        %v2484 = vpack.c.b16 %v2457, %v2456
        %v2485 = vpack.c.b16 %v2459, %v2458
        %v2486 = vpack.c.b16 %v2461, %v2460
        %v2487 = vpack.c.b16 %v2463, %v2462
        %v2488 = vpack.c.b16 %v2465, %v2464
        %v2489 = vpack.c.b16 %v2467, %v2466
        %v2490 = vpack.c.b16 %v2469, %v2468
        %v2491 = vpack.c.b16 %v2471, %v2470
        %v2492 = vpack.c.b16 %v2473, %v2472
        %v2493 = vpack.c.b16 %v2475, %v2474
        %v2494 = vpack.c.b16 %v2477, %v2476
        %v2495 = vpack.c.b16 %v2479, %v2478
        %v2497 = vsel %vm753, %v2480, 0
        %v2500 = vsel %vm753, %v2481, 0
        %v2503 = vsel %vm753, %v2482, 0
        %v2506 = vsel %vm753, %v2483, 0
        %v2509 = vsel %vm753, %v2484, 0
        %v2512 = vsel %vm753, %v2485, 0
        %v2515 = vsel %vm753, %v2486, 0
        %v2518 = vsel %vm753, %v2487, 0
        %v2521 = vsel %vm753, %v2488, 0
        %v2524 = vsel %vm753, %v2489, 0
        %v2527 = vsel %vm753, %v2490, 0
        %v2530 = vsel %vm753, %v2491, 0
        %v2533 = vsel %vm753, %v2492, 0
        %v2536 = vsel %vm753, %v2493, 0
        %v2539 = vsel %vm753, %v2494, 0
        %v2542 = vsel %vm753, %v2495, 0
        %v2545 = vsel %vm802, %v2063, 0
        %2547 = vmatprep.subr.bf16.mxu0 0
        %2548 = vmatpush1.bf16.msra.mxu0 0
        %2549 = vmatprep.subr.bf16.mxu0 0
        %2550 = vmatpush1.bf16.msra.mxu0 0
        %2551 = vmatprep.subr.bf16.mxu0 0
        %2552 = vmatpush1.bf16.msra.mxu0 0
        %2553 = vmatprep.subr.bf16.mxu0 0
        %2554 = vmatpush1.bf16.msra.mxu0 0
        %2555 = vmatprep.subr.bf16.mxu0 0
        %2556 = vmatpush1.bf16.msra.mxu0 0
        %2557 = vmatprep.subr.bf16.mxu0 0
        %2558 = vmatpush1.bf16.msra.mxu0 0
        %2559 = vmatprep.subr.bf16.mxu0 0
        %2560 = vmatpush1.bf16.msra.mxu0 0
        %2561 = vmatprep.subr.bf16.mxu0 0
        %2562 = vmatpush1.bf16.msra.mxu0 %v2545
        %2563 = vmatprep.subr.bf16.mxu0 0
        %2564 = vmatpush2.bf16.msra.mxu0 0
        %2565 = vmatprep.subr.bf16.mxu0 0
        %2566 = vmatpush2.bf16.msra.mxu0 0
        %2567 = vmatprep.subr.bf16.mxu0 0
        %2568 = vmatpush2.bf16.msra.mxu0 0
        %2569 = vmatprep.subr.bf16.mxu0 0
        %2570 = vmatpush2.bf16.msra.mxu0 0
        %2571 = vmatprep.subr.bf16.mxu0 0
        %2572 = vmatpush2.bf16.msra.mxu0 0
        %2573 = vmatprep.subr.bf16.mxu0 0
        %2574 = vmatpush2.bf16.msra.mxu0 0
        %2575 = vmatprep.subr.bf16.mxu0 0
        %2576 = vmatpush2.bf16.msra.mxu0 0
        %2577 = vmatprep.subr.bf16.mxu0 0
        %2578 = vmatpush2.bf16.msra.mxu0 0
        %2579 = vmatprep.mubr.bf16.mxu0 0
        %2580 = vmatmul.mubr.bf16.gmra.mxu0 %v2497
        %v2581 = vpop.f32.mrf.mxu0
        %v2582 = vadd.f32 0.0, %v2581
        %v2583 = vpop.f32.mrf.mxu0
        %v2584 = vpop.f32.mrf.mxu0
        %v2585 = vadd.f32 0.0, %v2584
        %v2586 = vpop.f32.mrf.mxu0
        %2587 = vmatprep.mubr.bf16.mxu0 0
        %2588 = vmatmul.mubr.bf16.gmra.mxu0 %v2500
        %v2589 = vpop.f32.mrf.mxu0
        %v2590 = vadd.f32 0.0, %v2589
        %v2591 = vpop.f32.mrf.mxu0
        %v2592 = vpop.f32.mrf.mxu0
        %v2593 = vadd.f32 0.0, %v2592
        %v2594 = vpop.f32.mrf.mxu0
        %2595 = vmatprep.mubr.bf16.mxu0 0
        %2596 = vmatmul.mubr.bf16.gmra.mxu0 %v2503
        %v2597 = vpop.f32.mrf.mxu0
        %v2598 = vadd.f32 0.0, %v2597
        %v2599 = vpop.f32.mrf.mxu0
        %v2600 = vpop.f32.mrf.mxu0
        %v2601 = vadd.f32 0.0, %v2600
        %v2602 = vpop.f32.mrf.mxu0
        %2603 = vmatprep.mubr.bf16.mxu0 0
        %2604 = vmatmul.mubr.bf16.gmra.mxu0 %v2506
        %v2605 = vpop.f32.mrf.mxu0
        %v2606 = vadd.f32 0.0, %v2605
        %v2607 = vpop.f32.mrf.mxu0
        %v2608 = vpop.f32.mrf.mxu0
        %v2609 = vadd.f32 0.0, %v2608
        %v2610 = vpop.f32.mrf.mxu0
        %2611 = vmatprep.mubr.bf16.mxu0 0
        %2612 = vmatmul.mubr.bf16.gmra.mxu0 %v2509
        %v2613 = vpop.f32.mrf.mxu0
        %v2614 = vadd.f32 0.0, %v2613
        %v2615 = vpop.f32.mrf.mxu0
        %v2616 = vpop.f32.mrf.mxu0
        %v2617 = vadd.f32 0.0, %v2616
        %v2618 = vpop.f32.mrf.mxu0
        %2619 = vmatprep.mubr.bf16.mxu0 0
        %2620 = vmatmul.mubr.bf16.gmra.mxu0 %v2512
        %v2621 = vpop.f32.mrf.mxu0
        %v2622 = vadd.f32 0.0, %v2621
        %v2623 = vpop.f32.mrf.mxu0
        %v2624 = vpop.f32.mrf.mxu0
        %v2625 = vadd.f32 0.0, %v2624
        %v2626 = vpop.f32.mrf.mxu0
        %2627 = vmatprep.mubr.bf16.mxu0 0
        %2628 = vmatmul.mubr.bf16.gmra.mxu0 %v2515
        %v2629 = vpop.f32.mrf.mxu0
        %v2630 = vadd.f32 0.0, %v2629
        %v2631 = vpop.f32.mrf.mxu0
        %v2632 = vpop.f32.mrf.mxu0
        %v2633 = vadd.f32 0.0, %v2632
        %v2634 = vpop.f32.mrf.mxu0
        %2635 = vmatprep.mubr.bf16.mxu0 0
        %2636 = vmatmul.mubr.bf16.gmra.mxu0 %v2518
        %v2637 = vpop.f32.mrf.mxu0
        %v2638 = vadd.f32 0.0, %v2637
        %v2639 = vpop.f32.mrf.mxu0
        %v2640 = vpop.f32.mrf.mxu0
        %v2641 = vadd.f32 0.0, %v2640
        %v2642 = vpop.f32.mrf.mxu0
        %2643 = vmatprep.mubr.bf16.mxu0 0
        %2644 = vmatmul.mubr.bf16.gmra.mxu0 %v2521
        %v2645 = vpop.f32.mrf.mxu0
        %v2646 = vadd.f32 0.0, %v2645
        %v2647 = vpop.f32.mrf.mxu0
        %v2648 = vpop.f32.mrf.mxu0
        %v2649 = vadd.f32 0.0, %v2648
        %v2650 = vpop.f32.mrf.mxu0
        %2651 = vmatprep.mubr.bf16.mxu0 0
        %2652 = vmatmul.mubr.bf16.gmra.mxu0 %v2524
        %v2653 = vpop.f32.mrf.mxu0
        %v2654 = vadd.f32 0.0, %v2653
        %v2655 = vpop.f32.mrf.mxu0
        %v2656 = vpop.f32.mrf.mxu0
        %v2657 = vadd.f32 0.0, %v2656
        %v2658 = vpop.f32.mrf.mxu0
        %2659 = vmatprep.mubr.bf16.mxu0 0
        %2660 = vmatmul.mubr.bf16.gmra.mxu0 %v2527
        %v2661 = vpop.f32.mrf.mxu0
        %v2662 = vadd.f32 0.0, %v2661
        %v2663 = vpop.f32.mrf.mxu0
        %v2664 = vpop.f32.mrf.mxu0
        %v2665 = vadd.f32 0.0, %v2664
        %v2666 = vpop.f32.mrf.mxu0
        %2667 = vmatprep.mubr.bf16.mxu0 0
        %2668 = vmatmul.mubr.bf16.gmra.mxu0 %v2530
        %v2669 = vpop.f32.mrf.mxu0
        %v2670 = vadd.f32 0.0, %v2669
        %v2671 = vpop.f32.mrf.mxu0
        %v2672 = vpop.f32.mrf.mxu0
        %v2673 = vadd.f32 0.0, %v2672
        %v2674 = vpop.f32.mrf.mxu0
        %2675 = vmatprep.mubr.bf16.mxu0 0
        %2676 = vmatmul.mubr.bf16.gmra.mxu0 %v2533
        %v2677 = vpop.f32.mrf.mxu0
        %v2678 = vadd.f32 0.0, %v2677
        %v2679 = vpop.f32.mrf.mxu0
        %v2680 = vpop.f32.mrf.mxu0
        %v2681 = vadd.f32 0.0, %v2680
        %v2682 = vpop.f32.mrf.mxu0
        %2683 = vmatprep.mubr.bf16.mxu0 0
        %2684 = vmatmul.mubr.bf16.gmra.mxu0 %v2536
        %v2685 = vpop.f32.mrf.mxu0
        %v2686 = vadd.f32 0.0, %v2685
        %v2687 = vpop.f32.mrf.mxu0
        %v2688 = vpop.f32.mrf.mxu0
        %v2689 = vadd.f32 0.0, %v2688
        %v2690 = vpop.f32.mrf.mxu0
        %2691 = vmatprep.mubr.bf16.mxu0 0
        %2692 = vmatmul.mubr.bf16.gmra.mxu0 %v2539
        %v2693 = vpop.f32.mrf.mxu0
        %v2694 = vadd.f32 0.0, %v2693
        %v2695 = vpop.f32.mrf.mxu0
        %v2696 = vpop.f32.mrf.mxu0
        %v2697 = vadd.f32 0.0, %v2696
        %v2698 = vpop.f32.mrf.mxu0
        %2699 = vmatprep.mubr.bf16.mxu0 0
        %2700 = vmatmul.mubr.bf16.gmra.mxu0 %v2542
        %v2701 = vpop.f32.mrf.mxu0
        %v2702 = vadd.f32 0.0, %v2701
        %v2703 = vpop.f32.mrf.mxu0
        %v2704 = vpop.f32.mrf.mxu0
        %v2705 = vadd.f32 0.0, %v2704
        %v2706 = vpop.f32.mrf.mxu0
        %2707 = vdwg.mxu0
        %v2708 = vadd.f32 %v2030, %v2582
        %v2709 = vadd.f32 %v2031, %v2585
        %v2710 = vadd.f32 %v2032, %v2590
        %v2711 = vadd.f32 %v2033, %v2593
        %v2712 = vadd.f32 %v2034, %v2598
        %v2713 = vadd.f32 %v2035, %v2601
        %v2714 = vadd.f32 %v2036, %v2606
        %v2715 = vadd.f32 %v2037, %v2609
        %v2716 = vadd.f32 %v2038, %v2614
        %v2717 = vadd.f32 %v2039, %v2617
        %v2718 = vadd.f32 %v2040, %v2622
        %v2719 = vadd.f32 %v2041, %v2625
        %v2720 = vadd.f32 %v2042, %v2630
        %v2721 = vadd.f32 %v2043, %v2633
        %v2722 = vadd.f32 %v2044, %v2638
        %v2723 = vadd.f32 %v2045, %v2641
        %v2724 = vadd.f32 %v2046, %v2646
        %v2725 = vadd.f32 %v2047, %v2649
        %v2726 = vadd.f32 %v2048, %v2654
        %v2727 = vadd.f32 %v2049, %v2657
        %v2728 = vadd.f32 %v2050, %v2662
        %v2729 = vadd.f32 %v2051, %v2665
        %v2730 = vadd.f32 %v2052, %v2670
        %v2731 = vadd.f32 %v2053, %v2673
        %v2732 = vadd.f32 %v2054, %v2678
        %v2733 = vadd.f32 %v2055, %v2681
        %v2734 = vadd.f32 %v2056, %v2686
        %v2735 = vadd.f32 %v2057, %v2689
        %v2736 = vadd.f32 %v2058, %v2694
        %v2737 = vadd.f32 %v2059, %v2697
        %v2738 = vadd.f32 %v2060, %v2702
        %v2739 = vadd.f32 %v2061, %v2705
        %s2740 = scalar_lea.vmem %s1, 10
        %v2741 = vld [vmem:[%s2740] sm:$0x3]
        %v2758 = vrot.slane %v1688, 5
        %v2759 = vrot.slane %v2758, 4
        %v2760 = vrot.slane %v1689, 5
        %v2761 = vsel %vm1279, %v2759, %v2760
        %v2762 = vrot.slane %v2760, 4
        %v2763 = vrot.slane %v1690, 5
        %v2764 = vsel %vm1279, %v2762, %v2763
        %v2765 = vrot.slane %v1691, 5
        %v2766 = vrot.slane %v2765, 4
        %v2767 = vrot.slane %v1692, 5
        %v2768 = vsel %vm1279, %v2766, %v2767
        %v2769 = vrot.slane %v2767, 4
        %v2770 = vrot.slane %v1693, 5
        %v2771 = vsel %vm1279, %v2769, %v2770
        %v2772 = vrot.slane %v1694, 5
        %v2773 = vrot.slane %v2772, 4
        %v2774 = vrot.slane %v1695, 5
        %v2775 = vsel %vm1279, %v2773, %v2774
        %v2776 = vrot.slane %v2774, 4
        %v2777 = vrot.slane %v1696, 5
        %v2778 = vsel %vm1279, %v2776, %v2777
        %v2779 = vrot.slane %v1697, 5
        %v2780 = vrot.slane %v2779, 4
        %v2781 = vrot.slane %v1698, 5
        %v2782 = vsel %vm1279, %v2780, %v2781
        %v2783 = vrot.slane %v2781, 4
        %v2784 = vrot.slane %v1699, 5
        %v2785 = vsel %vm1279, %v2783, %v2784
        %v2786 = vrot.slane %v1700, 5
        %v2787 = vrot.slane %v2786, 4
        %v2788 = vrot.slane %v1701, 5
        %v2789 = vsel %vm1279, %v2787, %v2788
        %v2790 = vrot.slane %v2788, 4
        %v2791 = vrot.slane %v1702, 5
        %v2792 = vsel %vm1279, %v2790, %v2791
        %v2793 = vrot.slane %v1703, 5
        %v2794 = vrot.slane %v2793, 4
        %v2795 = vrot.slane %v1704, 5
        %v2796 = vsel %vm1279, %v2794, %v2795
        %v2797 = vrot.slane %v2795, 4
        %v2798 = vrot.slane %v1705, 5
        %v2799 = vsel %vm1279, %v2797, %v2798
        %v2800 = vrot.slane %v1706, 5
        %v2801 = vrot.slane %v2800, 4
        %v2802 = vrot.slane %v1707, 5
        %v2803 = vsel %vm1279, %v2801, %v2802
        %v2804 = vrot.slane %v2802, 4
        %v2805 = vrot.slane %v1708, 5
        %v2806 = vsel %vm1279, %v2804, %v2805
        %v2807 = vrot.slane %v1709, 5
        %v2808 = vrot.slane %v2807, 4
        %v2809 = vrot.slane %v1710, 5
        %v2810 = vsel %vm1279, %v2808, %v2809
        %v2811 = vrot.slane %v2809, 4
        %v2812 = vrot.slane %v1711, 5
        %v2813 = vsel %vm1279, %v2811, %v2812
        %v2814 = vrot.slane %v1712, 5
        %v2815 = vrot.slane %v2814, 4
        %v2816 = vrot.slane %v1713, 5
        %v2817 = vsel %vm1279, %v2815, %v2816
        %v2818 = vrot.slane %v2816, 4
        %v2819 = vrot.slane %v1714, 5
        %v2820 = vsel %vm1279, %v2818, %v2819
        %v2821 = vrot.slane %v1715, 5
        %v2822 = vrot.slane %v2821, 4
        %v2823 = vrot.slane %v1716, 5
        %v2824 = vsel %vm1279, %v2822, %v2823
        %v2825 = vrot.slane %v2823, 4
        %v2826 = vrot.slane %v1717, 5
        %v2827 = vsel %vm1279, %v2825, %v2826
        %v2828 = vrot.slane %v1718, 5
        %v2829 = vrot.slane %v2828, 4
        %v2830 = vrot.slane %v1719, 5
        %v2831 = vsel %vm1279, %v2829, %v2830
        %v2832 = vrot.slane %v2830, 4
        %v2833 = vrot.slane %v1720, 5
        %v2834 = vsel %vm1279, %v2832, %v2833
        %v2835 = vrot.slane %v1721, 5
        %v2836 = vrot.slane %v2835, 4
        %v2837 = vrot.slane %v1722, 5
        %v2838 = vsel %vm1279, %v2836, %v2837
        %v2839 = vrot.slane %v2837, 4
        %v2840 = vrot.slane %v1723, 5
        %v2841 = vsel %vm1279, %v2839, %v2840
        %v2842 = vrot.slane %v1724, 5
        %v2843 = vrot.slane %v2842, 4
        %v2844 = vrot.slane %v1725, 5
        %v2845 = vsel %vm1279, %v2843, %v2844
        %v2846 = vrot.slane %v2844, 4
        %v2847 = vrot.slane %v1726, 5
        %v2848 = vsel %vm1279, %v2846, %v2847
        %v2849 = vrot.slane %v1727, 5
        %v2850 = vrot.slane %v2849, 4
        %v2851 = vrot.slane %v1728, 5
        %v2852 = vsel %vm1279, %v2850, %v2851
        %v2853 = vrot.slane %v2851, 4
        %v2854 = vrot.slane %v1729, 5
        %v2855 = vsel %vm1279, %v2853, %v2854
        %v2856 = vrot.slane %v1730, 5
        %v2857 = vrot.slane %v2856, 4
        %v2858 = vrot.slane %v1731, 5
        %v2859 = vsel %vm1279, %v2857, %v2858
        %v2860 = vrot.slane %v2858, 4
        %v2861 = vrot.slane %v1732, 5
        %v2862 = vsel %vm1279, %v2860, %v2861
        %v2863 = vrot.slane %v1733, 5
        %v2864 = vrot.slane %v2863, 4
        %v2865 = vrot.slane %v1734, 5
        %v2866 = vsel %vm1279, %v2864, %v2865
        %v2867 = vrot.slane %v2865, 4
        %v2868 = vrot.slane %v1735, 5
        %v2869 = vsel %vm1279, %v2867, %v2868
        %v2870 = vunpack.c.l.b16 %v2761
        %v2871 = vunpack.c.l.b16 %v2764
        %v2872 = vunpack.c.l.b16 %v2768
        %v2873 = vunpack.c.l.b16 %v2771
        %v2874 = vunpack.c.l.b16 %v2775
        %v2875 = vunpack.c.l.b16 %v2778
        %v2876 = vunpack.c.l.b16 %v2782
        %v2877 = vunpack.c.l.b16 %v2785
        %v2878 = vunpack.c.l.b16 %v2789
        %v2879 = vunpack.c.l.b16 %v2792
        %v2880 = vunpack.c.l.b16 %v2796
        %v2881 = vunpack.c.l.b16 %v2799
        %v2882 = vunpack.c.l.b16 %v2803
        %v2883 = vunpack.c.l.b16 %v2806
        %v2884 = vunpack.c.l.b16 %v2810
        %v2885 = vunpack.c.l.b16 %v2813
        %v2886 = vunpack.c.l.b16 %v2817
        %v2887 = vunpack.c.l.b16 %v2820
        %v2888 = vunpack.c.l.b16 %v2824
        %v2889 = vunpack.c.l.b16 %v2827
        %v2890 = vunpack.c.l.b16 %v2831
        %v2891 = vunpack.c.l.b16 %v2834
        %v2892 = vunpack.c.l.b16 %v2838
        %v2893 = vunpack.c.l.b16 %v2841
        %v2894 = vunpack.c.l.b16 %v2845
        %v2895 = vunpack.c.l.b16 %v2848
        %v2896 = vunpack.c.l.b16 %v2852
        %v2897 = vunpack.c.l.b16 %v2855
        %v2898 = vunpack.c.l.b16 %v2859
        %v2899 = vunpack.c.l.b16 %v2862
        %v2900 = vunpack.c.l.b16 %v2866
        %v2901 = vunpack.c.l.b16 %v2869
        %v2902 = vpack.c.b16 %v2871, %v2870
        %v2903 = vpack.c.b16 %v2873, %v2872
        %v2904 = vpack.c.b16 %v2875, %v2874
        %v2905 = vpack.c.b16 %v2877, %v2876
        %v2906 = vpack.c.b16 %v2879, %v2878
        %v2907 = vpack.c.b16 %v2881, %v2880
        %v2908 = vpack.c.b16 %v2883, %v2882
        %v2909 = vpack.c.b16 %v2885, %v2884
        %v2910 = vpack.c.b16 %v2887, %v2886
        %v2911 = vpack.c.b16 %v2889, %v2888
        %v2912 = vpack.c.b16 %v2891, %v2890
        %v2913 = vpack.c.b16 %v2893, %v2892
        %v2914 = vpack.c.b16 %v2895, %v2894
        %v2915 = vpack.c.b16 %v2897, %v2896
        %v2916 = vpack.c.b16 %v2899, %v2898
        %v2917 = vpack.c.b16 %v2901, %v2900
        %v2919 = vsel %vm753, %v2902, 0
        %v2922 = vsel %vm753, %v2903, 0
        %v2925 = vsel %vm753, %v2904, 0
        %v2928 = vsel %vm753, %v2905, 0
        %v2931 = vsel %vm753, %v2906, 0
        %v2934 = vsel %vm753, %v2907, 0
        %v2937 = vsel %vm753, %v2908, 0
        %v2940 = vsel %vm753, %v2909, 0
        %v2943 = vsel %vm753, %v2910, 0
        %v2946 = vsel %vm753, %v2911, 0
        %v2949 = vsel %vm753, %v2912, 0
        %v2952 = vsel %vm753, %v2913, 0
        %v2955 = vsel %vm753, %v2914, 0
        %v2958 = vsel %vm753, %v2915, 0
        %v2961 = vsel %vm753, %v2916, 0
        %v2964 = vsel %vm753, %v2917, 0
        %v2967 = vsel %vm802, %v2741, 0
        %2969 = vmatprep.subr.bf16.mxu0 0
        %2970 = vmatpush1.bf16.msra.mxu0 0
        %2971 = vmatprep.subr.bf16.mxu0 0
        %2972 = vmatpush1.bf16.msra.mxu0 0
        %2973 = vmatprep.subr.bf16.mxu0 0
        %2974 = vmatpush1.bf16.msra.mxu0 0
        %2975 = vmatprep.subr.bf16.mxu0 0
        %2976 = vmatpush1.bf16.msra.mxu0 0
        %2977 = vmatprep.subr.bf16.mxu0 0
        %2978 = vmatpush1.bf16.msra.mxu0 0
        %2979 = vmatprep.subr.bf16.mxu0 0
        %2980 = vmatpush1.bf16.msra.mxu0 0
        %2981 = vmatprep.subr.bf16.mxu0 0
        %2982 = vmatpush1.bf16.msra.mxu0 0
        %2983 = vmatprep.subr.bf16.mxu0 0
        %2984 = vmatpush1.bf16.msra.mxu0 %v2967
        %2985 = vmatprep.subr.bf16.mxu0 0
        %2986 = vmatpush2.bf16.msra.mxu0 0
        %2987 = vmatprep.subr.bf16.mxu0 0
        %2988 = vmatpush2.bf16.msra.mxu0 0
        %2989 = vmatprep.subr.bf16.mxu0 0
        %2990 = vmatpush2.bf16.msra.mxu0 0
        %2991 = vmatprep.subr.bf16.mxu0 0
        %2992 = vmatpush2.bf16.msra.mxu0 0
        %2993 = vmatprep.subr.bf16.mxu0 0
        %2994 = vmatpush2.bf16.msra.mxu0 0
        %2995 = vmatprep.subr.bf16.mxu0 0
        %2996 = vmatpush2.bf16.msra.mxu0 0
        %2997 = vmatprep.subr.bf16.mxu0 0
        %2998 = vmatpush2.bf16.msra.mxu0 0
        %2999 = vmatprep.subr.bf16.mxu0 0
        %3000 = vmatpush2.bf16.msra.mxu0 0
        %3001 = vmatprep.mubr.bf16.mxu0 0
        %3002 = vmatmul.mubr.bf16.gmra.mxu0 %v2919
        %v3003 = vpop.f32.mrf.mxu0
        %v3004 = vadd.f32 0.0, %v3003
        %v3005 = vpop.f32.mrf.mxu0
        %v3006 = vpop.f32.mrf.mxu0
        %v3007 = vadd.f32 0.0, %v3006
        %v3008 = vpop.f32.mrf.mxu0
        %3009 = vmatprep.mubr.bf16.mxu0 0
        %3010 = vmatmul.mubr.bf16.gmra.mxu0 %v2922
        %v3011 = vpop.f32.mrf.mxu0
        %v3012 = vadd.f32 0.0, %v3011
        %v3013 = vpop.f32.mrf.mxu0
        %v3014 = vpop.f32.mrf.mxu0
        %v3015 = vadd.f32 0.0, %v3014
        %v3016 = vpop.f32.mrf.mxu0
        %3017 = vmatprep.mubr.bf16.mxu0 0
        %3018 = vmatmul.mubr.bf16.gmra.mxu0 %v2925
        %v3019 = vpop.f32.mrf.mxu0
        %v3020 = vadd.f32 0.0, %v3019
        %v3021 = vpop.f32.mrf.mxu0
        %v3022 = vpop.f32.mrf.mxu0
        %v3023 = vadd.f32 0.0, %v3022
        %v3024 = vpop.f32.mrf.mxu0
        %3025 = vmatprep.mubr.bf16.mxu0 0
        %3026 = vmatmul.mubr.bf16.gmra.mxu0 %v2928
        %v3027 = vpop.f32.mrf.mxu0
        %v3028 = vadd.f32 0.0, %v3027
        %v3029 = vpop.f32.mrf.mxu0
        %v3030 = vpop.f32.mrf.mxu0
        %v3031 = vadd.f32 0.0, %v3030
        %v3032 = vpop.f32.mrf.mxu0
        %3033 = vmatprep.mubr.bf16.mxu0 0
        %3034 = vmatmul.mubr.bf16.gmra.mxu0 %v2931
        %v3035 = vpop.f32.mrf.mxu0
        %v3036 = vadd.f32 0.0, %v3035
        %v3037 = vpop.f32.mrf.mxu0
        %v3038 = vpop.f32.mrf.mxu0
        %v3039 = vadd.f32 0.0, %v3038
        %v3040 = vpop.f32.mrf.mxu0
        %3041 = vmatprep.mubr.bf16.mxu0 0
        %3042 = vmatmul.mubr.bf16.gmra.mxu0 %v2934
        %v3043 = vpop.f32.mrf.mxu0
        %v3044 = vadd.f32 0.0, %v3043
        %v3045 = vpop.f32.mrf.mxu0
        %v3046 = vpop.f32.mrf.mxu0
        %v3047 = vadd.f32 0.0, %v3046
        %v3048 = vpop.f32.mrf.mxu0
        %3049 = vmatprep.mubr.bf16.mxu0 0
        %3050 = vmatmul.mubr.bf16.gmra.mxu0 %v2937
        %v3051 = vpop.f32.mrf.mxu0
        %v3052 = vadd.f32 0.0, %v3051
        %v3053 = vpop.f32.mrf.mxu0
        %v3054 = vpop.f32.mrf.mxu0
        %v3055 = vadd.f32 0.0, %v3054
        %v3056 = vpop.f32.mrf.mxu0
        %3057 = vmatprep.mubr.bf16.mxu0 0
        %3058 = vmatmul.mubr.bf16.gmra.mxu0 %v2940
        %v3059 = vpop.f32.mrf.mxu0
        %v3060 = vadd.f32 0.0, %v3059
        %v3061 = vpop.f32.mrf.mxu0
        %v3062 = vpop.f32.mrf.mxu0
        %v3063 = vadd.f32 0.0, %v3062
        %v3064 = vpop.f32.mrf.mxu0
        %3065 = vmatprep.mubr.bf16.mxu0 0
        %3066 = vmatmul.mubr.bf16.gmra.mxu0 %v2943
        %v3067 = vpop.f32.mrf.mxu0
        %v3068 = vadd.f32 0.0, %v3067
        %v3069 = vpop.f32.mrf.mxu0
        %v3070 = vpop.f32.mrf.mxu0
        %v3071 = vadd.f32 0.0, %v3070
        %v3072 = vpop.f32.mrf.mxu0
        %3073 = vmatprep.mubr.bf16.mxu0 0
        %3074 = vmatmul.mubr.bf16.gmra.mxu0 %v2946
        %v3075 = vpop.f32.mrf.mxu0
        %v3076 = vadd.f32 0.0, %v3075
        %v3077 = vpop.f32.mrf.mxu0
        %v3078 = vpop.f32.mrf.mxu0
        %v3079 = vadd.f32 0.0, %v3078
        %v3080 = vpop.f32.mrf.mxu0
        %3081 = vmatprep.mubr.bf16.mxu0 0
        %3082 = vmatmul.mubr.bf16.gmra.mxu0 %v2949
        %v3083 = vpop.f32.mrf.mxu0
        %v3084 = vadd.f32 0.0, %v3083
        %v3085 = vpop.f32.mrf.mxu0
        %v3086 = vpop.f32.mrf.mxu0
        %v3087 = vadd.f32 0.0, %v3086
        %v3088 = vpop.f32.mrf.mxu0
        %3089 = vmatprep.mubr.bf16.mxu0 0
        %3090 = vmatmul.mubr.bf16.gmra.mxu0 %v2952
        %v3091 = vpop.f32.mrf.mxu0
        %v3092 = vadd.f32 0.0, %v3091
        %v3093 = vpop.f32.mrf.mxu0
        %v3094 = vpop.f32.mrf.mxu0
        %v3095 = vadd.f32 0.0, %v3094
        %v3096 = vpop.f32.mrf.mxu0
        %3097 = vmatprep.mubr.bf16.mxu0 0
        %3098 = vmatmul.mubr.bf16.gmra.mxu0 %v2955
        %v3099 = vpop.f32.mrf.mxu0
        %v3100 = vadd.f32 0.0, %v3099
        %v3101 = vpop.f32.mrf.mxu0
        %v3102 = vpop.f32.mrf.mxu0
        %v3103 = vadd.f32 0.0, %v3102
        %v3104 = vpop.f32.mrf.mxu0
        %3105 = vmatprep.mubr.bf16.mxu0 0
        %3106 = vmatmul.mubr.bf16.gmra.mxu0 %v2958
        %v3107 = vpop.f32.mrf.mxu0
        %v3108 = vadd.f32 0.0, %v3107
        %v3109 = vpop.f32.mrf.mxu0
        %v3110 = vpop.f32.mrf.mxu0
        %v3111 = vadd.f32 0.0, %v3110
        %v3112 = vpop.f32.mrf.mxu0
        %3113 = vmatprep.mubr.bf16.mxu0 0
        %3114 = vmatmul.mubr.bf16.gmra.mxu0 %v2961
        %v3115 = vpop.f32.mrf.mxu0
        %v3116 = vadd.f32 0.0, %v3115
        %v3117 = vpop.f32.mrf.mxu0
        %v3118 = vpop.f32.mrf.mxu0
        %v3119 = vadd.f32 0.0, %v3118
        %v3120 = vpop.f32.mrf.mxu0
        %3121 = vmatprep.mubr.bf16.mxu0 0
        %3122 = vmatmul.mubr.bf16.gmra.mxu0 %v2964
        %v3123 = vpop.f32.mrf.mxu0
        %v3124 = vadd.f32 0.0, %v3123
        %v3125 = vpop.f32.mrf.mxu0
        %v3126 = vpop.f32.mrf.mxu0
        %v3127 = vadd.f32 0.0, %v3126
        %v3128 = vpop.f32.mrf.mxu0
        %3129 = vdwg.mxu0
        %v3130 = vadd.f32 %v2708, %v3004
        %v3131 = vadd.f32 %v2709, %v3007
        %v3132 = vadd.f32 %v2710, %v3012
        %v3133 = vadd.f32 %v2711, %v3015
        %v3134 = vadd.f32 %v2712, %v3020
        %v3135 = vadd.f32 %v2713, %v3023
        %v3136 = vadd.f32 %v2714, %v3028
        %v3137 = vadd.f32 %v2715, %v3031
        %v3138 = vadd.f32 %v2716, %v3036
        %v3139 = vadd.f32 %v2717, %v3039
        %v3140 = vadd.f32 %v2718, %v3044
        %v3141 = vadd.f32 %v2719, %v3047
        %v3142 = vadd.f32 %v2720, %v3052
        %v3143 = vadd.f32 %v2721, %v3055
        %v3144 = vadd.f32 %v2722, %v3060
        %v3145 = vadd.f32 %v2723, %v3063
        %v3146 = vadd.f32 %v2724, %v3068
        %v3147 = vadd.f32 %v2725, %v3071
        %v3148 = vadd.f32 %v2726, %v3076
        %v3149 = vadd.f32 %v2727, %v3079
        %v3150 = vadd.f32 %v2728, %v3084
        %v3151 = vadd.f32 %v2729, %v3087
        %v3152 = vadd.f32 %v2730, %v3092
        %v3153 = vadd.f32 %v2731, %v3095
        %v3154 = vadd.f32 %v2732, %v3100
        %v3155 = vadd.f32 %v2733, %v3103
        %v3156 = vadd.f32 %v2734, %v3108
        %v3157 = vadd.f32 %v2735, %v3111
        %v3158 = vadd.f32 %v2736, %v3116
        %v3159 = vadd.f32 %v2737, %v3119
        %v3160 = vadd.f32 %v2738, %v3124
        %v3161 = vadd.f32 %v2739, %v3127
        %s3162 = sadd.s32 %s263, 2
        %s3163 = smul.u32 %s3162, 3
        %s3164 = smul.addr %s3163, 4
        %s3165 = scalar_lea.vmem %s254, %s3164
        %v3166 = vld [vmem:[%s3165] sm:$0xf]
        %v3167 = vld [vmem:[%s3165 + $0x4] sm:$0xf]
        %v3168 = vld [vmem:[%s3165 + $0x8] sm:$0x1]
        %v3169 = vld [vmem:[%s3165 + $0xc] sm:$0xf]
        %v3170 = vld [vmem:[%s3165 + $0x10] sm:$0xf]
        %v3171 = vld [vmem:[%s3165 + $0x14] sm:$0x1]
        %v3172 = vld [vmem:[%s3165 + $0x18] sm:$0xf]
        %v3173 = vld [vmem:[%s3165 + $0x1c] sm:$0xf]
        %v3174 = vld [vmem:[%s3165 + $0x20] sm:$0x1]
        %v3175 = vld [vmem:[%s3165 + $0x24] sm:$0xf]
        %v3176 = vld [vmem:[%s3165 + $0x28] sm:$0xf]
        %v3177 = vld [vmem:[%s3165 + $0x2c] sm:$0x1]
        %v3178 = vld [vmem:[%s3165 + $0x30] sm:$0xf]
        %v3179 = vld [vmem:[%s3165 + $0x34] sm:$0xf]
        %v3180 = vld [vmem:[%s3165 + $0x38] sm:$0x1]
        %v3181 = vld [vmem:[%s3165 + $0x3c] sm:$0xf]
        %v3182 = vld [vmem:[%s3165 + $0x40] sm:$0xf]
        %v3183 = vld [vmem:[%s3165 + $0x44] sm:$0x1]
        %v3184 = vld [vmem:[%s3165 + $0x48] sm:$0xf]
        %v3185 = vld [vmem:[%s3165 + $0x4c] sm:$0xf]
        %v3186 = vld [vmem:[%s3165 + $0x50] sm:$0x1]
        %v3187 = vld [vmem:[%s3165 + $0x54] sm:$0xf]
        %v3188 = vld [vmem:[%s3165 + $0x58] sm:$0xf]
        %v3189 = vld [vmem:[%s3165 + $0x5c] sm:$0x1]
        %v3190 = vld [vmem:[%s3165 + $0x60] sm:$0xf]
        %v3191 = vld [vmem:[%s3165 + $0x64] sm:$0xf]
        %v3192 = vld [vmem:[%s3165 + $0x68] sm:$0x1]
        %v3193 = vld [vmem:[%s3165 + $0x6c] sm:$0xf]
        %v3194 = vld [vmem:[%s3165 + $0x70] sm:$0xf]
        %v3195 = vld [vmem:[%s3165 + $0x74] sm:$0x1]
        %v3196 = vld [vmem:[%s3165 + $0x78] sm:$0xf]
        %v3197 = vld [vmem:[%s3165 + $0x7c] sm:$0xf]
        %v3198 = vld [vmem:[%s3165 + $0x80] sm:$0x1]
        %v3199 = vld [vmem:[%s3165 + $0x84] sm:$0xf]
        %v3200 = vld [vmem:[%s3165 + $0x88] sm:$0xf]
        %v3201 = vld [vmem:[%s3165 + $0x8c] sm:$0x1]
        %v3202 = vld [vmem:[%s3165 + $0x90] sm:$0xf]
        %v3203 = vld [vmem:[%s3165 + $0x94] sm:$0xf]
        %v3204 = vld [vmem:[%s3165 + $0x98] sm:$0x1]
        %v3205 = vld [vmem:[%s3165 + $0x9c] sm:$0xf]
        %v3206 = vld [vmem:[%s3165 + $0xa0] sm:$0xf]
        %v3207 = vld [vmem:[%s3165 + $0xa4] sm:$0x1]
        %v3208 = vld [vmem:[%s3165 + $0xa8] sm:$0xf]
        %v3209 = vld [vmem:[%s3165 + $0xac] sm:$0xf]
        %v3210 = vld [vmem:[%s3165 + $0xb0] sm:$0x1]
        %v3211 = vld [vmem:[%s3165 + $0xb4] sm:$0xf]
        %v3212 = vld [vmem:[%s3165 + $0xb8] sm:$0xf]
        %v3213 = vld [vmem:[%s3165 + $0xbc] sm:$0x1]
        %s3214 = scalar_lea.vmem %s1, 12
        %v3215 = vld [vmem:[%s3214] sm:$0x3]
        %v3248 = vunpack.c.l.b16 %v3166
        %v3249 = vunpack.c.l.b16 %v3167
        %v3250 = vunpack.c.l.b16 %v3169
        %v3251 = vunpack.c.l.b16 %v3170
        %v3252 = vunpack.c.l.b16 %v3172
        %v3253 = vunpack.c.l.b16 %v3173
        %v3254 = vunpack.c.l.b16 %v3175
        %v3255 = vunpack.c.l.b16 %v3176
        %v3256 = vunpack.c.l.b16 %v3178
        %v3257 = vunpack.c.l.b16 %v3179
        %v3258 = vunpack.c.l.b16 %v3181
        %v3259 = vunpack.c.l.b16 %v3182
        %v3260 = vunpack.c.l.b16 %v3184
        %v3261 = vunpack.c.l.b16 %v3185
        %v3262 = vunpack.c.l.b16 %v3187
        %v3263 = vunpack.c.l.b16 %v3188
        %v3264 = vunpack.c.l.b16 %v3190
        %v3265 = vunpack.c.l.b16 %v3191
        %v3266 = vunpack.c.l.b16 %v3193
        %v3267 = vunpack.c.l.b16 %v3194
        %v3268 = vunpack.c.l.b16 %v3196
        %v3269 = vunpack.c.l.b16 %v3197
        %v3270 = vunpack.c.l.b16 %v3199
        %v3271 = vunpack.c.l.b16 %v3200
        %v3272 = vunpack.c.l.b16 %v3202
        %v3273 = vunpack.c.l.b16 %v3203
        %v3274 = vunpack.c.l.b16 %v3205
        %v3275 = vunpack.c.l.b16 %v3206
        %v3276 = vunpack.c.l.b16 %v3208
        %v3277 = vunpack.c.l.b16 %v3209
        %v3278 = vunpack.c.l.b16 %v3211
        %v3279 = vunpack.c.l.b16 %v3212
        %v3280 = vpack.c.b16 %v3249, %v3248
        %v3281 = vpack.c.b16 %v3251, %v3250
        %v3282 = vpack.c.b16 %v3253, %v3252
        %v3283 = vpack.c.b16 %v3255, %v3254
        %v3284 = vpack.c.b16 %v3257, %v3256
        %v3285 = vpack.c.b16 %v3259, %v3258
        %v3286 = vpack.c.b16 %v3261, %v3260
        %v3287 = vpack.c.b16 %v3263, %v3262
        %v3288 = vpack.c.b16 %v3265, %v3264
        %v3289 = vpack.c.b16 %v3267, %v3266
        %v3290 = vpack.c.b16 %v3269, %v3268
        %v3291 = vpack.c.b16 %v3271, %v3270
        %v3292 = vpack.c.b16 %v3273, %v3272
        %v3293 = vpack.c.b16 %v3275, %v3274
        %v3294 = vpack.c.b16 %v3277, %v3276
        %v3295 = vpack.c.b16 %v3279, %v3278
        %v3297 = vsel %vm753, %v3280, 0
        %v3300 = vsel %vm753, %v3281, 0
        %v3303 = vsel %vm753, %v3282, 0
        %v3306 = vsel %vm753, %v3283, 0
        %v3309 = vsel %vm753, %v3284, 0
        %v3312 = vsel %vm753, %v3285, 0
        %v3315 = vsel %vm753, %v3286, 0
        %v3318 = vsel %vm753, %v3287, 0
        %v3321 = vsel %vm753, %v3288, 0
        %v3324 = vsel %vm753, %v3289, 0
        %v3327 = vsel %vm753, %v3290, 0
        %v3330 = vsel %vm753, %v3291, 0
        %v3333 = vsel %vm753, %v3292, 0
        %v3336 = vsel %vm753, %v3293, 0
        %v3339 = vsel %vm753, %v3294, 0
        %v3342 = vsel %vm753, %v3295, 0
        %v3345 = vsel %vm802, %v3215, 0
        %3347 = vmatprep.subr.bf16.mxu0 0
        %3348 = vmatpush1.bf16.msra.mxu0 0
        %3349 = vmatprep.subr.bf16.mxu0 0
        %3350 = vmatpush1.bf16.msra.mxu0 0
        %3351 = vmatprep.subr.bf16.mxu0 0
        %3352 = vmatpush1.bf16.msra.mxu0 0
        %3353 = vmatprep.subr.bf16.mxu0 0
        %3354 = vmatpush1.bf16.msra.mxu0 0
        %3355 = vmatprep.subr.bf16.mxu0 0
        %3356 = vmatpush1.bf16.msra.mxu0 0
        %3357 = vmatprep.subr.bf16.mxu0 0
        %3358 = vmatpush1.bf16.msra.mxu0 0
        %3359 = vmatprep.subr.bf16.mxu0 0
        %3360 = vmatpush1.bf16.msra.mxu0 0
        %3361 = vmatprep.subr.bf16.mxu0 0
        %3362 = vmatpush1.bf16.msra.mxu0 %v3345
        %3363 = vmatprep.subr.bf16.mxu0 0
        %3364 = vmatpush2.bf16.msra.mxu0 0
        %3365 = vmatprep.subr.bf16.mxu0 0
        %3366 = vmatpush2.bf16.msra.mxu0 0
        %3367 = vmatprep.subr.bf16.mxu0 0
        %3368 = vmatpush2.bf16.msra.mxu0 0
        %3369 = vmatprep.subr.bf16.mxu0 0
        %3370 = vmatpush2.bf16.msra.mxu0 0
        %3371 = vmatprep.subr.bf16.mxu0 0
        %3372 = vmatpush2.bf16.msra.mxu0 0
        %3373 = vmatprep.subr.bf16.mxu0 0
        %3374 = vmatpush2.bf16.msra.mxu0 0
        %3375 = vmatprep.subr.bf16.mxu0 0
        %3376 = vmatpush2.bf16.msra.mxu0 0
        %3377 = vmatprep.subr.bf16.mxu0 0
        %3378 = vmatpush2.bf16.msra.mxu0 0
        %3379 = vmatprep.mubr.bf16.mxu0 0
        %3380 = vmatmul.mubr.bf16.gmra.mxu0 %v3297
        %v3381 = vpop.f32.mrf.mxu0
        %v3382 = vadd.f32 0.0, %v3381
        %v3383 = vpop.f32.mrf.mxu0
        %v3384 = vpop.f32.mrf.mxu0
        %v3385 = vadd.f32 0.0, %v3384
        %v3386 = vpop.f32.mrf.mxu0
        %3387 = vmatprep.mubr.bf16.mxu0 0
        %3388 = vmatmul.mubr.bf16.gmra.mxu0 %v3300
        %v3389 = vpop.f32.mrf.mxu0
        %v3390 = vadd.f32 0.0, %v3389
        %v3391 = vpop.f32.mrf.mxu0
        %v3392 = vpop.f32.mrf.mxu0
        %v3393 = vadd.f32 0.0, %v3392
        %v3394 = vpop.f32.mrf.mxu0
        %3395 = vmatprep.mubr.bf16.mxu0 0
        %3396 = vmatmul.mubr.bf16.gmra.mxu0 %v3303
        %v3397 = vpop.f32.mrf.mxu0
        %v3398 = vadd.f32 0.0, %v3397
        %v3399 = vpop.f32.mrf.mxu0
        %v3400 = vpop.f32.mrf.mxu0
        %v3401 = vadd.f32 0.0, %v3400
        %v3402 = vpop.f32.mrf.mxu0
        %3403 = vmatprep.mubr.bf16.mxu0 0
        %3404 = vmatmul.mubr.bf16.gmra.mxu0 %v3306
        %v3405 = vpop.f32.mrf.mxu0
        %v3406 = vadd.f32 0.0, %v3405
        %v3407 = vpop.f32.mrf.mxu0
        %v3408 = vpop.f32.mrf.mxu0
        %v3409 = vadd.f32 0.0, %v3408
        %v3410 = vpop.f32.mrf.mxu0
        %3411 = vmatprep.mubr.bf16.mxu0 0
        %3412 = vmatmul.mubr.bf16.gmra.mxu0 %v3309
        %v3413 = vpop.f32.mrf.mxu0
        %v3414 = vadd.f32 0.0, %v3413
        %v3415 = vpop.f32.mrf.mxu0
        %v3416 = vpop.f32.mrf.mxu0
        %v3417 = vadd.f32 0.0, %v3416
        %v3418 = vpop.f32.mrf.mxu0
        %3419 = vmatprep.mubr.bf16.mxu0 0
        %3420 = vmatmul.mubr.bf16.gmra.mxu0 %v3312
        %v3421 = vpop.f32.mrf.mxu0
        %v3422 = vadd.f32 0.0, %v3421
        %v3423 = vpop.f32.mrf.mxu0
        %v3424 = vpop.f32.mrf.mxu0
        %v3425 = vadd.f32 0.0, %v3424
        %v3426 = vpop.f32.mrf.mxu0
        %3427 = vmatprep.mubr.bf16.mxu0 0
        %3428 = vmatmul.mubr.bf16.gmra.mxu0 %v3315
        %v3429 = vpop.f32.mrf.mxu0
        %v3430 = vadd.f32 0.0, %v3429
        %v3431 = vpop.f32.mrf.mxu0
        %v3432 = vpop.f32.mrf.mxu0
        %v3433 = vadd.f32 0.0, %v3432
        %v3434 = vpop.f32.mrf.mxu0
        %3435 = vmatprep.mubr.bf16.mxu0 0
        %3436 = vmatmul.mubr.bf16.gmra.mxu0 %v3318
        %v3437 = vpop.f32.mrf.mxu0
        %v3438 = vadd.f32 0.0, %v3437
        %v3439 = vpop.f32.mrf.mxu0
        %v3440 = vpop.f32.mrf.mxu0
        %v3441 = vadd.f32 0.0, %v3440
        %v3442 = vpop.f32.mrf.mxu0
        %3443 = vmatprep.mubr.bf16.mxu0 0
        %3444 = vmatmul.mubr.bf16.gmra.mxu0 %v3321
        %v3445 = vpop.f32.mrf.mxu0
        %v3446 = vadd.f32 0.0, %v3445
        %v3447 = vpop.f32.mrf.mxu0
        %v3448 = vpop.f32.mrf.mxu0
        %v3449 = vadd.f32 0.0, %v3448
        %v3450 = vpop.f32.mrf.mxu0
        %3451 = vmatprep.mubr.bf16.mxu0 0
        %3452 = vmatmul.mubr.bf16.gmra.mxu0 %v3324
        %v3453 = vpop.f32.mrf.mxu0
        %v3454 = vadd.f32 0.0, %v3453
        %v3455 = vpop.f32.mrf.mxu0
        %v3456 = vpop.f32.mrf.mxu0
        %v3457 = vadd.f32 0.0, %v3456
        %v3458 = vpop.f32.mrf.mxu0
        %3459 = vmatprep.mubr.bf16.mxu0 0
        %3460 = vmatmul.mubr.bf16.gmra.mxu0 %v3327
        %v3461 = vpop.f32.mrf.mxu0
        %v3462 = vadd.f32 0.0, %v3461
        %v3463 = vpop.f32.mrf.mxu0
        %v3464 = vpop.f32.mrf.mxu0
        %v3465 = vadd.f32 0.0, %v3464
        %v3466 = vpop.f32.mrf.mxu0
        %3467 = vmatprep.mubr.bf16.mxu0 0
        %3468 = vmatmul.mubr.bf16.gmra.mxu0 %v3330
        %v3469 = vpop.f32.mrf.mxu0
        %v3470 = vadd.f32 0.0, %v3469
        %v3471 = vpop.f32.mrf.mxu0
        %v3472 = vpop.f32.mrf.mxu0
        %v3473 = vadd.f32 0.0, %v3472
        %v3474 = vpop.f32.mrf.mxu0
        %3475 = vmatprep.mubr.bf16.mxu0 0
        %3476 = vmatmul.mubr.bf16.gmra.mxu0 %v3333
        %v3477 = vpop.f32.mrf.mxu0
        %v3478 = vadd.f32 0.0, %v3477
        %v3479 = vpop.f32.mrf.mxu0
        %v3480 = vpop.f32.mrf.mxu0
        %v3481 = vadd.f32 0.0, %v3480
        %v3482 = vpop.f32.mrf.mxu0
        %3483 = vmatprep.mubr.bf16.mxu0 0
        %3484 = vmatmul.mubr.bf16.gmra.mxu0 %v3336
        %v3485 = vpop.f32.mrf.mxu0
        %v3486 = vadd.f32 0.0, %v3485
        %v3487 = vpop.f32.mrf.mxu0
        %v3488 = vpop.f32.mrf.mxu0
        %v3489 = vadd.f32 0.0, %v3488
        %v3490 = vpop.f32.mrf.mxu0
        %3491 = vmatprep.mubr.bf16.mxu0 0
        %3492 = vmatmul.mubr.bf16.gmra.mxu0 %v3339
        %v3493 = vpop.f32.mrf.mxu0
        %v3494 = vadd.f32 0.0, %v3493
        %v3495 = vpop.f32.mrf.mxu0
        %v3496 = vpop.f32.mrf.mxu0
        %v3497 = vadd.f32 0.0, %v3496
        %v3498 = vpop.f32.mrf.mxu0
        %3499 = vmatprep.mubr.bf16.mxu0 0
        %3500 = vmatmul.mubr.bf16.gmra.mxu0 %v3342
        %v3501 = vpop.f32.mrf.mxu0
        %v3502 = vadd.f32 0.0, %v3501
        %v3503 = vpop.f32.mrf.mxu0
        %v3504 = vpop.f32.mrf.mxu0
        %v3505 = vadd.f32 0.0, %v3504
        %v3506 = vpop.f32.mrf.mxu0
        %3507 = vdwg.mxu0
        %v3508 = vadd.f32 %v3130, %v3382
        %v3509 = vadd.f32 %v3131, %v3385
        %v3510 = vadd.f32 %v3132, %v3390
        %v3511 = vadd.f32 %v3133, %v3393
        %v3512 = vadd.f32 %v3134, %v3398
        %v3513 = vadd.f32 %v3135, %v3401
        %v3514 = vadd.f32 %v3136, %v3406
        %v3515 = vadd.f32 %v3137, %v3409
        %v3516 = vadd.f32 %v3138, %v3414
        %v3517 = vadd.f32 %v3139, %v3417
        %v3518 = vadd.f32 %v3140, %v3422
        %v3519 = vadd.f32 %v3141, %v3425
        %v3520 = vadd.f32 %v3142, %v3430
        %v3521 = vadd.f32 %v3143, %v3433
        %v3522 = vadd.f32 %v3144, %v3438
        %v3523 = vadd.f32 %v3145, %v3441
        %v3524 = vadd.f32 %v3146, %v3446
        %v3525 = vadd.f32 %v3147, %v3449
        %v3526 = vadd.f32 %v3148, %v3454
        %v3527 = vadd.f32 %v3149, %v3457
        %v3528 = vadd.f32 %v3150, %v3462
        %v3529 = vadd.f32 %v3151, %v3465
        %v3530 = vadd.f32 %v3152, %v3470
        %v3531 = vadd.f32 %v3153, %v3473
        %v3532 = vadd.f32 %v3154, %v3478
        %v3533 = vadd.f32 %v3155, %v3481
        %v3534 = vadd.f32 %v3156, %v3486
        %v3535 = vadd.f32 %v3157, %v3489
        %v3536 = vadd.f32 %v3158, %v3494
        %v3537 = vadd.f32 %v3159, %v3497
        %v3538 = vadd.f32 %v3160, %v3502
        %v3539 = vadd.f32 %v3161, %v3505
        %s3540 = scalar_lea.vmem %s1, 14
        %v3541 = vld [vmem:[%s3540] sm:$0x3]
        %v3543 = vshrl.u32 %v3166, 16
        %v3545 = vrot.slane %v3543, 4
        %v3546 = vshll.u32 %v3166, 16
        %v3548 = vrot.slane %v3546, 5
        %v3549 = vor.u32 %v3545, %v3548
        %v3550 = vrot.slane %v3549, 4
        %v3552 = vshll.u32 %v3167, 16
        %v3554 = vrot.slane %v3552, 5
        %v3555 = vsel %vm320, %v3550, %v3554
        %v3556 = vshrl.u32 %v3167, 16
        %v3558 = vrot.slane %v3556, 4
        %v3559 = vor.u32 %v3558, %v3554
        %v3560 = vrot.slane %v3559, 4
        %v3562 = vshll.u32 %v3168, 16
        %v3564 = vrot.slane %v3562, 5
        %v3565 = vsel %vm320, %v3560, %v3564
        %v3567 = vshrl.u32 %v3169, 16
        %v3569 = vrot.slane %v3567, 4
        %v3570 = vshll.u32 %v3169, 16
        %v3572 = vrot.slane %v3570, 5
        %v3573 = vor.u32 %v3569, %v3572
        %v3574 = vrot.slane %v3573, 4
        %v3576 = vshll.u32 %v3170, 16
        %v3578 = vrot.slane %v3576, 5
        %v3579 = vsel %vm320, %v3574, %v3578
        %v3580 = vshrl.u32 %v3170, 16
        %v3582 = vrot.slane %v3580, 4
        %v3583 = vor.u32 %v3582, %v3578
        %v3584 = vrot.slane %v3583, 4
        %v3586 = vshll.u32 %v3171, 16
        %v3588 = vrot.slane %v3586, 5
        %v3589 = vsel %vm320, %v3584, %v3588
        %v3591 = vshrl.u32 %v3172, 16
        %v3593 = vrot.slane %v3591, 4
        %v3594 = vshll.u32 %v3172, 16
        %v3596 = vrot.slane %v3594, 5
        %v3597 = vor.u32 %v3593, %v3596
        %v3598 = vrot.slane %v3597, 4
        %v3600 = vshll.u32 %v3173, 16
        %v3602 = vrot.slane %v3600, 5
        %v3603 = vsel %vm320, %v3598, %v3602
        %v3604 = vshrl.u32 %v3173, 16
        %v3606 = vrot.slane %v3604, 4
        %v3607 = vor.u32 %v3606, %v3602
        %v3608 = vrot.slane %v3607, 4
        %v3610 = vshll.u32 %v3174, 16
        %v3612 = vrot.slane %v3610, 5
        %v3613 = vsel %vm320, %v3608, %v3612
        %v3615 = vshrl.u32 %v3175, 16
        %v3617 = vrot.slane %v3615, 4
        %v3618 = vshll.u32 %v3175, 16
        %v3620 = vrot.slane %v3618, 5
        %v3621 = vor.u32 %v3617, %v3620
        %v3622 = vrot.slane %v3621, 4
        %v3624 = vshll.u32 %v3176, 16
        %v3626 = vrot.slane %v3624, 5
        %v3627 = vsel %vm320, %v3622, %v3626
        %v3628 = vshrl.u32 %v3176, 16
        %v3630 = vrot.slane %v3628, 4
        %v3631 = vor.u32 %v3630, %v3626
        %v3632 = vrot.slane %v3631, 4
        %v3634 = vshll.u32 %v3177, 16
        %v3636 = vrot.slane %v3634, 5
        %v3637 = vsel %vm320, %v3632, %v3636
        %v3639 = vshrl.u32 %v3178, 16
        %v3641 = vrot.slane %v3639, 4
        %v3642 = vshll.u32 %v3178, 16
        %v3644 = vrot.slane %v3642, 5
        %v3645 = vor.u32 %v3641, %v3644
        %v3646 = vrot.slane %v3645, 4
        %v3648 = vshll.u32 %v3179, 16
        %v3650 = vrot.slane %v3648, 5
        %v3651 = vsel %vm320, %v3646, %v3650
        %v3652 = vshrl.u32 %v3179, 16
        %v3654 = vrot.slane %v3652, 4
        %v3655 = vor.u32 %v3654, %v3650
        %v3656 = vrot.slane %v3655, 4
        %v3658 = vshll.u32 %v3180, 16
        %v3660 = vrot.slane %v3658, 5
        %v3661 = vsel %vm320, %v3656, %v3660
        %v3663 = vshrl.u32 %v3181, 16
        %v3665 = vrot.slane %v3663, 4
        %v3666 = vshll.u32 %v3181, 16
        %v3668 = vrot.slane %v3666, 5
        %v3669 = vor.u32 %v3665, %v3668
        %v3670 = vrot.slane %v3669, 4
        %v3672 = vshll.u32 %v3182, 16
        %v3674 = vrot.slane %v3672, 5
        %v3675 = vsel %vm320, %v3670, %v3674
        %v3676 = vshrl.u32 %v3182, 16
        %v3678 = vrot.slane %v3676, 4
        %v3679 = vor.u32 %v3678, %v3674
        %v3680 = vrot.slane %v3679, 4
        %v3682 = vshll.u32 %v3183, 16
        %v3684 = vrot.slane %v3682, 5
        %v3685 = vsel %vm320, %v3680, %v3684
        %v3687 = vshrl.u32 %v3184, 16
        %v3689 = vrot.slane %v3687, 4
        %v3690 = vshll.u32 %v3184, 16
        %v3692 = vrot.slane %v3690, 5
        %v3693 = vor.u32 %v3689, %v3692
        %v3694 = vrot.slane %v3693, 4
        %v3696 = vshll.u32 %v3185, 16
        %v3698 = vrot.slane %v3696, 5
        %v3699 = vsel %vm320, %v3694, %v3698
        %v3700 = vshrl.u32 %v3185, 16
        %v3702 = vrot.slane %v3700, 4
        %v3703 = vor.u32 %v3702, %v3698
        %v3704 = vrot.slane %v3703, 4
        %v3706 = vshll.u32 %v3186, 16
        %v3708 = vrot.slane %v3706, 5
        %v3709 = vsel %vm320, %v3704, %v3708
        %v3711 = vshrl.u32 %v3187, 16
        %v3713 = vrot.slane %v3711, 4
        %v3714 = vshll.u32 %v3187, 16
        %v3716 = vrot.slane %v3714, 5
        %v3717 = vor.u32 %v3713, %v3716
        %v3718 = vrot.slane %v3717, 4
        %v3720 = vshll.u32 %v3188, 16
        %v3722 = vrot.slane %v3720, 5
        %v3723 = vsel %vm320, %v3718, %v3722
        %v3724 = vshrl.u32 %v3188, 16
        %v3726 = vrot.slane %v3724, 4
        %v3727 = vor.u32 %v3726, %v3722
        %v3728 = vrot.slane %v3727, 4
        %v3730 = vshll.u32 %v3189, 16
        %v3732 = vrot.slane %v3730, 5
        %v3733 = vsel %vm320, %v3728, %v3732
        %v3735 = vshrl.u32 %v3190, 16
        %v3737 = vrot.slane %v3735, 4
        %v3738 = vshll.u32 %v3190, 16
        %v3740 = vrot.slane %v3738, 5
        %v3741 = vor.u32 %v3737, %v3740
        %v3742 = vrot.slane %v3741, 4
        %v3744 = vshll.u32 %v3191, 16
        %v3746 = vrot.slane %v3744, 5
        %v3747 = vsel %vm320, %v3742, %v3746
        %v3748 = vshrl.u32 %v3191, 16
        %v3750 = vrot.slane %v3748, 4
        %v3751 = vor.u32 %v3750, %v3746
        %v3752 = vrot.slane %v3751, 4
        %v3754 = vshll.u32 %v3192, 16
        %v3756 = vrot.slane %v3754, 5
        %v3757 = vsel %vm320, %v3752, %v3756
        %v3759 = vshrl.u32 %v3193, 16
        %v3761 = vrot.slane %v3759, 4
        %v3762 = vshll.u32 %v3193, 16
        %v3764 = vrot.slane %v3762, 5
        %v3765 = vor.u32 %v3761, %v3764
        %v3766 = vrot.slane %v3765, 4
        %v3768 = vshll.u32 %v3194, 16
        %v3770 = vrot.slane %v3768, 5
        %v3771 = vsel %vm320, %v3766, %v3770
        %v3772 = vshrl.u32 %v3194, 16
        %v3774 = vrot.slane %v3772, 4
        %v3775 = vor.u32 %v3774, %v3770
        %v3776 = vrot.slane %v3775, 4
        %v3778 = vshll.u32 %v3195, 16
        %v3780 = vrot.slane %v3778, 5
        %v3781 = vsel %vm320, %v3776, %v3780
        %v3783 = vshrl.u32 %v3196, 16
        %v3785 = vrot.slane %v3783, 4
        %v3786 = vshll.u32 %v3196, 16
        %v3788 = vrot.slane %v3786, 5
        %v3789 = vor.u32 %v3785, %v3788
        %v3790 = vrot.slane %v3789, 4
        %v3792 = vshll.u32 %v3197, 16
        %v3794 = vrot.slane %v3792, 5
        %v3795 = vsel %vm320, %v3790, %v3794
        %v3796 = vshrl.u32 %v3197, 16
        %v3798 = vrot.slane %v3796, 4
        %v3799 = vor.u32 %v3798, %v3794
        %v3800 = vrot.slane %v3799, 4
        %v3802 = vshll.u32 %v3198, 16
        %v3804 = vrot.slane %v3802, 5
        %v3805 = vsel %vm320, %v3800, %v3804
        %v3807 = vshrl.u32 %v3199, 16
        %v3809 = vrot.slane %v3807, 4
        %v3810 = vshll.u32 %v3199, 16
        %v3812 = vrot.slane %v3810, 5
        %v3813 = vor.u32 %v3809, %v3812
        %v3814 = vrot.slane %v3813, 4
        %v3816 = vshll.u32 %v3200, 16
        %v3818 = vrot.slane %v3816, 5
        %v3819 = vsel %vm320, %v3814, %v3818
        %v3820 = vshrl.u32 %v3200, 16
        %v3822 = vrot.slane %v3820, 4
        %v3823 = vor.u32 %v3822, %v3818
        %v3824 = vrot.slane %v3823, 4
        %v3826 = vshll.u32 %v3201, 16
        %v3828 = vrot.slane %v3826, 5
        %v3829 = vsel %vm320, %v3824, %v3828
        %v3831 = vshrl.u32 %v3202, 16
        %v3833 = vrot.slane %v3831, 4
        %v3834 = vshll.u32 %v3202, 16
        %v3836 = vrot.slane %v3834, 5
        %v3837 = vor.u32 %v3833, %v3836
        %v3838 = vrot.slane %v3837, 4
        %v3840 = vshll.u32 %v3203, 16
        %v3842 = vrot.slane %v3840, 5
        %v3843 = vsel %vm320, %v3838, %v3842
        %v3844 = vshrl.u32 %v3203, 16
        %v3846 = vrot.slane %v3844, 4
        %v3847 = vor.u32 %v3846, %v3842
        %v3848 = vrot.slane %v3847, 4
        %v3850 = vshll.u32 %v3204, 16
        %v3852 = vrot.slane %v3850, 5
        %v3853 = vsel %vm320, %v3848, %v3852
        %v3855 = vshrl.u32 %v3205, 16
        %v3857 = vrot.slane %v3855, 4
        %v3858 = vshll.u32 %v3205, 16
        %v3860 = vrot.slane %v3858, 5
        %v3861 = vor.u32 %v3857, %v3860
        %v3862 = vrot.slane %v3861, 4
        %v3864 = vshll.u32 %v3206, 16
        %v3866 = vrot.slane %v3864, 5
        %v3867 = vsel %vm320, %v3862, %v3866
        %v3868 = vshrl.u32 %v3206, 16
        %v3870 = vrot.slane %v3868, 4
        %v3871 = vor.u32 %v3870, %v3866
        %v3872 = vrot.slane %v3871, 4
        %v3874 = vshll.u32 %v3207, 16
        %v3876 = vrot.slane %v3874, 5
        %v3877 = vsel %vm320, %v3872, %v3876
        %v3879 = vshrl.u32 %v3208, 16
        %v3881 = vrot.slane %v3879, 4
        %v3882 = vshll.u32 %v3208, 16
        %v3884 = vrot.slane %v3882, 5
        %v3885 = vor.u32 %v3881, %v3884
        %v3886 = vrot.slane %v3885, 4
        %v3888 = vshll.u32 %v3209, 16
        %v3890 = vrot.slane %v3888, 5
        %v3891 = vsel %vm320, %v3886, %v3890
        %v3892 = vshrl.u32 %v3209, 16
        %v3894 = vrot.slane %v3892, 4
        %v3895 = vor.u32 %v3894, %v3890
        %v3896 = vrot.slane %v3895, 4
        %v3898 = vshll.u32 %v3210, 16
        %v3900 = vrot.slane %v3898, 5
        %v3901 = vsel %vm320, %v3896, %v3900
        %v3903 = vshrl.u32 %v3211, 16
        %v3905 = vrot.slane %v3903, 4
        %v3906 = vshll.u32 %v3211, 16
        %v3908 = vrot.slane %v3906, 5
        %v3909 = vor.u32 %v3905, %v3908
        %v3910 = vrot.slane %v3909, 4
        %v3912 = vshll.u32 %v3212, 16
        %v3914 = vrot.slane %v3912, 5
        %v3915 = vsel %vm320, %v3910, %v3914
        %v3916 = vshrl.u32 %v3212, 16
        %v3918 = vrot.slane %v3916, 4
        %v3919 = vor.u32 %v3918, %v3914
        %v3920 = vrot.slane %v3919, 4
        %v3922 = vshll.u32 %v3213, 16
        %v3924 = vrot.slane %v3922, 5
        %v3925 = vsel %vm320, %v3920, %v3924
        %v3926 = vunpack.c.l.b16 %v3555
        %v3927 = vunpack.c.l.b16 %v3565
        %v3928 = vunpack.c.l.b16 %v3579
        %v3929 = vunpack.c.l.b16 %v3589
        %v3930 = vunpack.c.l.b16 %v3603
        %v3931 = vunpack.c.l.b16 %v3613
        %v3932 = vunpack.c.l.b16 %v3627
        %v3933 = vunpack.c.l.b16 %v3637
        %v3934 = vunpack.c.l.b16 %v3651
        %v3935 = vunpack.c.l.b16 %v3661
        %v3936 = vunpack.c.l.b16 %v3675
        %v3937 = vunpack.c.l.b16 %v3685
        %v3938 = vunpack.c.l.b16 %v3699
        %v3939 = vunpack.c.l.b16 %v3709
        %v3940 = vunpack.c.l.b16 %v3723
        %v3941 = vunpack.c.l.b16 %v3733
        %v3942 = vunpack.c.l.b16 %v3747
        %v3943 = vunpack.c.l.b16 %v3757
        %v3944 = vunpack.c.l.b16 %v3771
        %v3945 = vunpack.c.l.b16 %v3781
        %v3946 = vunpack.c.l.b16 %v3795
        %v3947 = vunpack.c.l.b16 %v3805
        %v3948 = vunpack.c.l.b16 %v3819
        %v3949 = vunpack.c.l.b16 %v3829
        %v3950 = vunpack.c.l.b16 %v3843
        %v3951 = vunpack.c.l.b16 %v3853
        %v3952 = vunpack.c.l.b16 %v3867
        %v3953 = vunpack.c.l.b16 %v3877
        %v3954 = vunpack.c.l.b16 %v3891
        %v3955 = vunpack.c.l.b16 %v3901
        %v3956 = vunpack.c.l.b16 %v3915
        %v3957 = vunpack.c.l.b16 %v3925
        %v3958 = vpack.c.b16 %v3927, %v3926
        %v3959 = vpack.c.b16 %v3929, %v3928
        %v3960 = vpack.c.b16 %v3931, %v3930
        %v3961 = vpack.c.b16 %v3933, %v3932
        %v3962 = vpack.c.b16 %v3935, %v3934
        %v3963 = vpack.c.b16 %v3937, %v3936
        %v3964 = vpack.c.b16 %v3939, %v3938
        %v3965 = vpack.c.b16 %v3941, %v3940
        %v3966 = vpack.c.b16 %v3943, %v3942
        %v3967 = vpack.c.b16 %v3945, %v3944
        %v3968 = vpack.c.b16 %v3947, %v3946
        %v3969 = vpack.c.b16 %v3949, %v3948
        %v3970 = vpack.c.b16 %v3951, %v3950
        %v3971 = vpack.c.b16 %v3953, %v3952
        %v3972 = vpack.c.b16 %v3955, %v3954
        %v3973 = vpack.c.b16 %v3957, %v3956
        %v3975 = vsel %vm753, %v3958, 0
        %v3978 = vsel %vm753, %v3959, 0
        %v3981 = vsel %vm753, %v3960, 0
        %v3984 = vsel %vm753, %v3961, 0
        %v3987 = vsel %vm753, %v3962, 0
        %v3990 = vsel %vm753, %v3963, 0
        %v3993 = vsel %vm753, %v3964, 0
        %v3996 = vsel %vm753, %v3965, 0
        %v3999 = vsel %vm753, %v3966, 0
        %v4002 = vsel %vm753, %v3967, 0
        %v4005 = vsel %vm753, %v3968, 0
        %v4008 = vsel %vm753, %v3969, 0
        %v4011 = vsel %vm753, %v3970, 0
        %v4014 = vsel %vm753, %v3971, 0
        %v4017 = vsel %vm753, %v3972, 0
        %v4020 = vsel %vm753, %v3973, 0
        %v4023 = vsel %vm802, %v3541, 0
        %4025 = vmatprep.subr.bf16.mxu0 0
        %4026 = vmatpush1.bf16.msra.mxu0 0
        %4027 = vmatprep.subr.bf16.mxu0 0
        %4028 = vmatpush1.bf16.msra.mxu0 0
        %4029 = vmatprep.subr.bf16.mxu0 0
        %4030 = vmatpush1.bf16.msra.mxu0 0
        %4031 = vmatprep.subr.bf16.mxu0 0
        %4032 = vmatpush1.bf16.msra.mxu0 0
        %4033 = vmatprep.subr.bf16.mxu0 0
        %4034 = vmatpush1.bf16.msra.mxu0 0
        %4035 = vmatprep.subr.bf16.mxu0 0
        %4036 = vmatpush1.bf16.msra.mxu0 0
        %4037 = vmatprep.subr.bf16.mxu0 0
        %4038 = vmatpush1.bf16.msra.mxu0 0
        %4039 = vmatprep.subr.bf16.mxu0 0
        %4040 = vmatpush1.bf16.msra.mxu0 %v4023
        %4041 = vmatprep.subr.bf16.mxu0 0
        %4042 = vmatpush2.bf16.msra.mxu0 0
        %4043 = vmatprep.subr.bf16.mxu0 0
        %4044 = vmatpush2.bf16.msra.mxu0 0
        %4045 = vmatprep.subr.bf16.mxu0 0
        %4046 = vmatpush2.bf16.msra.mxu0 0
        %4047 = vmatprep.subr.bf16.mxu0 0
        %4048 = vmatpush2.bf16.msra.mxu0 0
        %4049 = vmatprep.subr.bf16.mxu0 0
        %4050 = vmatpush2.bf16.msra.mxu0 0
        %4051 = vmatprep.subr.bf16.mxu0 0
        %4052 = vmatpush2.bf16.msra.mxu0 0
        %4053 = vmatprep.subr.bf16.mxu0 0
        %4054 = vmatpush2.bf16.msra.mxu0 0
        %4055 = vmatprep.subr.bf16.mxu0 0
        %4056 = vmatpush2.bf16.msra.mxu0 0
        %4057 = vmatprep.mubr.bf16.mxu0 0
        %4058 = vmatmul.mubr.bf16.gmra.mxu0 %v3975
        %v4059 = vpop.f32.mrf.mxu0
        %v4060 = vadd.f32 0.0, %v4059
        %v4061 = vpop.f32.mrf.mxu0
        %v4062 = vpop.f32.mrf.mxu0
        %v4063 = vadd.f32 0.0, %v4062
        %v4064 = vpop.f32.mrf.mxu0
        %4065 = vmatprep.mubr.bf16.mxu0 0
        %4066 = vmatmul.mubr.bf16.gmra.mxu0 %v3978
        %v4067 = vpop.f32.mrf.mxu0
        %v4068 = vadd.f32 0.0, %v4067
        %v4069 = vpop.f32.mrf.mxu0
        %v4070 = vpop.f32.mrf.mxu0
        %v4071 = vadd.f32 0.0, %v4070
        %v4072 = vpop.f32.mrf.mxu0
        %4073 = vmatprep.mubr.bf16.mxu0 0
        %4074 = vmatmul.mubr.bf16.gmra.mxu0 %v3981
        %v4075 = vpop.f32.mrf.mxu0
        %v4076 = vadd.f32 0.0, %v4075
        %v4077 = vpop.f32.mrf.mxu0
        %v4078 = vpop.f32.mrf.mxu0
        %v4079 = vadd.f32 0.0, %v4078
        %v4080 = vpop.f32.mrf.mxu0
        %4081 = vmatprep.mubr.bf16.mxu0 0
        %4082 = vmatmul.mubr.bf16.gmra.mxu0 %v3984
        %v4083 = vpop.f32.mrf.mxu0
        %v4084 = vadd.f32 0.0, %v4083
        %v4085 = vpop.f32.mrf.mxu0
        %v4086 = vpop.f32.mrf.mxu0
        %v4087 = vadd.f32 0.0, %v4086
        %v4088 = vpop.f32.mrf.mxu0
        %4089 = vmatprep.mubr.bf16.mxu0 0
        %4090 = vmatmul.mubr.bf16.gmra.mxu0 %v3987
        %v4091 = vpop.f32.mrf.mxu0
        %v4092 = vadd.f32 0.0, %v4091
        %v4093 = vpop.f32.mrf.mxu0
        %v4094 = vpop.f32.mrf.mxu0
        %v4095 = vadd.f32 0.0, %v4094
        %v4096 = vpop.f32.mrf.mxu0
        %4097 = vmatprep.mubr.bf16.mxu0 0
        %4098 = vmatmul.mubr.bf16.gmra.mxu0 %v3990
        %v4099 = vpop.f32.mrf.mxu0
        %v4100 = vadd.f32 0.0, %v4099
        %v4101 = vpop.f32.mrf.mxu0
        %v4102 = vpop.f32.mrf.mxu0
        %v4103 = vadd.f32 0.0, %v4102
        %v4104 = vpop.f32.mrf.mxu0
        %4105 = vmatprep.mubr.bf16.mxu0 0
        %4106 = vmatmul.mubr.bf16.gmra.mxu0 %v3993
        %v4107 = vpop.f32.mrf.mxu0
        %v4108 = vadd.f32 0.0, %v4107
        %v4109 = vpop.f32.mrf.mxu0
        %v4110 = vpop.f32.mrf.mxu0
        %v4111 = vadd.f32 0.0, %v4110
        %v4112 = vpop.f32.mrf.mxu0
        %4113 = vmatprep.mubr.bf16.mxu0 0
        %4114 = vmatmul.mubr.bf16.gmra.mxu0 %v3996
        %v4115 = vpop.f32.mrf.mxu0
        %v4116 = vadd.f32 0.0, %v4115
        %v4117 = vpop.f32.mrf.mxu0
        %v4118 = vpop.f32.mrf.mxu0
        %v4119 = vadd.f32 0.0, %v4118
        %v4120 = vpop.f32.mrf.mxu0
        %4121 = vmatprep.mubr.bf16.mxu0 0
        %4122 = vmatmul.mubr.bf16.gmra.mxu0 %v3999
        %v4123 = vpop.f32.mrf.mxu0
        %v4124 = vadd.f32 0.0, %v4123
        %v4125 = vpop.f32.mrf.mxu0
        %v4126 = vpop.f32.mrf.mxu0
        %v4127 = vadd.f32 0.0, %v4126
        %v4128 = vpop.f32.mrf.mxu0
        %4129 = vmatprep.mubr.bf16.mxu0 0
        %4130 = vmatmul.mubr.bf16.gmra.mxu0 %v4002
        %v4131 = vpop.f32.mrf.mxu0
        %v4132 = vadd.f32 0.0, %v4131
        %v4133 = vpop.f32.mrf.mxu0
        %v4134 = vpop.f32.mrf.mxu0
        %v4135 = vadd.f32 0.0, %v4134
        %v4136 = vpop.f32.mrf.mxu0
        %4137 = vmatprep.mubr.bf16.mxu0 0
        %4138 = vmatmul.mubr.bf16.gmra.mxu0 %v4005
        %v4139 = vpop.f32.mrf.mxu0
        %v4140 = vadd.f32 0.0, %v4139
        %v4141 = vpop.f32.mrf.mxu0
        %v4142 = vpop.f32.mrf.mxu0
        %v4143 = vadd.f32 0.0, %v4142
        %v4144 = vpop.f32.mrf.mxu0
        %4145 = vmatprep.mubr.bf16.mxu0 0
        %4146 = vmatmul.mubr.bf16.gmra.mxu0 %v4008
        %v4147 = vpop.f32.mrf.mxu0
        %v4148 = vadd.f32 0.0, %v4147
        %v4149 = vpop.f32.mrf.mxu0
        %v4150 = vpop.f32.mrf.mxu0
        %v4151 = vadd.f32 0.0, %v4150
        %v4152 = vpop.f32.mrf.mxu0
        %4153 = vmatprep.mubr.bf16.mxu0 0
        %4154 = vmatmul.mubr.bf16.gmra.mxu0 %v4011
        %v4155 = vpop.f32.mrf.mxu0
        %v4156 = vadd.f32 0.0, %v4155
        %v4157 = vpop.f32.mrf.mxu0
        %v4158 = vpop.f32.mrf.mxu0
        %v4159 = vadd.f32 0.0, %v4158
        %v4160 = vpop.f32.mrf.mxu0
        %4161 = vmatprep.mubr.bf16.mxu0 0
        %4162 = vmatmul.mubr.bf16.gmra.mxu0 %v4014
        %v4163 = vpop.f32.mrf.mxu0
        %v4164 = vadd.f32 0.0, %v4163
        %v4165 = vpop.f32.mrf.mxu0
        %v4166 = vpop.f32.mrf.mxu0
        %v4167 = vadd.f32 0.0, %v4166
        %v4168 = vpop.f32.mrf.mxu0
        %4169 = vmatprep.mubr.bf16.mxu0 0
        %4170 = vmatmul.mubr.bf16.gmra.mxu0 %v4017
        %v4171 = vpop.f32.mrf.mxu0
        %v4172 = vadd.f32 0.0, %v4171
        %v4173 = vpop.f32.mrf.mxu0
        %v4174 = vpop.f32.mrf.mxu0
        %v4175 = vadd.f32 0.0, %v4174
        %v4176 = vpop.f32.mrf.mxu0
        %4177 = vmatprep.mubr.bf16.mxu0 0
        %4178 = vmatmul.mubr.bf16.gmra.mxu0 %v4020
        %v4179 = vpop.f32.mrf.mxu0
        %v4180 = vadd.f32 0.0, %v4179
        %v4181 = vpop.f32.mrf.mxu0
        %v4182 = vpop.f32.mrf.mxu0
        %v4183 = vadd.f32 0.0, %v4182
        %v4184 = vpop.f32.mrf.mxu0
        %4185 = vdwg.mxu0
        %v4186 = vadd.f32 %v3508, %v4060
        %v4187 = vadd.f32 %v3509, %v4063
        %v4188 = vadd.f32 %v3510, %v4068
        %v4189 = vadd.f32 %v3511, %v4071
        %v4190 = vadd.f32 %v3512, %v4076
        %v4191 = vadd.f32 %v3513, %v4079
        %v4192 = vadd.f32 %v3514, %v4084
        %v4193 = vadd.f32 %v3515, %v4087
        %v4194 = vadd.f32 %v3516, %v4092
        %v4195 = vadd.f32 %v3517, %v4095
        %v4196 = vadd.f32 %v3518, %v4100
        %v4197 = vadd.f32 %v3519, %v4103
        %v4198 = vadd.f32 %v3520, %v4108
        %v4199 = vadd.f32 %v3521, %v4111
        %v4200 = vadd.f32 %v3522, %v4116
        %v4201 = vadd.f32 %v3523, %v4119
        %v4202 = vadd.f32 %v3524, %v4124
        %v4203 = vadd.f32 %v3525, %v4127
        %v4204 = vadd.f32 %v3526, %v4132
        %v4205 = vadd.f32 %v3527, %v4135
        %v4206 = vadd.f32 %v3528, %v4140
        %v4207 = vadd.f32 %v3529, %v4143
        %v4208 = vadd.f32 %v3530, %v4148
        %v4209 = vadd.f32 %v3531, %v4151
        %v4210 = vadd.f32 %v3532, %v4156
        %v4211 = vadd.f32 %v3533, %v4159
        %v4212 = vadd.f32 %v3534, %v4164
        %v4213 = vadd.f32 %v3535, %v4167
        %v4214 = vadd.f32 %v3536, %v4172
        %v4215 = vadd.f32 %v3537, %v4175
        %v4216 = vadd.f32 %v3538, %v4180
        %v4217 = vadd.f32 %v3539, %v4183
        %s4218 = scalar_lea.vmem %s1, 16
        %v4219 = vld [vmem:[%s4218] sm:$0x3]
        %v4236 = vrot.slane %v3166, 5
        %v4237 = vrot.slane %v4236, 4
        %v4238 = vrot.slane %v3167, 5
        %v4239 = vsel %vm1279, %v4237, %v4238
        %v4240 = vrot.slane %v4238, 4
        %v4241 = vrot.slane %v3168, 5
        %v4242 = vsel %vm1279, %v4240, %v4241
        %v4243 = vrot.slane %v3169, 5
        %v4244 = vrot.slane %v4243, 4
        %v4245 = vrot.slane %v3170, 5
        %v4246 = vsel %vm1279, %v4244, %v4245
        %v4247 = vrot.slane %v4245, 4
        %v4248 = vrot.slane %v3171, 5
        %v4249 = vsel %vm1279, %v4247, %v4248
        %v4250 = vrot.slane %v3172, 5
        %v4251 = vrot.slane %v4250, 4
        %v4252 = vrot.slane %v3173, 5
        %v4253 = vsel %vm1279, %v4251, %v4252
        %v4254 = vrot.slane %v4252, 4
        %v4255 = vrot.slane %v3174, 5
        %v4256 = vsel %vm1279, %v4254, %v4255
        %v4257 = vrot.slane %v3175, 5
        %v4258 = vrot.slane %v4257, 4
        %v4259 = vrot.slane %v3176, 5
        %v4260 = vsel %vm1279, %v4258, %v4259
        %v4261 = vrot.slane %v4259, 4
        %v4262 = vrot.slane %v3177, 5
        %v4263 = vsel %vm1279, %v4261, %v4262
        %v4264 = vrot.slane %v3178, 5
        %v4265 = vrot.slane %v4264, 4
        %v4266 = vrot.slane %v3179, 5
        %v4267 = vsel %vm1279, %v4265, %v4266
        %v4268 = vrot.slane %v4266, 4
        %v4269 = vrot.slane %v3180, 5
        %v4270 = vsel %vm1279, %v4268, %v4269
        %v4271 = vrot.slane %v3181, 5
        %v4272 = vrot.slane %v4271, 4
        %v4273 = vrot.slane %v3182, 5
        %v4274 = vsel %vm1279, %v4272, %v4273
        %v4275 = vrot.slane %v4273, 4
        %v4276 = vrot.slane %v3183, 5
        %v4277 = vsel %vm1279, %v4275, %v4276
        %v4278 = vrot.slane %v3184, 5
        %v4279 = vrot.slane %v4278, 4
        %v4280 = vrot.slane %v3185, 5
        %v4281 = vsel %vm1279, %v4279, %v4280
        %v4282 = vrot.slane %v4280, 4
        %v4283 = vrot.slane %v3186, 5
        %v4284 = vsel %vm1279, %v4282, %v4283
        %v4285 = vrot.slane %v3187, 5
        %v4286 = vrot.slane %v4285, 4
        %v4287 = vrot.slane %v3188, 5
        %v4288 = vsel %vm1279, %v4286, %v4287
        %v4289 = vrot.slane %v4287, 4
        %v4290 = vrot.slane %v3189, 5
        %v4291 = vsel %vm1279, %v4289, %v4290
        %v4292 = vrot.slane %v3190, 5
        %v4293 = vrot.slane %v4292, 4
        %v4294 = vrot.slane %v3191, 5
        %v4295 = vsel %vm1279, %v4293, %v4294
        %v4296 = vrot.slane %v4294, 4
        %v4297 = vrot.slane %v3192, 5
        %v4298 = vsel %vm1279, %v4296, %v4297
        %v4299 = vrot.slane %v3193, 5
        %v4300 = vrot.slane %v4299, 4
        %v4301 = vrot.slane %v3194, 5
        %v4302 = vsel %vm1279, %v4300, %v4301
        %v4303 = vrot.slane %v4301, 4
        %v4304 = vrot.slane %v3195, 5
        %v4305 = vsel %vm1279, %v4303, %v4304
        %v4306 = vrot.slane %v3196, 5
        %v4307 = vrot.slane %v4306, 4
        %v4308 = vrot.slane %v3197, 5
        %v4309 = vsel %vm1279, %v4307, %v4308
        %v4310 = vrot.slane %v4308, 4
        %v4311 = vrot.slane %v3198, 5
        %v4312 = vsel %vm1279, %v4310, %v4311
        %v4313 = vrot.slane %v3199, 5
        %v4314 = vrot.slane %v4313, 4
        %v4315 = vrot.slane %v3200, 5
        %v4316 = vsel %vm1279, %v4314, %v4315
        %v4317 = vrot.slane %v4315, 4
        %v4318 = vrot.slane %v3201, 5
        %v4319 = vsel %vm1279, %v4317, %v4318
        %v4320 = vrot.slane %v3202, 5
        %v4321 = vrot.slane %v4320, 4
        %v4322 = vrot.slane %v3203, 5
        %v4323 = vsel %vm1279, %v4321, %v4322
        %v4324 = vrot.slane %v4322, 4
        %v4325 = vrot.slane %v3204, 5
        %v4326 = vsel %vm1279, %v4324, %v4325
        %v4327 = vrot.slane %v3205, 5
        %v4328 = vrot.slane %v4327, 4
        %v4329 = vrot.slane %v3206, 5
        %v4330 = vsel %vm1279, %v4328, %v4329
        %v4331 = vrot.slane %v4329, 4
        %v4332 = vrot.slane %v3207, 5
        %v4333 = vsel %vm1279, %v4331, %v4332
        %v4334 = vrot.slane %v3208, 5
        %v4335 = vrot.slane %v4334, 4
        %v4336 = vrot.slane %v3209, 5
        %v4337 = vsel %vm1279, %v4335, %v4336
        %v4338 = vrot.slane %v4336, 4
        %v4339 = vrot.slane %v3210, 5
        %v4340 = vsel %vm1279, %v4338, %v4339
        %v4341 = vrot.slane %v3211, 5
        %v4342 = vrot.slane %v4341, 4
        %v4343 = vrot.slane %v3212, 5
        %v4344 = vsel %vm1279, %v4342, %v4343
        %v4345 = vrot.slane %v4343, 4
        %v4346 = vrot.slane %v3213, 5
        %v4347 = vsel %vm1279, %v4345, %v4346
        %v4348 = vunpack.c.l.b16 %v4239
        %v4349 = vunpack.c.l.b16 %v4242
        %v4350 = vunpack.c.l.b16 %v4246
        %v4351 = vunpack.c.l.b16 %v4249
        %v4352 = vunpack.c.l.b16 %v4253
        %v4353 = vunpack.c.l.b16 %v4256
        %v4354 = vunpack.c.l.b16 %v4260
        %v4355 = vunpack.c.l.b16 %v4263
        %v4356 = vunpack.c.l.b16 %v4267
        %v4357 = vunpack.c.l.b16 %v4270
        %v4358 = vunpack.c.l.b16 %v4274
        %v4359 = vunpack.c.l.b16 %v4277
        %v4360 = vunpack.c.l.b16 %v4281
        %v4361 = vunpack.c.l.b16 %v4284
        %v4362 = vunpack.c.l.b16 %v4288
        %v4363 = vunpack.c.l.b16 %v4291
        %v4364 = vunpack.c.l.b16 %v4295
        %v4365 = vunpack.c.l.b16 %v4298
        %v4366 = vunpack.c.l.b16 %v4302
        %v4367 = vunpack.c.l.b16 %v4305
        %v4368 = vunpack.c.l.b16 %v4309
        %v4369 = vunpack.c.l.b16 %v4312
        %v4370 = vunpack.c.l.b16 %v4316
        %v4371 = vunpack.c.l.b16 %v4319
        %v4372 = vunpack.c.l.b16 %v4323
        %v4373 = vunpack.c.l.b16 %v4326
        %v4374 = vunpack.c.l.b16 %v4330
        %v4375 = vunpack.c.l.b16 %v4333
        %v4376 = vunpack.c.l.b16 %v4337
        %v4377 = vunpack.c.l.b16 %v4340
        %v4378 = vunpack.c.l.b16 %v4344
        %v4379 = vunpack.c.l.b16 %v4347
        %v4380 = vpack.c.b16 %v4349, %v4348
        %v4381 = vpack.c.b16 %v4351, %v4350
        %v4382 = vpack.c.b16 %v4353, %v4352
        %v4383 = vpack.c.b16 %v4355, %v4354
        %v4384 = vpack.c.b16 %v4357, %v4356
        %v4385 = vpack.c.b16 %v4359, %v4358
        %v4386 = vpack.c.b16 %v4361, %v4360
        %v4387 = vpack.c.b16 %v4363, %v4362
        %v4388 = vpack.c.b16 %v4365, %v4364
        %v4389 = vpack.c.b16 %v4367, %v4366
        %v4390 = vpack.c.b16 %v4369, %v4368
        %v4391 = vpack.c.b16 %v4371, %v4370
        %v4392 = vpack.c.b16 %v4373, %v4372
        %v4393 = vpack.c.b16 %v4375, %v4374
        %v4394 = vpack.c.b16 %v4377, %v4376
        %v4395 = vpack.c.b16 %v4379, %v4378
        %v4397 = vsel %vm753, %v4380, 0
        %v4400 = vsel %vm753, %v4381, 0
        %v4403 = vsel %vm753, %v4382, 0
        %v4406 = vsel %vm753, %v4383, 0
        %v4409 = vsel %vm753, %v4384, 0
        %v4412 = vsel %vm753, %v4385, 0
        %v4415 = vsel %vm753, %v4386, 0
        %v4418 = vsel %vm753, %v4387, 0
        %v4421 = vsel %vm753, %v4388, 0
        %v4424 = vsel %vm753, %v4389, 0
        %v4427 = vsel %vm753, %v4390, 0
        %v4430 = vsel %vm753, %v4391, 0
        %v4433 = vsel %vm753, %v4392, 0
        %v4436 = vsel %vm753, %v4393, 0
        %v4439 = vsel %vm753, %v4394, 0
        %v4442 = vsel %vm753, %v4395, 0
        %v4445 = vsel %vm802, %v4219, 0
        %4447 = vmatprep.subr.bf16.mxu0 0
        %4448 = vmatpush1.bf16.msra.mxu0 0
        %4449 = vmatprep.subr.bf16.mxu0 0
        %4450 = vmatpush1.bf16.msra.mxu0 0
        %4451 = vmatprep.subr.bf16.mxu0 0
        %4452 = vmatpush1.bf16.msra.mxu0 0
        %4453 = vmatprep.subr.bf16.mxu0 0
        %4454 = vmatpush1.bf16.msra.mxu0 0
        %4455 = vmatprep.subr.bf16.mxu0 0
        %4456 = vmatpush1.bf16.msra.mxu0 0
        %4457 = vmatprep.subr.bf16.mxu0 0
        %4458 = vmatpush1.bf16.msra.mxu0 0
        %4459 = vmatprep.subr.bf16.mxu0 0
        %4460 = vmatpush1.bf16.msra.mxu0 0
        %4461 = vmatprep.subr.bf16.mxu0 0
        %4462 = vmatpush1.bf16.msra.mxu0 %v4445
        %4463 = vmatprep.subr.bf16.mxu0 0
        %4464 = vmatpush2.bf16.msra.mxu0 0
        %4465 = vmatprep.subr.bf16.mxu0 0
        %4466 = vmatpush2.bf16.msra.mxu0 0
        %4467 = vmatprep.subr.bf16.mxu0 0
        %4468 = vmatpush2.bf16.msra.mxu0 0
        %4469 = vmatprep.subr.bf16.mxu0 0
        %4470 = vmatpush2.bf16.msra.mxu0 0
        %4471 = vmatprep.subr.bf16.mxu0 0
        %4472 = vmatpush2.bf16.msra.mxu0 0
        %4473 = vmatprep.subr.bf16.mxu0 0
        %4474 = vmatpush2.bf16.msra.mxu0 0
        %4475 = vmatprep.subr.bf16.mxu0 0
        %4476 = vmatpush2.bf16.msra.mxu0 0
        %4477 = vmatprep.subr.bf16.mxu0 0
        %4478 = vmatpush2.bf16.msra.mxu0 0
        %4479 = vmatprep.mubr.bf16.mxu0 0
        %4480 = vmatmul.mubr.bf16.gmra.mxu0 %v4397
        %v4481 = vpop.f32.mrf.mxu0
        %v4482 = vadd.f32 0.0, %v4481
        %v4483 = vpop.f32.mrf.mxu0
        %v4484 = vpop.f32.mrf.mxu0
        %v4485 = vadd.f32 0.0, %v4484
        %v4486 = vpop.f32.mrf.mxu0
        %4487 = vmatprep.mubr.bf16.mxu0 0
        %4488 = vmatmul.mubr.bf16.gmra.mxu0 %v4400
        %v4489 = vpop.f32.mrf.mxu0
        %v4490 = vadd.f32 0.0, %v4489
        %v4491 = vpop.f32.mrf.mxu0
        %v4492 = vpop.f32.mrf.mxu0
        %v4493 = vadd.f32 0.0, %v4492
        %v4494 = vpop.f32.mrf.mxu0
        %4495 = vmatprep.mubr.bf16.mxu0 0
        %4496 = vmatmul.mubr.bf16.gmra.mxu0 %v4403
        %v4497 = vpop.f32.mrf.mxu0
        %v4498 = vadd.f32 0.0, %v4497
        %v4499 = vpop.f32.mrf.mxu0
        %v4500 = vpop.f32.mrf.mxu0
        %v4501 = vadd.f32 0.0, %v4500
        %v4502 = vpop.f32.mrf.mxu0
        %4503 = vmatprep.mubr.bf16.mxu0 0
        %4504 = vmatmul.mubr.bf16.gmra.mxu0 %v4406
        %v4505 = vpop.f32.mrf.mxu0
        %v4506 = vadd.f32 0.0, %v4505
        %v4507 = vpop.f32.mrf.mxu0
        %v4508 = vpop.f32.mrf.mxu0
        %v4509 = vadd.f32 0.0, %v4508
        %v4510 = vpop.f32.mrf.mxu0
        %4511 = vmatprep.mubr.bf16.mxu0 0
        %4512 = vmatmul.mubr.bf16.gmra.mxu0 %v4409
        %v4513 = vpop.f32.mrf.mxu0
        %v4514 = vadd.f32 0.0, %v4513
        %v4515 = vpop.f32.mrf.mxu0
        %v4516 = vpop.f32.mrf.mxu0
        %v4517 = vadd.f32 0.0, %v4516
        %v4518 = vpop.f32.mrf.mxu0
        %4519 = vmatprep.mubr.bf16.mxu0 0
        %4520 = vmatmul.mubr.bf16.gmra.mxu0 %v4412
        %v4521 = vpop.f32.mrf.mxu0
        %v4522 = vadd.f32 0.0, %v4521
        %v4523 = vpop.f32.mrf.mxu0
        %v4524 = vpop.f32.mrf.mxu0
        %v4525 = vadd.f32 0.0, %v4524
        %v4526 = vpop.f32.mrf.mxu0
        %4527 = vmatprep.mubr.bf16.mxu0 0
        %4528 = vmatmul.mubr.bf16.gmra.mxu0 %v4415
        %v4529 = vpop.f32.mrf.mxu0
        %v4530 = vadd.f32 0.0, %v4529
        %v4531 = vpop.f32.mrf.mxu0
        %v4532 = vpop.f32.mrf.mxu0
        %v4533 = vadd.f32 0.0, %v4532
        %v4534 = vpop.f32.mrf.mxu0
        %4535 = vmatprep.mubr.bf16.mxu0 0
        %4536 = vmatmul.mubr.bf16.gmra.mxu0 %v4418
        %v4537 = vpop.f32.mrf.mxu0
        %v4538 = vadd.f32 0.0, %v4537
        %v4539 = vpop.f32.mrf.mxu0
        %v4540 = vpop.f32.mrf.mxu0
        %v4541 = vadd.f32 0.0, %v4540
        %v4542 = vpop.f32.mrf.mxu0
        %4543 = vmatprep.mubr.bf16.mxu0 0
        %4544 = vmatmul.mubr.bf16.gmra.mxu0 %v4421
        %v4545 = vpop.f32.mrf.mxu0
        %v4546 = vadd.f32 0.0, %v4545
        %v4547 = vpop.f32.mrf.mxu0
        %v4548 = vpop.f32.mrf.mxu0
        %v4549 = vadd.f32 0.0, %v4548
        %v4550 = vpop.f32.mrf.mxu0
        %4551 = vmatprep.mubr.bf16.mxu0 0
        %4552 = vmatmul.mubr.bf16.gmra.mxu0 %v4424
        %v4553 = vpop.f32.mrf.mxu0
        %v4554 = vadd.f32 0.0, %v4553
        %v4555 = vpop.f32.mrf.mxu0
        %v4556 = vpop.f32.mrf.mxu0
        %v4557 = vadd.f32 0.0, %v4556
        %v4558 = vpop.f32.mrf.mxu0
        %4559 = vmatprep.mubr.bf16.mxu0 0
        %4560 = vmatmul.mubr.bf16.gmra.mxu0 %v4427
        %v4561 = vpop.f32.mrf.mxu0
        %v4562 = vadd.f32 0.0, %v4561
        %v4563 = vpop.f32.mrf.mxu0
        %v4564 = vpop.f32.mrf.mxu0
        %v4565 = vadd.f32 0.0, %v4564
        %v4566 = vpop.f32.mrf.mxu0
        %4567 = vmatprep.mubr.bf16.mxu0 0
        %4568 = vmatmul.mubr.bf16.gmra.mxu0 %v4430
        %v4569 = vpop.f32.mrf.mxu0
        %v4570 = vadd.f32 0.0, %v4569
        %v4571 = vpop.f32.mrf.mxu0
        %v4572 = vpop.f32.mrf.mxu0
        %v4573 = vadd.f32 0.0, %v4572
        %v4574 = vpop.f32.mrf.mxu0
        %4575 = vmatprep.mubr.bf16.mxu0 0
        %4576 = vmatmul.mubr.bf16.gmra.mxu0 %v4433
        %v4577 = vpop.f32.mrf.mxu0
        %v4578 = vadd.f32 0.0, %v4577
        %v4579 = vpop.f32.mrf.mxu0
        %v4580 = vpop.f32.mrf.mxu0
        %v4581 = vadd.f32 0.0, %v4580
        %v4582 = vpop.f32.mrf.mxu0
        %4583 = vmatprep.mubr.bf16.mxu0 0
        %4584 = vmatmul.mubr.bf16.gmra.mxu0 %v4436
        %v4585 = vpop.f32.mrf.mxu0
        %v4586 = vadd.f32 0.0, %v4585
        %v4587 = vpop.f32.mrf.mxu0
        %v4588 = vpop.f32.mrf.mxu0
        %v4589 = vadd.f32 0.0, %v4588
        %v4590 = vpop.f32.mrf.mxu0
        %4591 = vmatprep.mubr.bf16.mxu0 0
        %4592 = vmatmul.mubr.bf16.gmra.mxu0 %v4439
        %v4593 = vpop.f32.mrf.mxu0
        %v4594 = vadd.f32 0.0, %v4593
        %v4595 = vpop.f32.mrf.mxu0
        %v4596 = vpop.f32.mrf.mxu0
        %v4597 = vadd.f32 0.0, %v4596
        %v4598 = vpop.f32.mrf.mxu0
        %4599 = vmatprep.mubr.bf16.mxu0 0
        %4600 = vmatmul.mubr.bf16.gmra.mxu0 %v4442
        %v4601 = vpop.f32.mrf.mxu0
        %v4602 = vadd.f32 0.0, %v4601
        %v4603 = vpop.f32.mrf.mxu0
        %v4604 = vpop.f32.mrf.mxu0
        %v4605 = vadd.f32 0.0, %v4604
        %v4606 = vpop.f32.mrf.mxu0
        %4607 = vdwg.mxu0
        %v4608 = vadd.f32 %v4186, %v4482
        %v4609 = vadd.f32 %v4187, %v4485
        %v4610 = vadd.f32 %v4188, %v4490
        %v4611 = vadd.f32 %v4189, %v4493
        %v4612 = vadd.f32 %v4190, %v4498
        %v4613 = vadd.f32 %v4191, %v4501
        %v4614 = vadd.f32 %v4192, %v4506
        %v4615 = vadd.f32 %v4193, %v4509
        %v4616 = vadd.f32 %v4194, %v4514
        %v4617 = vadd.f32 %v4195, %v4517
        %v4618 = vadd.f32 %v4196, %v4522
        %v4619 = vadd.f32 %v4197, %v4525
        %v4620 = vadd.f32 %v4198, %v4530
        %v4621 = vadd.f32 %v4199, %v4533
        %v4622 = vadd.f32 %v4200, %v4538
        %v4623 = vadd.f32 %v4201, %v4541
        %v4624 = vadd.f32 %v4202, %v4546
        %v4625 = vadd.f32 %v4203, %v4549
        %v4626 = vadd.f32 %v4204, %v4554
        %v4627 = vadd.f32 %v4205, %v4557
        %v4628 = vadd.f32 %v4206, %v4562
        %v4629 = vadd.f32 %v4207, %v4565
        %v4630 = vadd.f32 %v4208, %v4570
        %v4631 = vadd.f32 %v4209, %v4573
        %v4632 = vadd.f32 %v4210, %v4578
        %v4633 = vadd.f32 %v4211, %v4581
        %v4634 = vadd.f32 %v4212, %v4586
        %v4635 = vadd.f32 %v4213, %v4589
        %v4636 = vadd.f32 %v4214, %v4594
        %v4637 = vadd.f32 %v4215, %v4597
        %v4638 = vadd.f32 %v4216, %v4602
        %v4639 = vadd.f32 %v4217, %v4605
        %v4640 = vadd.f32 %v4608, %v4610
        %v4641 = vadd.f32 %v4640, %v4612
        %v4642 = vadd.f32 %v4641, %v4614
        %v4643 = vadd.f32 %v4642, %v4616
        %v4644 = vadd.f32 %v4643, %v4618
        %v4645 = vadd.f32 %v4644, %v4620
        %v4646 = vadd.f32 %v4645, %v4622
        %v4647 = vadd.f32 %v4646, %v4624
        %v4648 = vadd.f32 %v4647, %v4626
        %v4649 = vadd.f32 %v4648, %v4628
        %v4650 = vadd.f32 %v4649, %v4630
        %v4651 = vadd.f32 %v4650, %v4632
        %v4652 = vadd.f32 %v4651, %v4634
        %v4653 = vadd.f32 %v4652, %v4636
        %v4654 = vadd.f32 %v4653, %v4638
        %v4655 = vadd.f32 %v4609, %v4611
        %v4656 = vadd.f32 %v4655, %v4613
        %v4657 = vadd.f32 %v4656, %v4615
        %v4658 = vadd.f32 %v4657, %v4617
        %v4659 = vadd.f32 %v4658, %v4619
        %v4660 = vadd.f32 %v4659, %v4621
        %v4661 = vadd.f32 %v4660, %v4623
        %v4662 = vadd.f32 %v4661, %v4625
        %v4663 = vadd.f32 %v4662, %v4627
        %v4664 = vadd.f32 %v4663, %v4629
        %v4665 = vadd.f32 %v4664, %v4631
        %v4666 = vadd.f32 %v4665, %v4633
        %v4667 = vadd.f32 %v4666, %v4635
        %v4668 = vadd.f32 %v4667, %v4637
        %v4669 = vadd.f32 %v4668, %v4639
        %v4670 = vadd.f32 %v4654, %v4669
        %v4671 = vrot.slane %v4670, 4
        %v4672 = vadd.f32 %v4670, %v4671
        %v4673 = vrot.slane %v4672, 2
        %v4674 = vadd.f32 %v4672, %v4673
        %v4675 = vrot.slane %v4674, 1
        %v4676 = vadd.f32 %v4674, %v4675
        %v4677 = vmul.f32 %v4608, %v4608
        %v4678 = vmul.f32 %v4609, %v4609
        %v4679 = vmul.f32 %v4610, %v4610
        %v4680 = vmul.f32 %v4611, %v4611
        %v4681 = vmul.f32 %v4612, %v4612
        %v4682 = vmul.f32 %v4613, %v4613
        %v4683 = vmul.f32 %v4614, %v4614
        %v4684 = vmul.f32 %v4615, %v4615
        %v4685 = vmul.f32 %v4616, %v4616
        %v4686 = vmul.f32 %v4617, %v4617
        %v4687 = vmul.f32 %v4618, %v4618
        %v4688 = vmul.f32 %v4619, %v4619
        %v4689 = vmul.f32 %v4620, %v4620
        %v4690 = vmul.f32 %v4621, %v4621
        %v4691 = vmul.f32 %v4622, %v4622
        %v4692 = vmul.f32 %v4623, %v4623
        %v4693 = vmul.f32 %v4624, %v4624
        %v4694 = vmul.f32 %v4625, %v4625
        %v4695 = vmul.f32 %v4626, %v4626
        %v4696 = vmul.f32 %v4627, %v4627
        %v4697 = vmul.f32 %v4628, %v4628
        %v4698 = vmul.f32 %v4629, %v4629
        %v4699 = vmul.f32 %v4630, %v4630
        %v4700 = vmul.f32 %v4631, %v4631
        %v4701 = vmul.f32 %v4632, %v4632
        %v4702 = vmul.f32 %v4633, %v4633
        %v4703 = vmul.f32 %v4634, %v4634
        %v4704 = vmul.f32 %v4635, %v4635
        %v4705 = vmul.f32 %v4636, %v4636
        %v4706 = vmul.f32 %v4637, %v4637
        %v4707 = vmul.f32 %v4638, %v4638
        %v4708 = vmul.f32 %v4639, %v4639
        %v4709 = vadd.f32 %v4677, %v4679
        %v4710 = vadd.f32 %v4709, %v4681
        %v4711 = vadd.f32 %v4710, %v4683
        %v4712 = vadd.f32 %v4711, %v4685
        %v4713 = vadd.f32 %v4712, %v4687
        %v4714 = vadd.f32 %v4713, %v4689
        %v4715 = vadd.f32 %v4714, %v4691
        %v4716 = vadd.f32 %v4715, %v4693
        %v4717 = vadd.f32 %v4716, %v4695
        %v4718 = vadd.f32 %v4717, %v4697
        %v4719 = vadd.f32 %v4718, %v4699
        %v4720 = vadd.f32 %v4719, %v4701
        %v4721 = vadd.f32 %v4720, %v4703
        %v4722 = vadd.f32 %v4721, %v4705
        %v4723 = vadd.f32 %v4722, %v4707
        %v4724 = vadd.f32 %v4678, %v4680
        %v4725 = vadd.f32 %v4724, %v4682
        %v4726 = vadd.f32 %v4725, %v4684
        %v4727 = vadd.f32 %v4726, %v4686
        %v4728 = vadd.f32 %v4727, %v4688
        %v4729 = vadd.f32 %v4728, %v4690
        %v4730 = vadd.f32 %v4729, %v4692
        %v4731 = vadd.f32 %v4730, %v4694
        %v4732 = vadd.f32 %v4731, %v4696
        %v4733 = vadd.f32 %v4732, %v4698
        %v4734 = vadd.f32 %v4733, %v4700
        %v4735 = vadd.f32 %v4734, %v4702
        %v4736 = vadd.f32 %v4735, %v4704
        %v4737 = vadd.f32 %v4736, %v4706
        %v4738 = vadd.f32 %v4737, %v4708
        %v4739 = vadd.f32 %v4723, %v4738
        %v4740 = vrot.slane %v4739, 4
        %v4741 = vadd.f32 %v4739, %v4740
        %v4742 = vrot.slane %v4741, 2
        %v4743 = vadd.f32 %v4741, %v4742
        %v4744 = vrot.slane %v4743, 1
        %v4745 = vadd.f32 %v4743, %v4744
        %v4746 = vld [vmem:[%s242] sm:$0xff]
        %v4747 = vadd.f32 %v4746, %v4676
        %4748 = vst [vmem:[%s242] sm:$0xff] %v4747
        %v4749 = vld [vmem:[%s249] sm:$0xff]
        %v4750 = vadd.f32 %v4749, %v4745
        %4751 = vst [vmem:[%s249] sm:$0xff] %v4750
        %v4752 = vld [vmem:[%s2] sm:$0x1]
        %v4754 = vlaneseq
        %v4755 = vshrl.u32 %v4754, 7
        %v4756 = vsub.s32 0, %v4755
        %v4757 = vrot.slane %v4752, %v4756
        %v4759 = vadd.f32 %v4608, %v4757
        %v4760 = vadd.f32 %v4609, %v4757
        %v4761 = vadd.f32 %v4610, %v4757
        %v4762 = vadd.f32 %v4611, %v4757
        %v4763 = vadd.f32 %v4612, %v4757
        %v4764 = vadd.f32 %v4613, %v4757
        %v4765 = vadd.f32 %v4614, %v4757
        %v4766 = vadd.f32 %v4615, %v4757
        %v4767 = vadd.f32 %v4616, %v4757
        %v4768 = vadd.f32 %v4617, %v4757
        %v4769 = vadd.f32 %v4618, %v4757
        %v4770 = vadd.f32 %v4619, %v4757
        %v4771 = vadd.f32 %v4620, %v4757
        %v4772 = vadd.f32 %v4621, %v4757
        %v4773 = vadd.f32 %v4622, %v4757
        %v4774 = vadd.f32 %v4623, %v4757
        %v4775 = vadd.f32 %v4624, %v4757
        %v4776 = vadd.f32 %v4625, %v4757
        %v4777 = vadd.f32 %v4626, %v4757
        %v4778 = vadd.f32 %v4627, %v4757
        %v4779 = vadd.f32 %v4628, %v4757
        %v4780 = vadd.f32 %v4629, %v4757
        %v4781 = vadd.f32 %v4630, %v4757
        %v4782 = vadd.f32 %v4631, %v4757
        %v4783 = vadd.f32 %v4632, %v4757
        %v4784 = vadd.f32 %v4633, %v4757
        %v4785 = vadd.f32 %v4634, %v4757
        %v4786 = vadd.f32 %v4635, %v4757
        %v4787 = vadd.f32 %v4636, %v4757
        %v4788 = vadd.f32 %v4637, %v4757
        %v4789 = vadd.f32 %v4638, %v4757
        %v4790 = vadd.f32 %v4639, %v4757
        %v4791 = vpack.c.bf16 %v4760, %v4759
        %v4792 = vpack.c.bf16 %v4762, %v4761
        %v4793 = vpack.c.bf16 %v4764, %v4763
        %v4794 = vpack.c.bf16 %v4766, %v4765
        %v4795 = vpack.c.bf16 %v4768, %v4767
        %v4796 = vpack.c.bf16 %v4770, %v4769
        %v4797 = vpack.c.bf16 %v4772, %v4771
        %v4798 = vpack.c.bf16 %v4774, %v4773
        %v4799 = vpack.c.bf16 %v4776, %v4775
        %v4800 = vpack.c.bf16 %v4778, %v4777
        %v4801 = vpack.c.bf16 %v4780, %v4779
        %v4802 = vpack.c.bf16 %v4782, %v4781
        %v4803 = vpack.c.bf16 %v4784, %v4783
        %v4804 = vpack.c.bf16 %v4786, %v4785
        %v4805 = vpack.c.bf16 %v4788, %v4787
        %v4806 = vpack.c.bf16 %v4790, %v4789
        %v4823 = vunpack.c.l.b16 %v4791
        %v4824 = vunpack.c.h.b16 %v4791
        %v4825 = vunpack.c.l.b16 %v4792
        %v4826 = vunpack.c.h.b16 %v4792
        %v4827 = vunpack.c.l.b16 %v4793
        %v4828 = vunpack.c.h.b16 %v4793
        %v4829 = vunpack.c.l.b16 %v4794
        %v4830 = vunpack.c.h.b16 %v4794
        %v4831 = vunpack.c.l.b16 %v4795
        %v4832 = vunpack.c.h.b16 %v4795
        %v4833 = vunpack.c.l.b16 %v4796
        %v4834 = vunpack.c.h.b16 %v4796
        %v4835 = vunpack.c.l.b16 %v4797
        %v4836 = vunpack.c.h.b16 %v4797
        %v4837 = vunpack.c.l.b16 %v4798
        %v4838 = vunpack.c.h.b16 %v4798
        %v4839 = vunpack.c.l.b16 %v4799
        %v4840 = vunpack.c.h.b16 %v4799
        %v4841 = vunpack.c.l.b16 %v4800
        %v4842 = vunpack.c.h.b16 %v4800
        %v4843 = vunpack.c.l.b16 %v4801
        %v4844 = vunpack.c.h.b16 %v4801
        %v4845 = vunpack.c.l.b16 %v4802
        %v4846 = vunpack.c.h.b16 %v4802
        %v4847 = vunpack.c.l.b16 %v4803
        %v4848 = vunpack.c.h.b16 %v4803
        %v4849 = vunpack.c.l.b16 %v4804
        %v4850 = vunpack.c.h.b16 %v4804
        %v4851 = vunpack.c.l.b16 %v4805
        %v4852 = vunpack.c.h.b16 %v4805
        %v4853 = vunpack.c.l.b16 %v4806
        %v4854 = vunpack.c.h.b16 %v4806
        %v4855 = vpack.c.b16 %v4823, %v4823
        %v4856 = vpack.c.b16 %v4824, %v4824
        %v4857 = vpack.c.b16 %v4825, %v4825
        %v4858 = vpack.c.b16 %v4826, %v4826
        %v4859 = vpack.c.b16 %v4827, %v4827
        %v4860 = vpack.c.b16 %v4828, %v4828
        %v4861 = vpack.c.b16 %v4829, %v4829
        %v4862 = vpack.c.b16 %v4830, %v4830
        %v4863 = vpack.c.b16 %v4831, %v4831
        %v4864 = vpack.c.b16 %v4832, %v4832
        %v4865 = vpack.c.b16 %v4833, %v4833
        %v4866 = vpack.c.b16 %v4834, %v4834
        %v4867 = vpack.c.b16 %v4835, %v4835
        %v4868 = vpack.c.b16 %v4836, %v4836
        %v4869 = vpack.c.b16 %v4837, %v4837
        %v4870 = vpack.c.b16 %v4838, %v4838
        %v4871 = vpack.c.b16 %v4839, %v4839
        %v4872 = vpack.c.b16 %v4840, %v4840
        %v4873 = vpack.c.b16 %v4841, %v4841
        %v4874 = vpack.c.b16 %v4842, %v4842
        %v4875 = vpack.c.b16 %v4843, %v4843
        %v4876 = vpack.c.b16 %v4844, %v4844
        %v4877 = vpack.c.b16 %v4845, %v4845
        %v4878 = vpack.c.b16 %v4846, %v4846
        %v4879 = vpack.c.b16 %v4847, %v4847
        %v4880 = vpack.c.b16 %v4848, %v4848
        %v4881 = vpack.c.b16 %v4849, %v4849
        %v4882 = vpack.c.b16 %v4850, %v4850
        %v4883 = vpack.c.b16 %v4851, %v4851
        %v4884 = vpack.c.b16 %v4852, %v4852
        %v4885 = vpack.c.b16 %v4853, %v4853
        %v4886 = vpack.c.b16 %v4854, %v4854
        %4919 = vst [vmem:[%s235] sm:$0xf] %v4855
        %4920 = vst [vmem:[%s235 + $0x4] sm:$0xf] %v4856
        %4921 = vst [vmem:[%s235 + $0x8] sm:$0xf] %v4857
        %4922 = vst [vmem:[%s235 + $0xc] sm:$0xf] %v4858
        %4923 = vst [vmem:[%s235 + $0x10] sm:$0xf] %v4859
        %4924 = vst [vmem:[%s235 + $0x14] sm:$0xf] %v4860
        %4925 = vst [vmem:[%s235 + $0x18] sm:$0xf] %v4861
        %4926 = vst [vmem:[%s235 + $0x1c] sm:$0xf] %v4862
        %4927 = vst [vmem:[%s235 + $0x20] sm:$0xf] %v4863
        %4928 = vst [vmem:[%s235 + $0x24] sm:$0xf] %v4864
        %4929 = vst [vmem:[%s235 + $0x28] sm:$0xf] %v4865
        %4930 = vst [vmem:[%s235 + $0x2c] sm:$0xf] %v4866
        %4931 = vst [vmem:[%s235 + $0x30] sm:$0xf] %v4867
        %4932 = vst [vmem:[%s235 + $0x34] sm:$0xf] %v4868
        %4933 = vst [vmem:[%s235 + $0x38] sm:$0xf] %v4869
        %4934 = vst [vmem:[%s235 + $0x3c] sm:$0xf] %v4870
        %4935 = vst [vmem:[%s235 + $0x40] sm:$0xf] %v4871
        %4936 = vst [vmem:[%s235 + $0x44] sm:$0xf] %v4872
        %4937 = vst [vmem:[%s235 + $0x48] sm:$0xf] %v4873
        %4938 = vst [vmem:[%s235 + $0x4c] sm:$0xf] %v4874
        %4939 = vst [vmem:[%s235 + $0x50] sm:$0xf] %v4875
        %4940 = vst [vmem:[%s235 + $0x54] sm:$0xf] %v4876
        %4941 = vst [vmem:[%s235 + $0x58] sm:$0xf] %v4877
        %4942 = vst [vmem:[%s235 + $0x5c] sm:$0xf] %v4878
        %4943 = vst [vmem:[%s235 + $0x60] sm:$0xf] %v4879
        %4944 = vst [vmem:[%s235 + $0x64] sm:$0xf] %v4880
        %4945 = vst [vmem:[%s235 + $0x68] sm:$0xf] %v4881
        %4946 = vst [vmem:[%s235 + $0x6c] sm:$0xf] %v4882
        %4947 = vst [vmem:[%s235 + $0x70] sm:$0xf] %v4883
        %4948 = vst [vmem:[%s235 + $0x74] sm:$0xf] %v4884
        %4949 = vst [vmem:[%s235 + $0x78] sm:$0xf] %v4885
        %4950 = vst [vmem:[%s235 + $0x7c] sm:$0xf] %v4886
        %s4951 = sand.u32 %s113, 1
        %s4952 = scalar_lea.sflag [#allocation3], %s4951
        %s4953 = sand.u32 %s113, 1
        %s4954 = smul.addr %s4953, 128
        %s4955 = scalar_lea.vmem [#allocation2], %s4954
        %s4956 = sand.u32 %s23, 1
        %s4957 = scalar_lea.sflag [#allocation5], %s4956
        %s4958 = sand.u32 %s139, 1
        %s4959 = smul.addr %s4958, 8
        %s4960 = scalar_lea.vmem [#allocation4], %s4959
        %s4961 = sand.u32 %s23, 1
        %s4962 = scalar_lea.sflag [#allocation5], %s4961
        %s4963 = sand.u32 %s165, 1
        %s4964 = smul.addr %s4963, 8
        %s4965 = scalar_lea.vmem [#allocation6], %s4964
        // Predicated region
        $region37: #{tpu_custom_call.1} parent=31 // pred_check
          %p4966 = pneg %p123
        $region38: #{tpu_custom_call.1} parent=31 // pred_check_branch
          %4968 = sbr.rel (%p4966) target = $region40
        $region39: #{tpu_custom_call.1} parent=31 // pred_region
          %s4969 = smul.u32 16, %s28
          %s4971 = ssub.s32 2048, 2048
          %4972 = vsyncadd %s4952, %s4971
          %s4973 = smul.addr %s4969, 2
          %s4974 = smul.addr %s27, 32
          %s4975 = sadd.s32 %s4973, %s4974
          %s4976 = smul.addr %s4975, 64
          %s4977 = scalar_lea.hbm %s3, %s4976
          %s4978 = sshll.u32 %s4955, 4
          %s4979 = int_to_ptr.vmem [resolvable:$true] %s4978
          %4984 = dma.vmem_to_hbm [thread:$0]  %s4979, 2048, %s4977, %s4952, 64, 64, 4
        $region40: #{tpu_custom_call.1} parent=31 // pred_fallthru
          _
        // Predicated region
        $region41: #{tpu_custom_call.1} parent=31 // pred_check
          %p4985 = pneg %p149
        $region42: #{tpu_custom_call.1} parent=31 // pred_check_branch
          %4987 = sbr.rel (%p4985) target = $region44
        $region43: #{tpu_custom_call.1} parent=31 // pred_region
          %s4989 = ssub.s32 128, 128
          %4990 = vsyncadd %s4957, %s4989
          %s4991 = smul.addr %s27, 128
          %s4992 = scalar_lea.hbm %s4, %s4991
          %s4994 = sshll.u32 %s4960, 4
          %s4995 = int_to_ptr.vmem [resolvable:$true] %s4994
          %4997 = dma.vmem_to_hbm [thread:$0]  %s4995, 128, %s4992, %s4957
        $region44: #{tpu_custom_call.1} parent=31 // pred_fallthru
          _
        // Predicated region
        $region45: #{tpu_custom_call.1} parent=31 // pred_check
          %p4998 = pneg %p175
        $region46: #{tpu_custom_call.1} parent=31 // pred_check_branch
          %5000 = sbr.rel (%p4998) target = $region48
        $region47: #{tpu_custom_call.1} parent=31 // pred_region
          %s5002 = ssub.s32 128, 128
          %5003 = vsyncadd %s4962, %s5002
          %s5004 = smul.addr %s27, 128
          %s5005 = scalar_lea.hbm %s5, %s5004
          %s5007 = sshll.u32 %s4965, 4
          %s5008 = int_to_ptr.vmem [resolvable:$true] %s5007
          %5010 = dma.vmem_to_hbm [thread:$0]  %s5008, 128, %s5005, %s4962
        $region48: #{tpu_custom_call.1} parent=31 // pred_fallthru
          _
      $region32: #{tpu_custom_call.1} parent=5 // pred_fallthru
        _
      %p5011 = scmp.le.s32.totalorder 2, %s18
      // Predicated region
      $region49: #{tpu_custom_call.1} parent=5 // pred_check
        %p5012 = pneg %p5011
      $region50: #{tpu_custom_call.1} parent=5 // pred_check_branch
        %5014 = sbr.rel (%p5012) target = $region52
      $region51: #{tpu_custom_call.1} parent=5 // pred_region
        %s5015 = ssub.s32 %s18, 2
        // Predicated region
        $region53: #{tpu_custom_call.1} parent=51 // pred_check
          %p5016 = pneg %p129
        $region54: #{tpu_custom_call.1} parent=51 // pred_check_branch
          %5018 = sbr.rel (%p5016) target = $region56
        $region55: #{tpu_custom_call.1} parent=51 // pred_region
          %s5019 = sand.u32 %s114, 1
          %s5020 = scalar_lea.sflag [#allocation3], %s5019
          %s5021 = sand.u32 %s114, 1
          %s5022 = smul.addr %s5021, 128
          %s5023 = scalar_lea.vmem [#allocation2], %s5022
          %5024 = dma.done %s5020, 2048
        $region56: #{tpu_custom_call.1} parent=51 // pred_fallthru
          _
        // Predicated region
        $region57: #{tpu_custom_call.1} parent=51 // pred_check
          %p5025 = pneg %p155
        $region58: #{tpu_custom_call.1} parent=51 // pred_check_branch
          %5027 = sbr.rel (%p5025) target = $region60
        $region59: #{tpu_custom_call.1} parent=51 // pred_region
          %s5028 = sand.u32 %s24, 1
          %s5029 = scalar_lea.sflag [#allocation5], %s5028
          %s5030 = sand.u32 %s140, 1
          %s5031 = smul.addr %s5030, 8
          %s5032 = scalar_lea.vmem [#allocation4], %s5031
          %5033 = dma.done %s5029, 128
        $region60: #{tpu_custom_call.1} parent=51 // pred_fallthru
          _
        // Predicated region
        $region61: #{tpu_custom_call.1} parent=51 // pred_check
          %p5034 = pneg %p181
        $region62: #{tpu_custom_call.1} parent=51 // pred_check_branch
          %5036 = sbr.rel (%p5034) target = $region64
        $region63: #{tpu_custom_call.1} parent=51 // pred_region
          %s5037 = sand.u32 %s24, 1
          %s5038 = scalar_lea.sflag [#allocation5], %s5037
          %s5039 = sand.u32 %s166, 1
          %s5040 = smul.addr %s5039, 8
          %s5041 = scalar_lea.vmem [#allocation6], %s5040
          %5042 = dma.done %s5038, 128
        $region64: #{tpu_custom_call.1} parent=51 // pred_fallthru
          _
      $region52: #{tpu_custom_call.1} parent=5 // pred_fallthru
        _
    $region6: #{tpu_custom_call.1} parent=1 // loop_footer
      %s22 = sadd.s32 1, %s18
    $region7: #{tpu_custom_call.1} parent=1 // loop_footer_branch
      %17 = sbr.rel target = $region3
    $region8: #{tpu_custom_call.1} parent=1 // loop_exit
      _
    %5043 = vsyncpa [#allocation3], 1
    %s5044 = scalar_lea.sflag [#allocation3], 1
    %5045 = vsyncpa %s5044, 1
    %5046 = vsyncpa [#allocation5], 1
    %s5047 = scalar_lea.sflag [#allocation5], 1
    %5048 = vsyncpa %s5047, 1

</llo_original>
